<compile_context>
chip_gen: v6e
topology: v6e:2x2x1
jax: 0.10.0
libtpu: 0.0.40
codegen_flags: <defaults>
</compile_context>

<pallas_src>
import functools

import jax
import jax.numpy as jnp
from jax.experimental import pallas as pl
from jax.experimental.pallas import tpu as pltpu

# --- small, self-consistent hyperparameters (mirroring the module structure) ---
EMBED_SIZE = 128     # embed_size   (module used 256) — lane-dense (128 lanes)
HEADS = 8            # heads        (matches module)
HEAD_DIM = EMBED_SIZE // HEADS
FF_HIDDEN = 256      # ff_hidden_dim (module used 512)
SEQ_LEN = 16
BATCH = 2
LN_EPS = 1e-5


def _gpt_layer_kernel(x_ref, bias_ref, wqkv_ref, wo_ref, bo_ref,
                      g1_ref, bt1_ref, w1_ref, bf1_ref, w2_ref, bf2_ref,
                      g2_ref, bt2_ref, o_ref,
                      q_s, k_s, v_s, *, heads, head_dim, ln_eps):
    f32 = jnp.float32
    bf16 = jnp.bfloat16
    H, D = heads, head_dim
    S = bias_ref.shape[0]
    E = x_ref.shape[-1]

    x2d = x_ref[0]                                          # (S, E) f32

    # ---- fused, lane-dense QKV: (S,E) @ (E,3E) block-diagonal bf16 weights ----
    # (softmax scale 1/sqrt(embed_size) is folded into the Q block host-side)
    qkv = jnp.dot(x2d.astype(bf16), wqkv_ref[...],
                  preferred_element_type=f32)               # (S, 3E) f32
    # Scatter per-head lane blocks into head-major scratch (aligned full-plane
    # stores; indexing only the leading scratch dim).
    for h in range(H):
        q_s[h] = qkv[:, h * D:(h + 1) * D]
        k_s[h] = qkv[:, E + h * D:E + (h + 1) * D]
        v_s[h] = qkv[:, 2 * E + h * D:2 * E + (h + 1) * D]

    qh = q_s[...].astype(bf16)                              # (H, S, D)
    kh = k_s[...].astype(bf16)
    vh = v_s[...].astype(bf16)

    # ---- per-head scores + softmax (f32 vector path) ----
    scores = jnp.einsum('hqd,hkd->hqk', qh, kh,
                        preferred_element_type=f32)         # (H, S, S)
    scores = scores + bias_ref[...][None, :, :]             # additive -1e20 mask
    m = jnp.max(scores, axis=-1, keepdims=True)
    p = jnp.exp(scores - m)
    att = p * pl.reciprocal(jnp.sum(p, axis=-1, keepdims=True), approx=True)

    ctx = jnp.einsum('hqk,hkd->hqd', att.astype(bf16), vh,
                     preferred_element_type=f32)            # (H, S, D)

    # ---- output projection: per-head Wo^T slices, head merge = one reduction ----
    part = jnp.einsum('hqd,hde->hqe', ctx.astype(bf16), wo_ref[...],
                      preferred_element_type=f32)           # (H, S, E)
    attn = jnp.sum(part, axis=0) + bo_ref[...]              # (S, E)

    # ---- residual + LayerNorm 1 (dropout == identity, eval mode) ----
    y = x2d + attn
    mu = jnp.mean(y, axis=-1, keepdims=True)
    var = jnp.mean((y - mu) ** 2, axis=-1, keepdims=True)
    y = (y - mu) * jax.lax.rsqrt(var + ln_eps) * g1_ref[...] + bt1_ref[...]

    # ---- SimpleFeedForward (bf16 matmuls, f32 accumulate / bias / relu) ----
    h1 = jnp.dot(y.astype(bf16), w1_ref[...], preferred_element_type=f32) + bf1_ref[...]
    h1 = jnp.maximum(h1, 0.0)
    ff = jnp.dot(h1.astype(bf16), w2_ref[...], preferred_element_type=f32) + bf2_ref[...]

    # ---- residual + LayerNorm 2 ----
    z = y + ff
    mu = jnp.mean(z, axis=-1, keepdims=True)
    var = jnp.mean((z - mu) ** 2, axis=-1, keepdims=True)
    z = (z - mu) * jax.lax.rsqrt(var + ln_eps) * g2_ref[...] + bt2_ref[...]

    o_ref[0] = z


def prepare_params(params):
    """One-time host-side weight prep (transposes, block-diag QKV build,
    softmax-scale fold, bf16 casts).  Call once when params are created/loaded,
    NOT on every forward call."""
    f32, bf16 = jnp.float32, jnp.bfloat16
    D = params["wq"].shape[0]
    E = params["wo"].shape[0]
    H = E // D
    scale = 1.0 / (E ** 0.5)                      # module uses 1/sqrt(embed_size)
    eye = jnp.eye(H, dtype=f32)
    wq_bd = jnp.kron(eye, params["wq"].T * scale)            # (E, E), scale folded
    wk_bd = jnp.kron(eye, params["wk"].T)
    wv_bd = jnp.kron(eye, params["wv"].T)
    return {
        "w_qkv": jnp.concatenate([wq_bd, wk_bd, wv_bd], axis=1).astype(bf16),  # (E,3E)
        "wo_heads": params["wo"].T.reshape(H, D, E).astype(bf16),              # (H,D,E)
        "bo": params["bo"].astype(f32),
        "ln1_g": params["ln1_g"].astype(f32), "ln1_b": params["ln1_b"].astype(f32),
        "w1t": params["w1"].T.astype(bf16), "b1": params["b1"].astype(f32),
        "w2t": params["w2"].T.astype(bf16), "b2": params["b2"].astype(f32),
        "ln2_g": params["ln2_g"].astype(f32), "ln2_b": params["ln2_b"].astype(f32),
    }


def my_gpt_layer(x, mask, prep):
    """x: (N,S,E) f32; mask: (S,S) (nonzero == attend); prep: prepare_params(...)."""
    N, S, E = x.shape
    H, D, _ = prep["wo_heads"].shape
    F = prep["w1t"].shape[1]

    neg_bias = jnp.where(mask == 0, jnp.float32(-1e20), jnp.float32(0.0))

    kernel = functools.partial(_gpt_layer_kernel, heads=H, head_dim=D, ln_eps=LN_EPS)

    def rep(shape):
        zeros = (0,) * len(shape)
        return pl.BlockSpec(shape, lambda n, z=zeros: z)

    in_specs = [
        pl.BlockSpec((1, S, E), lambda n: (n, 0, 0)),   # x (the ONLY activation input)
        rep((S, S)),                                    # additive mask bias
        rep((E, 3 * E)),                                # fused block-diag Wqkv (bf16)
        rep((H, D, E)),                                 # per-head Wo^T slices (bf16)
        rep((1, E)),                                    # bo
        rep((1, E)), rep((1, E)),                       # ln1 gamma, beta
        rep((E, F)), rep((1, F)),                       # W1^T (bf16), b1
        rep((F, E)), rep((1, E)),                       # W2^T (bf16), b2
        rep((1, E)), rep((1, E)),                       # ln2 gamma, beta
    ]

    return pl.pallas_call(
        kernel,
        out_shape=jax.ShapeDtypeStruct((N, S, E), jnp.float32),
        grid_spec=pltpu.PrefetchScalarGridSpec(
            num_scalar_prefetch=0,
            grid=(N,),                                  # one batch element / step
            in_specs=in_specs,
            out_specs=pl.BlockSpec((1, S, E), lambda n: (n, 0, 0)),
            scratch_shapes=[pltpu.VMEM((H, S, D), jnp.float32)] * 3,  # q/k/v head-major
        ),
        compiler_params=pltpu.CompilerParams(
            dimension_semantics=("parallel",),
            vmem_limit_bytes=32 * 1024 * 1024),
    )(x, neg_bias, prep["w_qkv"], prep["wo_heads"], prep["bo"],
      prep["ln1_g"], prep["ln1_b"], prep["w1t"], prep["b1"],
      prep["w2t"], prep["b2"], prep["ln2_g"], prep["ln2_b"])


def _reference(x, mask, p):
    """Pure-JAX f32 reference mirroring the PyTorch forward (eval mode)."""
    N, S, E = x.shape
    H, D = HEADS, E // HEADS
    xr = x.reshape(N, S, H, D)
    q = jnp.einsum("nshd,ed->nshe", xr, p["wq"])   # Linear: x @ W.T
    k = jnp.einsum("nshd,ed->nshe", xr, p["wk"])
    v = jnp.einsum("nshd,ed->nshe", xr, p["wv"])
    energy = jnp.einsum("nqhd,nkhd->nhqk", q, k)
    energy = jnp.where(mask[None, None] == 0, -1e20, energy)
    att = jax.nn.softmax(energy / (E ** 0.5), axis=3)
    out = jnp.einsum("nhql,nlhd->nqhd", att, v).reshape(N, S, E)
    out = out @ p["wo"].T + p["bo"][0]

    def ln(t, g, b):
        mu = jnp.mean(t, axis=-1, keepdims=True)
        var = jnp.mean((t - mu) ** 2, axis=-1, keepdims=True)
        return (t - mu) * jax.lax.rsqrt(var + LN_EPS) * g[0] + b[0]

    y = ln(x + out, p["ln1_g"], p["ln1_b"])
    ff = jnp.maximum(y @ p["w1"].T + p["b1"][0], 0.0) @ p["w2"].T + p["b2"][0]
    return ln(y + ff, p["ln2_g"], p["ln2_b"])


def _init_params(key):
    ks = jax.random.split(key, 8)
    f32 = jnp.float32
    D, E, F = HEAD_DIM, EMBED_SIZE, FF_HIDDEN
    return {
        "wq": jax.random.normal(ks[0], (D, D), f32) * (1.0 / D ** 0.5),
        "wk": jax.random.normal(ks[1], (D, D), f32) * (1.0 / D ** 0.5),
        "wv": jax.random.normal(ks[2], (D, D), f32) * (1.0 / D ** 0.5),
        "wo": jax.random.normal(ks[3], (E, E), f32) * (1.0 / E ** 0.5),
        "bo": jax.random.normal(ks[4], (1, E), f32) * 0.01,
        "ln1_g": jnp.ones((1, E), f32),
        "ln1_b": jnp.zeros((1, E), f32),
        "w1": jax.random.normal(ks[5], (F, E), f32) * (1.0 / E ** 0.5),
        "b1": jax.random.normal(ks[6], (1, F), f32) * 0.01,
        "w2": jax.random.normal(ks[7], (E, F), f32) * (1.0 / F ** 0.5),
        "b2": jnp.zeros((1, E), f32),
        "ln2_g": jnp.ones((1, E), f32),
        "ln2_b": jnp.zeros((1, E), f32),
    }


if __name__ == "__main__":
    key = jax.random.PRNGKey(0)
    kx, kp = jax.random.split(key)

    x = jax.random.normal(kx, (BATCH, SEQ_LEN, EMBED_SIZE), jnp.float32)
    # causal mask (S, S), broadcast over batch & heads like the PyTorch masked_fill
    mask = jnp.tril(jnp.ones((SEQ_LEN, SEQ_LEN), jnp.float32))
    params = _init_params(kp)
    prep = prepare_params(params)   # one-time weight prep, hoisted out of the call path

    out = my_gpt_layer(x, mask, prep)
    out = jax.block_until_ready(out)

    ref = _reference(x, mask, params)
    assert out.shape == (BATCH, SEQ_LEN, EMBED_SIZE)
    # bf16 matmul operands (f32 accumulation) compared against an all-f32 reference.
    assert jnp.allclose(out, ref, atol=3e-2, rtol=3e-2), "mismatch vs reference"

    print("KERNEL_OK")
</pallas_src>

<mosaic_0001>
module attributes {stable_mosaic.version = 11 : i64} {
  func.func @_gpt_layer_kernel(%arg0: i32, %arg1: memref<1x16x128xf32, #tpu.memory_space<vmem>>, %arg2: memref<16x16xf32, #tpu.memory_space<vmem>>, %arg3: memref<128x384xbf16, #tpu.memory_space<vmem>>, %arg4: memref<8x16x128xbf16, #tpu.memory_space<vmem>>, %arg5: memref<1x128xf32, #tpu.memory_space<vmem>>, %arg6: memref<1x128xf32, #tpu.memory_space<vmem>>, %arg7: memref<1x128xf32, #tpu.memory_space<vmem>>, %arg8: memref<128x256xbf16, #tpu.memory_space<vmem>>, %arg9: memref<1x256xf32, #tpu.memory_space<vmem>>, %arg10: memref<256x128xbf16, #tpu.memory_space<vmem>>, %arg11: memref<1x128xf32, #tpu.memory_space<vmem>>, %arg12: memref<1x128xf32, #tpu.memory_space<vmem>>, %arg13: memref<1x128xf32, #tpu.memory_space<vmem>>, %arg14: memref<1x16x128xf32, #tpu.memory_space<vmem>>, %arg15: memref<8x16x16xf32, #tpu.memory_space<vmem>>, %arg16: memref<8x16x16xf32, #tpu.memory_space<vmem>>, %arg17: memref<8x16x16xf32, #tpu.memory_space<vmem>>) attributes {dimension_semantics = [#tpu.dimension_semantics<parallel>], iteration_bounds = array<i64: 2>, scalar_prefetch = 0 : i64, scratch_operands = 3 : i64, tpu.core_type = #tpu.core_type<tc>, window_params = [{transform_indices = @transform_0, window_bounds = array<i64: 1, 16, 128>}, {pipeline_mode = #tpu.pipeline_mode<synchronous>, transform_indices = @transform_1, window_bounds = array<i64: 16, 16>}, {pipeline_mode = #tpu.pipeline_mode<synchronous>, transform_indices = @transform_2, window_bounds = array<i64: 128, 384>}, {pipeline_mode = #tpu.pipeline_mode<synchronous>, transform_indices = @transform_3, window_bounds = array<i64: 8, 16, 128>}, {pipeline_mode = #tpu.pipeline_mode<synchronous>, transform_indices = @transform_4, window_bounds = array<i64: 1, 128>}, {pipeline_mode = #tpu.pipeline_mode<synchronous>, transform_indices = @transform_5, window_bounds = array<i64: 1, 128>}, {pipeline_mode = #tpu.pipeline_mode<synchronous>, transform_indices = @transform_6, window_bounds = array<i64: 1, 128>}, {pipeline_mode = #tpu.pipeline_mode<synchronous>, transform_indices = @transform_7, window_bounds = array<i64: 128, 256>}, {pipeline_mode = #tpu.pipeline_mode<synchronous>, transform_indices = @transform_8, window_bounds = array<i64: 1, 256>}, {pipeline_mode = #tpu.pipeline_mode<synchronous>, transform_indices = @transform_9, window_bounds = array<i64: 256, 128>}, {pipeline_mode = #tpu.pipeline_mode<synchronous>, transform_indices = @transform_10, window_bounds = array<i64: 1, 128>}, {pipeline_mode = #tpu.pipeline_mode<synchronous>, transform_indices = @transform_11, window_bounds = array<i64: 1, 128>}, {pipeline_mode = #tpu.pipeline_mode<synchronous>, transform_indices = @transform_12, window_bounds = array<i64: 1, 128>}, {transform_indices = @transform_13, window_bounds = array<i64: 1, 16, 128>}]} {
    %c0 = arith.constant 0 : index
    %c0_0 = arith.constant 0 : index
    %c0_1 = arith.constant 0 : index
    %0 = vector.load %arg1[%c0, %c0_0, %c0_1] : memref<1x16x128xf32, #tpu.memory_space<vmem>>, vector<1x16x128xf32>
    %1 = vector.shape_cast %0 : vector<1x16x128xf32> to vector<16x128xf32>
    %2 = arith.truncf %1 : vector<16x128xf32> to vector<16x128xbf16>
    %c0_2 = arith.constant 0 : index
    %c0_3 = arith.constant 0 : index
    %3 = vector.load %arg3[%c0_2, %c0_3] : memref<128x384xbf16, #tpu.memory_space<vmem>>, vector<128x384xbf16>
    %cst = arith.constant dense<0.000000e+00> : vector<16x384xf32>
    %4 = tpu.matmul %2, %3, %cst {dimension_numbers = #tpu.dot_dimension_numbers<[1], [0], [0], [1], [0, 0, 1, 1], [], []>} : vector<16x128xbf16>, vector<128x384xbf16>, vector<16x384xf32> -> vector<16x384xf32>
    %5 = vector.extract_strided_slice %4 {offsets = [0, 0], sizes = [16, 16], strides = [1, 1]} : vector<16x384xf32> to vector<16x16xf32>
    %c0_4 = arith.constant 0 : index
    %c0_5 = arith.constant 0 : index
    %c0_6 = arith.constant 0 : index
    %6 = vector.load %arg15[%c0_4, %c0_5, %c0_6] : memref<8x16x16xf32, #tpu.memory_space<vmem>>, vector<1x16x16xf32>
    %7 = vector.shape_cast %6 : vector<1x16x16xf32> to vector<16x16xf32>
    %8 = vector.shape_cast %5 : vector<16x16xf32> to vector<1x16x16xf32>
    tpu.vector_store %arg15[%c0_4, %c0_5, %c0_6], %8 {strides = array<i32>} : memref<8x16x16xf32, #tpu.memory_space<vmem>>, vector<1x16x16xf32>,
    %9 = vector.extract_strided_slice %4 {offsets = [0, 128], sizes = [16, 16], strides = [1, 1]} : vector<16x384xf32> to vector<16x16xf32>
    %c0_7 = arith.constant 0 : index
    %c0_8 = arith.constant 0 : index
    %c0_9 = arith.constant 0 : index
    %10 = vector.load %arg16[%c0_7, %c0_8, %c0_9] : memref<8x16x16xf32, #tpu.memory_space<vmem>>, vector<1x16x16xf32>
    %11 = vector.shape_cast %10 : vector<1x16x16xf32> to vector<16x16xf32>
    %12 = vector.shape_cast %9 : vector<16x16xf32> to vector<1x16x16xf32>
    tpu.vector_store %arg16[%c0_7, %c0_8, %c0_9], %12 {strides = array<i32>} : memref<8x16x16xf32, #tpu.memory_space<vmem>>, vector<1x16x16xf32>,
    %13 = vector.extract_strided_slice %4 {offsets = [0, 256], sizes = [16, 16], strides = [1, 1]} : vector<16x384xf32> to vector<16x16xf32>
    %c0_10 = arith.constant 0 : index
    %c0_11 = arith.constant 0 : index
    %c0_12 = arith.constant 0 : index
    %14 = vector.load %arg17[%c0_10, %c0_11, %c0_12] : memref<8x16x16xf32, #tpu.memory_space<vmem>>, vector<1x16x16xf32>
    %15 = vector.shape_cast %14 : vector<1x16x16xf32> to vector<16x16xf32>
    %16 = vector.shape_cast %13 : vector<16x16xf32> to vector<1x16x16xf32>
    tpu.vector_store %arg17[%c0_10, %c0_11, %c0_12], %16 {strides = array<i32>} : memref<8x16x16xf32, #tpu.memory_space<vmem>>, vector<1x16x16xf32>,
    %17 = vector.extract_strided_slice %4 {offsets = [0, 16], sizes = [16, 16], strides = [1, 1]} : vector<16x384xf32> to vector<16x16xf32>
    %c1 = arith.constant 1 : index
    %c0_13 = arith.constant 0 : index
    %c0_14 = arith.constant 0 : index
    %18 = vector.load %arg15[%c1, %c0_13, %c0_14] : memref<8x16x16xf32, #tpu.memory_space<vmem>>, vector<1x16x16xf32>
    %19 = vector.shape_cast %18 : vector<1x16x16xf32> to vector<16x16xf32>
    %20 = vector.shape_cast %17 : vector<16x16xf32> to vector<1x16x16xf32>
    tpu.vector_store %arg15[%c1, %c0_13, %c0_14], %20 {strides = array<i32>} : memref<8x16x16xf32, #tpu.memory_space<vmem>>, vector<1x16x16xf32>,
    %21 = vector.extract_strided_slice %4 {offsets = [0, 144], sizes = [16, 16], strides = [1, 1]} : vector<16x384xf32> to vector<16x16xf32>
    %c1_15 = arith.constant 1 : index
    %c0_16 = arith.constant 0 : index
    %c0_17 = arith.constant 0 : index
    %22 = vector.load %arg16[%c1_15, %c0_16, %c0_17] : memref<8x16x16xf32, #tpu.memory_space<vmem>>, vector<1x16x16xf32>
    %23 = vector.shape_cast %22 : vector<1x16x16xf32> to vector<16x16xf32>
    %24 = vector.shape_cast %21 : vector<16x16xf32> to vector<1x16x16xf32>
    tpu.vector_store %arg16[%c1_15, %c0_16, %c0_17], %24 {strides = array<i32>} : memref<8x16x16xf32, #tpu.memory_space<vmem>>, vector<1x16x16xf32>,
    %25 = vector.extract_strided_slice %4 {offsets = [0, 272], sizes = [16, 16], strides = [1, 1]} : vector<16x384xf32> to vector<16x16xf32>
    %c1_18 = arith.constant 1 : index
    %c0_19 = arith.constant 0 : index
    %c0_20 = arith.constant 0 : index
    %26 = vector.load %arg17[%c1_18, %c0_19, %c0_20] : memref<8x16x16xf32, #tpu.memory_space<vmem>>, vector<1x16x16xf32>
    %27 = vector.shape_cast %26 : vector<1x16x16xf32> to vector<16x16xf32>
    %28 = vector.shape_cast %25 : vector<16x16xf32> to vector<1x16x16xf32>
    tpu.vector_store %arg17[%c1_18, %c0_19, %c0_20], %28 {strides = array<i32>} : memref<8x16x16xf32, #tpu.memory_space<vmem>>, vector<1x16x16xf32>,
    %29 = vector.extract_strided_slice %4 {offsets = [0, 32], sizes = [16, 16], strides = [1, 1]} : vector<16x384xf32> to vector<16x16xf32>
    %c2 = arith.constant 2 : index
    %c0_21 = arith.constant 0 : index
    %c0_22 = arith.constant 0 : index
    %30 = vector.load %arg15[%c2, %c0_21, %c0_22] : memref<8x16x16xf32, #tpu.memory_space<vmem>>, vector<1x16x16xf32>
    %31 = vector.shape_cast %30 : vector<1x16x16xf32> to vector<16x16xf32>
    %32 = vector.shape_cast %29 : vector<16x16xf32> to vector<1x16x16xf32>
    tpu.vector_store %arg15[%c2, %c0_21, %c0_22], %32 {strides = array<i32>} : memref<8x16x16xf32, #tpu.memory_space<vmem>>, vector<1x16x16xf32>,
    %33 = vector.extract_strided_slice %4 {offsets = [0, 160], sizes = [16, 16], strides = [1, 1]} : vector<16x384xf32> to vector<16x16xf32>
    %c2_23 = arith.constant 2 : index
    %c0_24 = arith.constant 0 : index
    %c0_25 = arith.constant 0 : index
    %34 = vector.load %arg16[%c2_23, %c0_24, %c0_25] : memref<8x16x16xf32, #tpu.memory_space<vmem>>, vector<1x16x16xf32>
    %35 = vector.shape_cast %34 : vector<1x16x16xf32> to vector<16x16xf32>
    %36 = vector.shape_cast %33 : vector<16x16xf32> to vector<1x16x16xf32>
    tpu.vector_store %arg16[%c2_23, %c0_24, %c0_25], %36 {strides = array<i32>} : memref<8x16x16xf32, #tpu.memory_space<vmem>>, vector<1x16x16xf32>,
    %37 = vector.extract_strided_slice %4 {offsets = [0, 288], sizes = [16, 16], strides = [1, 1]} : vector<16x384xf32> to vector<16x16xf32>
    %c2_26 = arith.constant 2 : index
    %c0_27 = arith.constant 0 : index
    %c0_28 = arith.constant 0 : index
    %38 = vector.load %arg17[%c2_26, %c0_27, %c0_28] : memref<8x16x16xf32, #tpu.memory_space<vmem>>, vector<1x16x16xf32>
    %39 = vector.shape_cast %38 : vector<1x16x16xf32> to vector<16x16xf32>
    %40 = vector.shape_cast %37 : vector<16x16xf32> to vector<1x16x16xf32>
    tpu.vector_store %arg17[%c2_26, %c0_27, %c0_28], %40 {strides = array<i32>} : memref<8x16x16xf32, #tpu.memory_space<vmem>>, vector<1x16x16xf32>,
    %41 = vector.extract_strided_slice %4 {offsets = [0, 48], sizes = [16, 16], strides = [1, 1]} : vector<16x384xf32> to vector<16x16xf32>
    %c3 = arith.constant 3 : index
    %c0_29 = arith.constant 0 : index
    %c0_30 = arith.constant 0 : index
    %42 = vector.load %arg15[%c3, %c0_29, %c0_30] : memref<8x16x16xf32, #tpu.memory_space<vmem>>, vector<1x16x16xf32>
    %43 = vector.shape_cast %42 : vector<1x16x16xf32> to vector<16x16xf32>
    %44 = vector.shape_cast %41 : vector<16x16xf32> to vector<1x16x16xf32>
    tpu.vector_store %arg15[%c3, %c0_29, %c0_30], %44 {strides = array<i32>} : memref<8x16x16xf32, #tpu.memory_space<vmem>>, vector<1x16x16xf32>,
    %45 = vector.extract_strided_slice %4 {offsets = [0, 176], sizes = [16, 16], strides = [1, 1]} : vector<16x384xf32> to vector<16x16xf32>
    %c3_31 = arith.constant 3 : index
    %c0_32 = arith.constant 0 : index
    %c0_33 = arith.constant 0 : index
    %46 = vector.load %arg16[%c3_31, %c0_32, %c0_33] : memref<8x16x16xf32, #tpu.memory_space<vmem>>, vector<1x16x16xf32>
    %47 = vector.shape_cast %46 : vector<1x16x16xf32> to vector<16x16xf32>
    %48 = vector.shape_cast %45 : vector<16x16xf32> to vector<1x16x16xf32>
    tpu.vector_store %arg16[%c3_31, %c0_32, %c0_33], %48 {strides = array<i32>} : memref<8x16x16xf32, #tpu.memory_space<vmem>>, vector<1x16x16xf32>,
    %49 = vector.extract_strided_slice %4 {offsets = [0, 304], sizes = [16, 16], strides = [1, 1]} : vector<16x384xf32> to vector<16x16xf32>
    %c3_34 = arith.constant 3 : index
    %c0_35 = arith.constant 0 : index
    %c0_36 = arith.constant 0 : index
    %50 = vector.load %arg17[%c3_34, %c0_35, %c0_36] : memref<8x16x16xf32, #tpu.memory_space<vmem>>, vector<1x16x16xf32>
    %51 = vector.shape_cast %50 : vector<1x16x16xf32> to vector<16x16xf32>
    %52 = vector.shape_cast %49 : vector<16x16xf32> to vector<1x16x16xf32>
    tpu.vector_store %arg17[%c3_34, %c0_35, %c0_36], %52 {strides = array<i32>} : memref<8x16x16xf32, #tpu.memory_space<vmem>>, vector<1x16x16xf32>,
    %53 = vector.extract_strided_slice %4 {offsets = [0, 64], sizes = [16, 16], strides = [1, 1]} : vector<16x384xf32> to vector<16x16xf32>
    %c4 = arith.constant 4 : index
    %c0_37 = arith.constant 0 : index
    %c0_38 = arith.constant 0 : index
    %54 = vector.load %arg15[%c4, %c0_37, %c0_38] : memref<8x16x16xf32, #tpu.memory_space<vmem>>, vector<1x16x16xf32>
    %55 = vector.shape_cast %54 : vector<1x16x16xf32> to vector<16x16xf32>
    %56 = vector.shape_cast %53 : vector<16x16xf32> to vector<1x16x16xf32>
    tpu.vector_store %arg15[%c4, %c0_37, %c0_38], %56 {strides = array<i32>} : memref<8x16x16xf32, #tpu.memory_space<vmem>>, vector<1x16x16xf32>,
    %57 = vector.extract_strided_slice %4 {offsets = [0, 192], sizes = [16, 16], strides = [1, 1]} : vector<16x384xf32> to vector<16x16xf32>
    %c4_39 = arith.constant 4 : index
    %c0_40 = arith.constant 0 : index
    %c0_41 = arith.constant 0 : index
    %58 = vector.load %arg16[%c4_39, %c0_40, %c0_41] : memref<8x16x16xf32, #tpu.memory_space<vmem>>, vector<1x16x16xf32>
    %59 = vector.shape_cast %58 : vector<1x16x16xf32> to vector<16x16xf32>
    %60 = vector.shape_cast %57 : vector<16x16xf32> to vector<1x16x16xf32>
    tpu.vector_store %arg16[%c4_39, %c0_40, %c0_41], %60 {strides = array<i32>} : memref<8x16x16xf32, #tpu.memory_space<vmem>>, vector<1x16x16xf32>,
    %61 = vector.extract_strided_slice %4 {offsets = [0, 320], sizes = [16, 16], strides = [1, 1]} : vector<16x384xf32> to vector<16x16xf32>
    %c4_42 = arith.constant 4 : index
    %c0_43 = arith.constant 0 : index
    %c0_44 = arith.constant 0 : index
    %62 = vector.load %arg17[%c4_42, %c0_43, %c0_44] : memref<8x16x16xf32, #tpu.memory_space<vmem>>, vector<1x16x16xf32>
    %63 = vector.shape_cast %62 : vector<1x16x16xf32> to vector<16x16xf32>
    %64 = vector.shape_cast %61 : vector<16x16xf32> to vector<1x16x16xf32>
    tpu.vector_store %arg17[%c4_42, %c0_43, %c0_44], %64 {strides = array<i32>} : memref<8x16x16xf32, #tpu.memory_space<vmem>>, vector<1x16x16xf32>,
    %65 = vector.extract_strided_slice %4 {offsets = [0, 80], sizes = [16, 16], strides = [1, 1]} : vector<16x384xf32> to vector<16x16xf32>
    %c5 = arith.constant 5 : index
    %c0_45 = arith.constant 0 : index
    %c0_46 = arith.constant 0 : index
    %66 = vector.load %arg15[%c5, %c0_45, %c0_46] : memref<8x16x16xf32, #tpu.memory_space<vmem>>, vector<1x16x16xf32>
    %67 = vector.shape_cast %66 : vector<1x16x16xf32> to vector<16x16xf32>
    %68 = vector.shape_cast %65 : vector<16x16xf32> to vector<1x16x16xf32>
    tpu.vector_store %arg15[%c5, %c0_45, %c0_46], %68 {strides = array<i32>} : memref<8x16x16xf32, #tpu.memory_space<vmem>>, vector<1x16x16xf32>,
    %69 = vector.extract_strided_slice %4 {offsets = [0, 208], sizes = [16, 16], strides = [1, 1]} : vector<16x384xf32> to vector<16x16xf32>
    %c5_47 = arith.constant 5 : index
    %c0_48 = arith.constant 0 : index
    %c0_49 = arith.constant 0 : index
    %70 = vector.load %arg16[%c5_47, %c0_48, %c0_49] : memref<8x16x16xf32, #tpu.memory_space<vmem>>, vector<1x16x16xf32>
    %71 = vector.shape_cast %70 : vector<1x16x16xf32> to vector<16x16xf32>
    %72 = vector.shape_cast %69 : vector<16x16xf32> to vector<1x16x16xf32>
    tpu.vector_store %arg16[%c5_47, %c0_48, %c0_49], %72 {strides = array<i32>} : memref<8x16x16xf32, #tpu.memory_space<vmem>>, vector<1x16x16xf32>,
    %73 = vector.extract_strided_slice %4 {offsets = [0, 336], sizes = [16, 16], strides = [1, 1]} : vector<16x384xf32> to vector<16x16xf32>
    %c5_50 = arith.constant 5 : index
    %c0_51 = arith.constant 0 : index
    %c0_52 = arith.constant 0 : index
    %74 = vector.load %arg17[%c5_50, %c0_51, %c0_52] : memref<8x16x16xf32, #tpu.memory_space<vmem>>, vector<1x16x16xf32>
    %75 = vector.shape_cast %74 : vector<1x16x16xf32> to vector<16x16xf32>
    %76 = vector.shape_cast %73 : vector<16x16xf32> to vector<1x16x16xf32>
    tpu.vector_store %arg17[%c5_50, %c0_51, %c0_52], %76 {strides = array<i32>} : memref<8x16x16xf32, #tpu.memory_space<vmem>>, vector<1x16x16xf32>,
    %77 = vector.extract_strided_slice %4 {offsets = [0, 96], sizes = [16, 16], strides = [1, 1]} : vector<16x384xf32> to vector<16x16xf32>
    %c6 = arith.constant 6 : index
    %c0_53 = arith.constant 0 : index
    %c0_54 = arith.constant 0 : index
    %78 = vector.load %arg15[%c6, %c0_53, %c0_54] : memref<8x16x16xf32, #tpu.memory_space<vmem>>, vector<1x16x16xf32>
    %79 = vector.shape_cast %78 : vector<1x16x16xf32> to vector<16x16xf32>
    %80 = vector.shape_cast %77 : vector<16x16xf32> to vector<1x16x16xf32>
    tpu.vector_store %arg15[%c6, %c0_53, %c0_54], %80 {strides = array<i32>} : memref<8x16x16xf32, #tpu.memory_space<vmem>>, vector<1x16x16xf32>,
    %81 = vector.extract_strided_slice %4 {offsets = [0, 224], sizes = [16, 16], strides = [1, 1]} : vector<16x384xf32> to vector<16x16xf32>
    %c6_55 = arith.constant 6 : index
    %c0_56 = arith.constant 0 : index
    %c0_57 = arith.constant 0 : index
    %82 = vector.load %arg16[%c6_55, %c0_56, %c0_57] : memref<8x16x16xf32, #tpu.memory_space<vmem>>, vector<1x16x16xf32>
    %83 = vector.shape_cast %82 : vector<1x16x16xf32> to vector<16x16xf32>
    %84 = vector.shape_cast %81 : vector<16x16xf32> to vector<1x16x16xf32>
    tpu.vector_store %arg16[%c6_55, %c0_56, %c0_57], %84 {strides = array<i32>} : memref<8x16x16xf32, #tpu.memory_space<vmem>>, vector<1x16x16xf32>,
    %85 = vector.extract_strided_slice %4 {offsets = [0, 352], sizes = [16, 16], strides = [1, 1]} : vector<16x384xf32> to vector<16x16xf32>
    %c6_58 = arith.constant 6 : index
    %c0_59 = arith.constant 0 : index
    %c0_60 = arith.constant 0 : index
    %86 = vector.load %arg17[%c6_58, %c0_59, %c0_60] : memref<8x16x16xf32, #tpu.memory_space<vmem>>, vector<1x16x16xf32>
    %87 = vector.shape_cast %86 : vector<1x16x16xf32> to vector<16x16xf32>
    %88 = vector.shape_cast %85 : vector<16x16xf32> to vector<1x16x16xf32>
    tpu.vector_store %arg17[%c6_58, %c0_59, %c0_60], %88 {strides = array<i32>} : memref<8x16x16xf32, #tpu.memory_space<vmem>>, vector<1x16x16xf32>,
    %89 = vector.extract_strided_slice %4 {offsets = [0, 112], sizes = [16, 16], strides = [1, 1]} : vector<16x384xf32> to vector<16x16xf32>
    %c7 = arith.constant 7 : index
    %c0_61 = arith.constant 0 : index
    %c0_62 = arith.constant 0 : index
    %90 = vector.load %arg15[%c7, %c0_61, %c0_62] : memref<8x16x16xf32, #tpu.memory_space<vmem>>, vector<1x16x16xf32>
    %91 = vector.shape_cast %90 : vector<1x16x16xf32> to vector<16x16xf32>
    %92 = vector.shape_cast %89 : vector<16x16xf32> to vector<1x16x16xf32>
    tpu.vector_store %arg15[%c7, %c0_61, %c0_62], %92 {strides = array<i32>} : memref<8x16x16xf32, #tpu.memory_space<vmem>>, vector<1x16x16xf32>,
    %93 = vector.extract_strided_slice %4 {offsets = [0, 240], sizes = [16, 16], strides = [1, 1]} : vector<16x384xf32> to vector<16x16xf32>
    %c7_63 = arith.constant 7 : index
    %c0_64 = arith.constant 0 : index
    %c0_65 = arith.constant 0 : index
    %94 = vector.load %arg16[%c7_63, %c0_64, %c0_65] : memref<8x16x16xf32, #tpu.memory_space<vmem>>, vector<1x16x16xf32>
    %95 = vector.shape_cast %94 : vector<1x16x16xf32> to vector<16x16xf32>
    %96 = vector.shape_cast %93 : vector<16x16xf32> to vector<1x16x16xf32>
    tpu.vector_store %arg16[%c7_63, %c0_64, %c0_65], %96 {strides = array<i32>} : memref<8x16x16xf32, #tpu.memory_space<vmem>>, vector<1x16x16xf32>,
    %97 = vector.extract_strided_slice %4 {offsets = [0, 368], sizes = [16, 16], strides = [1, 1]} : vector<16x384xf32> to vector<16x16xf32>
    %c7_66 = arith.constant 7 : index
    %c0_67 = arith.constant 0 : index
    %c0_68 = arith.constant 0 : index
    %98 = vector.load %arg17[%c7_66, %c0_67, %c0_68] : memref<8x16x16xf32, #tpu.memory_space<vmem>>, vector<1x16x16xf32>
    %99 = vector.shape_cast %98 : vector<1x16x16xf32> to vector<16x16xf32>
    %100 = vector.shape_cast %97 : vector<16x16xf32> to vector<1x16x16xf32>
    tpu.vector_store %arg17[%c7_66, %c0_67, %c0_68], %100 {strides = array<i32>} : memref<8x16x16xf32, #tpu.memory_space<vmem>>, vector<1x16x16xf32>,
    %c0_69 = arith.constant 0 : index
    %c0_70 = arith.constant 0 : index
    %c0_71 = arith.constant 0 : index
    %101 = vector.load %arg15[%c0_69, %c0_70, %c0_71] : memref<8x16x16xf32, #tpu.memory_space<vmem>>, vector<8x16x16xf32>
    %102 = arith.truncf %101 : vector<8x16x16xf32> to vector<8x16x16xbf16>
    %c0_72 = arith.constant 0 : index
    %c0_73 = arith.constant 0 : index
    %c0_74 = arith.constant 0 : index
    %103 = vector.load %arg16[%c0_72, %c0_73, %c0_74] : memref<8x16x16xf32, #tpu.memory_space<vmem>>, vector<8x16x16xf32>
    %104 = arith.truncf %103 : vector<8x16x16xf32> to vector<8x16x16xbf16>
    %c0_75 = arith.constant 0 : index
    %c0_76 = arith.constant 0 : index
    %c0_77 = arith.constant 0 : index
    %105 = vector.load %arg17[%c0_75, %c0_76, %c0_77] : memref<8x16x16xf32, #tpu.memory_space<vmem>>, vector<8x16x16xf32>
    %106 = arith.truncf %105 : vector<8x16x16xf32> to vector<8x16x16xbf16>
    "tpu.trace_start"() <{level = 10 : i32, message = "hqd,hkd->hqk"}> : () -> ()
    %cst_78 = arith.constant dense<0.000000e+00> : vector<8x16x16xf32>
    %107 = tpu.matmul %102, %104, %cst_78 {dimension_numbers = #tpu.dot_dimension_numbers<[2], [2], [1], [1], [0, 0, 0, 1, 1, 1], [0], [0]>} : vector<8x16x16xbf16>, vector<8x16x16xbf16>, vector<8x16x16xf32> -> vector<8x16x16xf32>
    "tpu.trace_stop"() : () -> ()
    %c0_79 = arith.constant 0 : index
    %c0_80 = arith.constant 0 : index
    %108 = vector.load %arg2[%c0_79, %c0_80] : memref<16x16xf32, #tpu.memory_space<vmem>>, vector<16x16xf32>
    %109 = vector.shape_cast %108 : vector<16x16xf32> to vector<1x16x16xf32>
    %110 = vector.broadcast %109 : vector<1x16x16xf32> to vector<8x16x16xf32>
    %111 = arith.addf %107, %110 : vector<8x16x16xf32>
    %cst_81 = arith.constant dense<0xFF800000> : vector<8x16xf32>
    %112 = vector.multi_reduction <maximumf>, %111, %cst_81 [2] : vector<8x16x16xf32> to vector<8x16xf32>
    %113 = vector.shape_cast %112 : vector<8x16xf32> to vector<8x16x1xf32>
    %114 = vector.broadcast %113 : vector<8x16x1xf32> to vector<8x16x16xf32>
    %115 = arith.subf %111, %114 : vector<8x16x16xf32>
    %116 = math.exp %115 : vector<8x16x16xf32>
    %cst_82 = arith.constant dense<0.000000e+00> : vector<8x16xf32>
    %117 = vector.multi_reduction <add>, %116, %cst_82 [2] : vector<8x16x16xf32> to vector<8x16xf32>
    %118 = vector.shape_cast %117 : vector<8x16xf32> to vector<8x16x1xf32>
    %119 = tpu.reciprocal %118 {approx = true} : vector<8x16x1xf32> -> vector<8x16x1xf32>
    %120 = vector.broadcast %119 : vector<8x16x1xf32> to vector<8x16x16xf32>
    %121 = arith.mulf %116, %120 : vector<8x16x16xf32>
    %122 = arith.truncf %121 : vector<8x16x16xf32> to vector<8x16x16xbf16>
    "tpu.trace_start"() <{level = 10 : i32, message = "hqk,hkd->hqd"}> : () -> ()
    %cst_83 = arith.constant dense<0.000000e+00> : vector<8x16x16xf32>
    %123 = tpu.matmul %122, %106, %cst_83 {dimension_numbers = #tpu.dot_dimension_numbers<[2], [1], [1], [2], [0, 0, 0, 1, 1, 2], [0], [0]>} : vector<8x16x16xbf16>, vector<8x16x16xbf16>, vector<8x16x16xf32> -> vector<8x16x16xf32>
    "tpu.trace_stop"() : () -> ()
    %124 = arith.truncf %123 : vector<8x16x16xf32> to vector<8x16x16xbf16>
    %c0_84 = arith.constant 0 : index
    %c0_85 = arith.constant 0 : index
    %c0_86 = arith.constant 0 : index
    %125 = vector.load %arg4[%c0_84, %c0_85, %c0_86] : memref<8x16x128xbf16, #tpu.memory_space<vmem>>, vector<8x16x128xbf16>
    "tpu.trace_start"() <{level = 10 : i32, message = "hqd,hde->hqe"}> : () -> ()
    %cst_87 = arith.constant dense<0.000000e+00> : vector<8x16x128xf32>
    %126 = tpu.matmul %124, %125, %cst_87 {dimension_numbers = #tpu.dot_dimension_numbers<[2], [1], [1], [2], [0, 0, 0, 1, 1, 2], [0], [0]>} : vector<8x16x16xbf16>, vector<8x16x128xbf16>, vector<8x16x128xf32> -> vector<8x16x128xf32>
    "tpu.trace_stop"() : () -> ()
    %cst_88 = arith.constant dense<0.000000e+00> : vector<16x128xf32>
    %127 = vector.multi_reduction <add>, %126, %cst_88 [0] : vector<8x16x128xf32> to vector<16x128xf32>
    %c0_89 = arith.constant 0 : index
    %c0_90 = arith.constant 0 : index
    %128 = vector.load %arg5[%c0_89, %c0_90] : memref<1x128xf32, #tpu.memory_space<vmem>>, vector<1x128xf32>
    %129 = vector.broadcast %128 : vector<1x128xf32> to vector<16x128xf32>
    %130 = arith.addf %127, %129 : vector<16x128xf32>
    %131 = arith.addf %1, %130 : vector<16x128xf32>
    %cst_91 = arith.constant dense<0.000000e+00> : vector<16xf32>
    %132 = vector.multi_reduction <add>, %131, %cst_91 [1] : vector<16x128xf32> to vector<16xf32>
    %133 = vector.shape_cast %132 : vector<16xf32> to vector<16x1xf32>
    %cst_92 = arith.constant 1.280000e+02 : f32
    %134 = vector.broadcast %cst_92 : f32 to vector<16x1xf32>
    %135 = arith.divf %133, %134 : vector<16x1xf32>
    %136 = vector.broadcast %135 : vector<16x1xf32> to vector<16x128xf32>
    %137 = arith.subf %131, %136 : vector<16x128xf32>
    %138 = arith.mulf %137, %137 : vector<16x128xf32>
    %cst_93 = arith.constant dense<0.000000e+00> : vector<16xf32>
    %139 = vector.multi_reduction <add>, %138, %cst_93 [1] : vector<16x128xf32> to vector<16xf32>
    %140 = vector.shape_cast %139 : vector<16xf32> to vector<16x1xf32>
    %cst_94 = arith.constant 1.280000e+02 : f32
    %141 = vector.broadcast %cst_94 : f32 to vector<16x1xf32>
    %142 = arith.divf %140, %141 : vector<16x1xf32>
    %143 = vector.broadcast %135 : vector<16x1xf32> to vector<16x128xf32>
    %144 = arith.subf %131, %143 : vector<16x128xf32>
    %cst_95 = arith.constant 9.99999974E-6 : f32
    %145 = vector.broadcast %cst_95 : f32 to vector<16x1xf32>
    %146 = arith.addf %142, %145 : vector<16x1xf32>
    %147 = math.rsqrt %146 : vector<16x1xf32>
    %148 = vector.broadcast %147 : vector<16x1xf32> to vector<16x128xf32>
    %149 = arith.mulf %144, %148 : vector<16x128xf32>
    %c0_96 = arith.constant 0 : index
    %c0_97 = arith.constant 0 : index
    %150 = vector.load %arg6[%c0_96, %c0_97] : memref<1x128xf32, #tpu.memory_space<vmem>>, vector<1x128xf32>
    %151 = vector.broadcast %150 : vector<1x128xf32> to vector<16x128xf32>
    %152 = arith.mulf %149, %151 : vector<16x128xf32>
    %c0_98 = arith.constant 0 : index
    %c0_99 = arith.constant 0 : index
    %153 = vector.load %arg7[%c0_98, %c0_99] : memref<1x128xf32, #tpu.memory_space<vmem>>, vector<1x128xf32>
    %154 = vector.broadcast %153 : vector<1x128xf32> to vector<16x128xf32>
    %155 = arith.addf %152, %154 : vector<16x128xf32>
    %156 = arith.truncf %155 : vector<16x128xf32> to vector<16x128xbf16>
    %c0_100 = arith.constant 0 : index
    %c0_101 = arith.constant 0 : index
    %157 = vector.load %arg8[%c0_100, %c0_101] : memref<128x256xbf16, #tpu.memory_space<vmem>>, vector<128x256xbf16>
    %cst_102 = arith.constant dense<0.000000e+00> : vector<16x256xf32>
    %158 = tpu.matmul %156, %157, %cst_102 {dimension_numbers = #tpu.dot_dimension_numbers<[1], [0], [0], [1], [0, 0, 1, 1], [], []>} : vector<16x128xbf16>, vector<128x256xbf16>, vector<16x256xf32> -> vector<16x256xf32>
    %c0_103 = arith.constant 0 : index
    %c0_104 = arith.constant 0 : index
    %159 = vector.load %arg9[%c0_103, %c0_104] : memref<1x256xf32, #tpu.memory_space<vmem>>, vector<1x256xf32>
    %160 = vector.broadcast %159 : vector<1x256xf32> to vector<16x256xf32>
    %161 = arith.addf %158, %160 : vector<16x256xf32>
    %cst_105 = arith.constant 0.000000e+00 : f32
    %162 = vector.broadcast %cst_105 : f32 to vector<16x256xf32>
    %163 = arith.maximumf %161, %162 : vector<16x256xf32>
    %164 = arith.truncf %163 : vector<16x256xf32> to vector<16x256xbf16>
    %c0_106 = arith.constant 0 : index
    %c0_107 = arith.constant 0 : index
    %165 = vector.load %arg10[%c0_106, %c0_107] : memref<256x128xbf16, #tpu.memory_space<vmem>>, vector<256x128xbf16>
    %cst_108 = arith.constant dense<0.000000e+00> : vector<16x128xf32>
    %166 = tpu.matmul %164, %165, %cst_108 {dimension_numbers = #tpu.dot_dimension_numbers<[1], [0], [0], [1], [0, 0, 1, 1], [], []>} : vector<16x256xbf16>, vector<256x128xbf16>, vector<16x128xf32> -> vector<16x128xf32>
    %c0_109 = arith.constant 0 : index
    %c0_110 = arith.constant 0 : index
    %167 = vector.load %arg11[%c0_109, %c0_110] : memref<1x128xf32, #tpu.memory_space<vmem>>, vector<1x128xf32>
    %168 = vector.broadcast %167 : vector<1x128xf32> to vector<16x128xf32>
    %169 = arith.addf %166, %168 : vector<16x128xf32>
    %170 = arith.addf %155, %169 : vector<16x128xf32>
    %cst_111 = arith.constant dense<0.000000e+00> : vector<16xf32>
    %171 = vector.multi_reduction <add>, %170, %cst_111 [1] : vector<16x128xf32> to vector<16xf32>
    %172 = vector.shape_cast %171 : vector<16xf32> to vector<16x1xf32>
    %cst_112 = arith.constant 1.280000e+02 : f32
    %173 = vector.broadcast %cst_112 : f32 to vector<16x1xf32>
    %174 = arith.divf %172, %173 : vector<16x1xf32>
    %175 = vector.broadcast %174 : vector<16x1xf32> to vector<16x128xf32>
    %176 = arith.subf %170, %175 : vector<16x128xf32>
    %177 = arith.mulf %176, %176 : vector<16x128xf32>
    %cst_113 = arith.constant dense<0.000000e+00> : vector<16xf32>
    %178 = vector.multi_reduction <add>, %177, %cst_113 [1] : vector<16x128xf32> to vector<16xf32>
    %179 = vector.shape_cast %178 : vector<16xf32> to vector<16x1xf32>
    %cst_114 = arith.constant 1.280000e+02 : f32
    %180 = vector.broadcast %cst_114 : f32 to vector<16x1xf32>
    %181 = arith.divf %179, %180 : vector<16x1xf32>
    %182 = vector.broadcast %174 : vector<16x1xf32> to vector<16x128xf32>
    %183 = arith.subf %170, %182 : vector<16x128xf32>
    %cst_115 = arith.constant 9.99999974E-6 : f32
    %184 = vector.broadcast %cst_115 : f32 to vector<16x1xf32>
    %185 = arith.addf %181, %184 : vector<16x1xf32>
    %186 = math.rsqrt %185 : vector<16x1xf32>
    %187 = vector.broadcast %186 : vector<16x1xf32> to vector<16x128xf32>
    %188 = arith.mulf %183, %187 : vector<16x128xf32>
    %c0_116 = arith.constant 0 : index
    %c0_117 = arith.constant 0 : index
    %189 = vector.load %arg12[%c0_116, %c0_117] : memref<1x128xf32, #tpu.memory_space<vmem>>, vector<1x128xf32>
    %190 = vector.broadcast %189 : vector<1x128xf32> to vector<16x128xf32>
    %191 = arith.mulf %188, %190 : vector<16x128xf32>
    %c0_118 = arith.constant 0 : index
    %c0_119 = arith.constant 0 : index
    %192 = vector.load %arg13[%c0_118, %c0_119] : memref<1x128xf32, #tpu.memory_space<vmem>>, vector<1x128xf32>
    %193 = vector.broadcast %192 : vector<1x128xf32> to vector<16x128xf32>
    %194 = arith.addf %191, %193 : vector<16x128xf32>
    %c0_120 = arith.constant 0 : index
    %c0_121 = arith.constant 0 : index
    %c0_122 = arith.constant 0 : index
    %195 = vector.load %arg14[%c0_120, %c0_121, %c0_122] : memref<1x16x128xf32, #tpu.memory_space<vmem>>, vector<1x16x128xf32>
    %196 = vector.shape_cast %195 : vector<1x16x128xf32> to vector<16x128xf32>
    %197 = vector.shape_cast %194 : vector<16x128xf32> to vector<1x16x128xf32>
    tpu.vector_store %arg14[%c0_120, %c0_121, %c0_122], %197 {strides = array<i32>} : memref<1x16x128xf32, #tpu.memory_space<vmem>>, vector<1x16x128xf32>,
    return
  }
  func.func @transform_0(%arg0: i32) -> (i32, i32, i32) {
    %c0_i32 = arith.constant 0 : i32
    %c0_i32_0 = arith.constant 0 : i32
    %c0_i32_1 = arith.constant 0 : i32
    return %arg0, %c0_i32, %c0_i32_0 : i32, i32, i32
  }
  func.func @transform_1(%arg0: i32) -> (i32, i32) {
    %c0_i32 = arith.constant 0 : i32
    %c0_i32_0 = arith.constant 0 : i32
    %c0_i32_1 = arith.constant 0 : i32
    return %c0_i32, %c0_i32_0 : i32, i32
  }
  func.func @transform_2(%arg0: i32) -> (i32, i32) {
    %c0_i32 = arith.constant 0 : i32
    %c0_i32_0 = arith.constant 0 : i32
    %c0_i32_1 = arith.constant 0 : i32
    return %c0_i32, %c0_i32_0 : i32, i32
  }
  func.func @transform_3(%arg0: i32) -> (i32, i32, i32) {
    %c0_i32 = arith.constant 0 : i32
    %c0_i32_0 = arith.constant 0 : i32
    %c0_i32_1 = arith.constant 0 : i32
    %c0_i32_2 = arith.constant 0 : i32
    return %c0_i32, %c0_i32_0, %c0_i32_1 : i32, i32, i32
  }
  func.func @transform_4(%arg0: i32) -> (i32, i32) {
    %c0_i32 = arith.constant 0 : i32
    %c0_i32_0 = arith.constant 0 : i32
    %c0_i32_1 = arith.constant 0 : i32
    return %c0_i32, %c0_i32_0 : i32, i32
  }
  func.func @transform_5(%arg0: i32) -> (i32, i32) {
    %c0_i32 = arith.constant 0 : i32
    %c0_i32_0 = arith.constant 0 : i32
    %c0_i32_1 = arith.constant 0 : i32
    return %c0_i32, %c0_i32_0 : i32, i32
  }
  func.func @transform_6(%arg0: i32) -> (i32, i32) {
    %c0_i32 = arith.constant 0 : i32
    %c0_i32_0 = arith.constant 0 : i32
    %c0_i32_1 = arith.constant 0 : i32
    return %c0_i32, %c0_i32_0 : i32, i32
  }
  func.func @transform_7(%arg0: i32) -> (i32, i32) {
    %c0_i32 = arith.constant 0 : i32
    %c0_i32_0 = arith.constant 0 : i32
    %c0_i32_1 = arith.constant 0 : i32
    return %c0_i32, %c0_i32_0 : i32, i32
  }
  func.func @transform_8(%arg0: i32) -> (i32, i32) {
    %c0_i32 = arith.constant 0 : i32
    %c0_i32_0 = arith.constant 0 : i32
    %c0_i32_1 = arith.constant 0 : i32
    return %c0_i32, %c0_i32_0 : i32, i32
  }
  func.func @transform_9(%arg0: i32) -> (i32, i32) {
    %c0_i32 = arith.constant 0 : i32
    %c0_i32_0 = arith.constant 0 : i32
    %c0_i32_1 = arith.constant 0 : i32
    return %c0_i32, %c0_i32_0 : i32, i32
  }
  func.func @transform_10(%arg0: i32) -> (i32, i32) {
    %c0_i32 = arith.constant 0 : i32
    %c0_i32_0 = arith.constant 0 : i32
    %c0_i32_1 = arith.constant 0 : i32
    return %c0_i32, %c0_i32_0 : i32, i32
  }
  func.func @transform_11(%arg0: i32) -> (i32, i32) {
    %c0_i32 = arith.constant 0 : i32
    %c0_i32_0 = arith.constant 0 : i32
    %c0_i32_1 = arith.constant 0 : i32
    return %c0_i32, %c0_i32_0 : i32, i32
  }
  func.func @transform_12(%arg0: i32) -> (i32, i32) {
    %c0_i32 = arith.constant 0 : i32
    %c0_i32_0 = arith.constant 0 : i32
    %c0_i32_1 = arith.constant 0 : i32
    return %c0_i32, %c0_i32_0 : i32, i32
  }
  func.func @transform_13(%arg0: i32) -> (i32, i32, i32) {
    %c0_i32 = arith.constant 0 : i32
    %c0_i32_0 = arith.constant 0 : i32
    %c0_i32_1 = arith.constant 0 : i32
    return %arg0, %c0_i32, %c0_i32_0 : i32, i32, i32
  }
}

</mosaic_0001>

<llo_original>
// kernel: tpu_custom_call.1
$region0: #{tpu_custom_call.1}
  #allocation0 [shape = 'u32[]', space=smem, size = 0x4, offset = 0x4, fixed_abs, tag = 'smem constant byte address 0x4 - core index']
  #allocation1 [shape = 'u32[144,128]{1,0:T(1,128)}', space=vmem, size = 0x12000, scoped, tag = 'internal scratch']
  #allocation2 [shape = 'f32[8,16,16]{2,1,0:T(8,128)}', space=vmem, size = 0x10000, scoped, tag = 'scratch operand']
  #allocation3 [shape = 'f32[8,16,16]{2,1,0:T(8,128)}', space=vmem, size = 0x10000, scoped, tag = 'scratch operand']
  #allocation4 [shape = 'f32[8,16,16]{2,1,0:T(8,128)}', space=vmem, size = 0x10000, scoped, tag = 'scratch operand']
  %s0 = inlined_call_operand.hbm [shape: f32[2,16,128], index: 0, kind: input, shape index: {}]
  %s1 = inlined_call_operand.hbm [shape: f32[16,16], index: 1, kind: input, shape index: {}]
  %s2 = inlined_call_operand.hbm [shape: bf16[128,384], index: 2, kind: input, shape index: {}]
  %s3 = inlined_call_operand.hbm [shape: bf16[8,16,128], index: 3, kind: input, shape index: {}]
  %s4 = inlined_call_operand.vmem [shape: f32[1,128], index: 4, kind: input, shape index: {}]
  %s5 = inlined_call_operand.vmem [shape: f32[1,128], index: 5, kind: input, shape index: {}]
  %s6 = inlined_call_operand.vmem [shape: f32[1,128], index: 6, kind: input, shape index: {}]
  %s7 = inlined_call_operand.hbm [shape: bf16[128,256], index: 7, kind: input, shape index: {}]
  %s8 = inlined_call_operand.vmem [shape: f32[1,256], index: 8, kind: input, shape index: {}]
  %s9 = inlined_call_operand.hbm [shape: bf16[256,128], index: 9, kind: input, shape index: {}]
  %s10 = inlined_call_operand.vmem [shape: f32[1,128], index: 10, kind: input, shape index: {}]
  %s11 = inlined_call_operand.vmem [shape: f32[1,128], index: 11, kind: input, shape index: {}]
  %s12 = inlined_call_operand.vmem [shape: f32[1,128], index: 12, kind: input, shape index: {}]
  %s13 = inlined_call_operand.hbm [shape: f32[2,16,128], index: 13, kind: output, shape index: {}]
  %s14 = sld [smem:[#allocation0]]
  $region109: #{tpu_custom_call.1} parent=0
    _
  %s16 = ssub.s32 1, %s14
  %s17 = scalar_select 0, %s16, %s14
  $region1: #{tpu_custom_call.1} parent=0
    #allocation5 [shape = 'u8[16384]{0}', space=vmem, size = 0x4000, scoped, tag = 'input window, operand 0']
    #allocation6 [shape = 's32[2]{0}', space=sflag, size = 0x8, scoped, tag = 'scoped memory for tpu_custom_call.1']
    #allocation7 [shape = 's32[2]{0}', space=sflag, size = 0x8, scoped, tag = 'scoped memory for tpu_custom_call.1']
    #allocation8 [shape = 'u8[8192]{0}', space=vmem, size = 0x2000, scoped, tag = 'input window, operand 1, single buffered']
    #allocation9 [shape = 's32[1]{0}', space=sflag, size = 0x4, scoped, tag = 'scoped memory for tpu_custom_call.1']
    #allocation10 [shape = 'u8[98304]{0}', space=vmem, size = 0x18000, scoped, tag = 'input window, operand 2, single buffered']
    #allocation11 [shape = 'u8[32768]{0}', space=vmem, size = 0x8000, scoped, tag = 'input window, operand 3, single buffered']
    #allocation12 [shape = 's32[1]{0}', space=sflag, size = 0x4, scoped, tag = 'scoped memory for tpu_custom_call.1']
    #allocation13 [shape = 'u8[65536]{0}', space=vmem, size = 0x10000, scoped, tag = 'input window, operand 7, single buffered']
    #allocation14 [shape = 'u8[65536]{0}', space=vmem, size = 0x10000, scoped, tag = 'input window, operand 9, single buffered']
    #allocation15 [shape = 's32[1]{0}', space=sflag, size = 0x4, scoped, tag = 'scoped memory for tpu_custom_call.1']
    #allocation16 [shape = 'u8[16384]{0}', space=vmem, size = 0x4000, scoped, tag = 'output window, operand 0']
    %18 = vsyncpa [#allocation6], 0
    %s19 = scalar_lea.sflag [#allocation6], 1
    %20 = vsyncpa %s19, 0
    %21 = vsyncpa [#allocation9], 0
    %22 = vsyncpa [#allocation12], 0
    %23 = vsyncpa [#allocation15], 0
    %24 = vsyncpa [#allocation7], 0
    %s25 = scalar_lea.sflag [#allocation7], 1
    %26 = vsyncpa %s25, 0
    loop: start=0, step=1, limit=4
    $region2: #{tpu_custom_call.1} parent=1 // loop_pre_header
      _
    $region3: #{tpu_custom_call.1} parent=1 // loop_header
      %s28 = sphi 0, %s32
      %p29 = scmp.ge.s32.totalorder %s28, 4
      %s38 = sphi 0, %s40
      %s41 = sphi 0, %s38
      %s42 = sphi 0, %s41
      %s58 = sphi 0, %s42
      %s62 = sphi 0, %s62
      %s64 = sphi 0, %s62
      %s65 = sphi 0, %s64
      %s79 = sphi 0, %s65
      %s83 = sphi 0, %s83
      %s85 = sphi 0, %s83
      %s86 = sphi 0, %s85
      %s100 = sphi 0, %s86
      %s104 = sphi 0, %s104
      %s106 = sphi 0, %s104
      %s107 = sphi 0, %s106
      %s121 = sphi 0, %s107
      %s125 = sphi 0, %s125
      %s127 = sphi 0, %s125
      %s128 = sphi 0, %s127
      %s142 = sphi 0, %s128
      %s146 = sphi 0, %s146
      %s148 = sphi 0, %s146
      %s149 = sphi 0, %s148
      %s163 = sphi 0, %s149
      %s167 = sphi 0, %s167
      %s169 = sphi 0, %s167
      %s170 = sphi 0, %s169
      %s184 = sphi 0, %s170
      %s188 = sphi 0, %s188
      %s190 = sphi 0, %s188
      %s191 = sphi 0, %s190
      %s205 = sphi 0, %s191
      %s209 = sphi 0, %s209
      %s211 = sphi 0, %s209
      %s212 = sphi 0, %s211
      %s226 = sphi 0, %s212
      %s230 = sphi 0, %s230
      %s232 = sphi 0, %s230
      %s233 = sphi 0, %s232
      %s247 = sphi 0, %s233
      %s251 = sphi 0, %s251
      %s253 = sphi 0, %s251
      %s254 = sphi 0, %s253
      %s268 = sphi 0, %s254
      %s272 = sphi 0, %s272
      %s274 = sphi 0, %s272
      %s275 = sphi 0, %s274
      %s289 = sphi 0, %s275
      %s293 = sphi 0, %s293
      %s295 = sphi 0, %s293
      %s296 = sphi 0, %s295
      %s310 = sphi 0, %s296
      %s316 = sphi 0, %s318
      %s319 = sphi 0, %s316
      %s320 = sphi 0, %s319
      %s336 = sphi 0, %s320
    $region4: #{tpu_custom_call.1} parent=1 // loop_header_branch
      %31 = sbr.rel (%p29) target = $region8
    $region5: #{tpu_custom_call.1} parent=1 // loop_body
      %s33 = ssub.s32 %s28, 1
      %s34 = ssub.s32 %s28, 2
      %s35 = sadd.s32 %s28, 1
      %s36 = ssub.s32 %s28, %s35
      %p37 = scmp.eq.s32.totalorder %s36, 0
      %s39 = sadd.s32 %s38, 1
      %s40 = scalar_select %p37, %s38, %s39
      %p43 = pneg %p37
      %p44 = scmp.eq.s32.totalorder %s28, 1
      %p45 = por %p43, %p44
      %p46 = scmp.ne.s32.totalorder %s38, %s41
      %p47 = scmp.eq.s32.totalorder %s28, 0
      %p48 = por %p46, %p47
      %p49 = scmp.ne.s32.totalorder %s38, %s41
      %p50 = scmp.eq.s32.totalorder %s33, 1
      %p51 = por %p49, %p50
      %p52 = scmp.ne.s32.totalorder %s41, %s42
      %p53 = scmp.eq.s32.totalorder %s33, 0
      %p54 = por %p52, %p53
      %p55 = scmp.ne.s32.totalorder %s41, %s42
      %p56 = scmp.eq.s32.totalorder %s34, 1
      %p57 = por %p55, %p56
      %p59 = scmp.ne.s32.totalorder %s42, %s58
      %p60 = scmp.eq.s32.totalorder %s34, 0
      %p61 = por %p59, %p60
      %s63 = sadd.s32 %s62, 1
      %p66 = scmp.eq.s32.totalorder %s28, 1
      %p67 = scmp.ne.s32.totalorder %s62, %s64
      %p68 = scmp.eq.s32.totalorder %s28, 0
      %p69 = por %p67, %p68
      %p70 = scmp.ne.s32.totalorder %s62, %s64
      %p71 = scmp.eq.s32.totalorder %s33, 1
      %p72 = por %p70, %p71
      %p73 = scmp.ne.s32.totalorder %s64, %s65
      %p74 = scmp.eq.s32.totalorder %s33, 0
      %p75 = por %p73, %p74
      %p76 = scmp.ne.s32.totalorder %s64, %s65
      %p77 = scmp.eq.s32.totalorder %s34, 1
      %p78 = por %p76, %p77
      %p80 = scmp.ne.s32.totalorder %s65, %s79
      %p81 = scmp.eq.s32.totalorder %s34, 0
      %p82 = por %p80, %p81
      %s84 = sadd.s32 %s83, 1
      %p87 = scmp.eq.s32.totalorder %s28, 1
      %p88 = scmp.ne.s32.totalorder %s83, %s85
      %p89 = scmp.eq.s32.totalorder %s28, 0
      %p90 = por %p88, %p89
      %p91 = scmp.ne.s32.totalorder %s83, %s85
      %p92 = scmp.eq.s32.totalorder %s33, 1
      %p93 = por %p91, %p92
      %p94 = scmp.ne.s32.totalorder %s85, %s86
      %p95 = scmp.eq.s32.totalorder %s33, 0
      %p96 = por %p94, %p95
      %p97 = scmp.ne.s32.totalorder %s85, %s86
      %p98 = scmp.eq.s32.totalorder %s34, 1
      %p99 = por %p97, %p98
      %p101 = scmp.ne.s32.totalorder %s86, %s100
      %p102 = scmp.eq.s32.totalorder %s34, 0
      %p103 = por %p101, %p102
      %s105 = sadd.s32 %s104, 1
      %p108 = scmp.eq.s32.totalorder %s28, 1
      %p109 = scmp.ne.s32.totalorder %s104, %s106
      %p110 = scmp.eq.s32.totalorder %s28, 0
      %p111 = por %p109, %p110
      %p112 = scmp.ne.s32.totalorder %s104, %s106
      %p113 = scmp.eq.s32.totalorder %s33, 1
      %p114 = por %p112, %p113
      %p115 = scmp.ne.s32.totalorder %s106, %s107
      %p116 = scmp.eq.s32.totalorder %s33, 0
      %p117 = por %p115, %p116
      %p118 = scmp.ne.s32.totalorder %s106, %s107
      %p119 = scmp.eq.s32.totalorder %s34, 1
      %p120 = por %p118, %p119
      %p122 = scmp.ne.s32.totalorder %s107, %s121
      %p123 = scmp.eq.s32.totalorder %s34, 0
      %p124 = por %p122, %p123
      %s126 = sadd.s32 %s125, 1
      %p129 = scmp.eq.s32.totalorder %s28, 1
      %p130 = scmp.ne.s32.totalorder %s125, %s127
      %p131 = scmp.eq.s32.totalorder %s28, 0
      %p132 = por %p130, %p131
      %p133 = scmp.ne.s32.totalorder %s125, %s127
      %p134 = scmp.eq.s32.totalorder %s33, 1
      %p135 = por %p133, %p134
      %p136 = scmp.ne.s32.totalorder %s127, %s128
      %p137 = scmp.eq.s32.totalorder %s33, 0
      %p138 = por %p136, %p137
      %p139 = scmp.ne.s32.totalorder %s127, %s128
      %p140 = scmp.eq.s32.totalorder %s34, 1
      %p141 = por %p139, %p140
      %p143 = scmp.ne.s32.totalorder %s128, %s142
      %p144 = scmp.eq.s32.totalorder %s34, 0
      %p145 = por %p143, %p144
      %s147 = sadd.s32 %s146, 1
      %p150 = scmp.eq.s32.totalorder %s28, 1
      %p151 = scmp.ne.s32.totalorder %s146, %s148
      %p152 = scmp.eq.s32.totalorder %s28, 0
      %p153 = por %p151, %p152
      %p154 = scmp.ne.s32.totalorder %s146, %s148
      %p155 = scmp.eq.s32.totalorder %s33, 1
      %p156 = por %p154, %p155
      %p157 = scmp.ne.s32.totalorder %s148, %s149
      %p158 = scmp.eq.s32.totalorder %s33, 0
      %p159 = por %p157, %p158
      %p160 = scmp.ne.s32.totalorder %s148, %s149
      %p161 = scmp.eq.s32.totalorder %s34, 1
      %p162 = por %p160, %p161
      %p164 = scmp.ne.s32.totalorder %s149, %s163
      %p165 = scmp.eq.s32.totalorder %s34, 0
      %p166 = por %p164, %p165
      %s168 = sadd.s32 %s167, 1
      %p171 = scmp.eq.s32.totalorder %s28, 1
      %p172 = scmp.ne.s32.totalorder %s167, %s169
      %p173 = scmp.eq.s32.totalorder %s28, 0
      %p174 = por %p172, %p173
      %p175 = scmp.ne.s32.totalorder %s167, %s169
      %p176 = scmp.eq.s32.totalorder %s33, 1
      %p177 = por %p175, %p176
      %p178 = scmp.ne.s32.totalorder %s169, %s170
      %p179 = scmp.eq.s32.totalorder %s33, 0
      %p180 = por %p178, %p179
      %p181 = scmp.ne.s32.totalorder %s169, %s170
      %p182 = scmp.eq.s32.totalorder %s34, 1
      %p183 = por %p181, %p182
      %p185 = scmp.ne.s32.totalorder %s170, %s184
      %p186 = scmp.eq.s32.totalorder %s34, 0
      %p187 = por %p185, %p186
      %s189 = sadd.s32 %s188, 1
      %p192 = scmp.eq.s32.totalorder %s28, 1
      %p193 = scmp.ne.s32.totalorder %s188, %s190
      %p194 = scmp.eq.s32.totalorder %s28, 0
      %p195 = por %p193, %p194
      %p196 = scmp.ne.s32.totalorder %s188, %s190
      %p197 = scmp.eq.s32.totalorder %s33, 1
      %p198 = por %p196, %p197
      %p199 = scmp.ne.s32.totalorder %s190, %s191
      %p200 = scmp.eq.s32.totalorder %s33, 0
      %p201 = por %p199, %p200
      %p202 = scmp.ne.s32.totalorder %s190, %s191
      %p203 = scmp.eq.s32.totalorder %s34, 1
      %p204 = por %p202, %p203
      %p206 = scmp.ne.s32.totalorder %s191, %s205
      %p207 = scmp.eq.s32.totalorder %s34, 0
      %p208 = por %p206, %p207
      %s210 = sadd.s32 %s209, 1
      %p213 = scmp.eq.s32.totalorder %s28, 1
      %p214 = scmp.ne.s32.totalorder %s209, %s211
      %p215 = scmp.eq.s32.totalorder %s28, 0
      %p216 = por %p214, %p215
      %p217 = scmp.ne.s32.totalorder %s209, %s211
      %p218 = scmp.eq.s32.totalorder %s33, 1
      %p219 = por %p217, %p218
      %p220 = scmp.ne.s32.totalorder %s211, %s212
      %p221 = scmp.eq.s32.totalorder %s33, 0
      %p222 = por %p220, %p221
      %p223 = scmp.ne.s32.totalorder %s211, %s212
      %p224 = scmp.eq.s32.totalorder %s34, 1
      %p225 = por %p223, %p224
      %p227 = scmp.ne.s32.totalorder %s212, %s226
      %p228 = scmp.eq.s32.totalorder %s34, 0
      %p229 = por %p227, %p228
      %s231 = sadd.s32 %s230, 1
      %p234 = scmp.eq.s32.totalorder %s28, 1
      %p235 = scmp.ne.s32.totalorder %s230, %s232
      %p236 = scmp.eq.s32.totalorder %s28, 0
      %p237 = por %p235, %p236
      %p238 = scmp.ne.s32.totalorder %s230, %s232
      %p239 = scmp.eq.s32.totalorder %s33, 1
      %p240 = por %p238, %p239
      %p241 = scmp.ne.s32.totalorder %s232, %s233
      %p242 = scmp.eq.s32.totalorder %s33, 0
      %p243 = por %p241, %p242
      %p244 = scmp.ne.s32.totalorder %s232, %s233
      %p245 = scmp.eq.s32.totalorder %s34, 1
      %p246 = por %p244, %p245
      %p248 = scmp.ne.s32.totalorder %s233, %s247
      %p249 = scmp.eq.s32.totalorder %s34, 0
      %p250 = por %p248, %p249
      %s252 = sadd.s32 %s251, 1
      %p255 = scmp.eq.s32.totalorder %s28, 1
      %p256 = scmp.ne.s32.totalorder %s251, %s253
      %p257 = scmp.eq.s32.totalorder %s28, 0
      %p258 = por %p256, %p257
      %p259 = scmp.ne.s32.totalorder %s251, %s253
      %p260 = scmp.eq.s32.totalorder %s33, 1
      %p261 = por %p259, %p260
      %p262 = scmp.ne.s32.totalorder %s253, %s254
      %p263 = scmp.eq.s32.totalorder %s33, 0
      %p264 = por %p262, %p263
      %p265 = scmp.ne.s32.totalorder %s253, %s254
      %p266 = scmp.eq.s32.totalorder %s34, 1
      %p267 = por %p265, %p266
      %p269 = scmp.ne.s32.totalorder %s254, %s268
      %p270 = scmp.eq.s32.totalorder %s34, 0
      %p271 = por %p269, %p270
      %s273 = sadd.s32 %s272, 1
      %p276 = scmp.eq.s32.totalorder %s28, 1
      %p277 = scmp.ne.s32.totalorder %s272, %s274
      %p278 = scmp.eq.s32.totalorder %s28, 0
      %p279 = por %p277, %p278
      %p280 = scmp.ne.s32.totalorder %s272, %s274
      %p281 = scmp.eq.s32.totalorder %s33, 1
      %p282 = por %p280, %p281
      %p283 = scmp.ne.s32.totalorder %s274, %s275
      %p284 = scmp.eq.s32.totalorder %s33, 0
      %p285 = por %p283, %p284
      %p286 = scmp.ne.s32.totalorder %s274, %s275
      %p287 = scmp.eq.s32.totalorder %s34, 1
      %p288 = por %p286, %p287
      %p290 = scmp.ne.s32.totalorder %s275, %s289
      %p291 = scmp.eq.s32.totalorder %s34, 0
      %p292 = por %p290, %p291
      %s294 = sadd.s32 %s293, 1
      %p297 = scmp.eq.s32.totalorder %s28, 1
      %p298 = scmp.ne.s32.totalorder %s293, %s295
      %p299 = scmp.eq.s32.totalorder %s28, 0
      %p300 = por %p298, %p299
      %p301 = scmp.ne.s32.totalorder %s293, %s295
      %p302 = scmp.eq.s32.totalorder %s33, 1
      %p303 = por %p301, %p302
      %p304 = scmp.ne.s32.totalorder %s295, %s296
      %p305 = scmp.eq.s32.totalorder %s33, 0
      %p306 = por %p304, %p305
      %p307 = scmp.ne.s32.totalorder %s295, %s296
      %p308 = scmp.eq.s32.totalorder %s34, 1
      %p309 = por %p307, %p308
      %p311 = scmp.ne.s32.totalorder %s296, %s310
      %p312 = scmp.eq.s32.totalorder %s34, 0
      %p313 = por %p311, %p312
      %s314 = ssub.s32 %s28, %s35
      %p315 = scmp.eq.s32.totalorder %s314, 0
      %s317 = sadd.s32 %s316, 1
      %s318 = scalar_select %p315, %s316, %s317
      %p321 = pneg %p315
      %p322 = scmp.eq.s32.totalorder %s28, 1
      %p323 = por %p321, %p322
      %p324 = scmp.ne.s32.totalorder %s316, %s319
      %p325 = scmp.eq.s32.totalorder %s28, 0
      %p326 = por %p324, %p325
      %p327 = scmp.ne.s32.totalorder %s316, %s319
      %p328 = scmp.eq.s32.totalorder %s33, 1
      %p329 = por %p327, %p328
      %p330 = scmp.ne.s32.totalorder %s319, %s320
      %p331 = scmp.eq.s32.totalorder %s33, 0
      %p332 = por %p330, %p331
      %p333 = scmp.ne.s32.totalorder %s319, %s320
      %p334 = scmp.eq.s32.totalorder %s34, 1
      %p335 = por %p333, %p334
      %p337 = scmp.ne.s32.totalorder %s320, %s336
      %p338 = scmp.eq.s32.totalorder %s34, 0
      %p339 = por %p337, %p338
      %p340 = scmp.le.s32.totalorder 1, %s28
      %p341 = scmp.lt.s32.totalorder %s28, 3
      %p342 = pnand %p340, %p341
      %p343 = pneg %p342
      // Predicated region
      $region9: #{tpu_custom_call.1} parent=5 // pred_check
        _
      $region10: #{tpu_custom_call.1} parent=5 // pred_check_branch
        %345 = sbr.rel (%p342) target = $region12
      $region11: #{tpu_custom_call.1} parent=5 // pred_region
        %s346 = ssub.s32 %s28, 1
        // Predicated region
        $region13: #{tpu_custom_call.1} parent=11 // pred_check
          %p347 = pneg %p75
        $region14: #{tpu_custom_call.1} parent=11 // pred_check_branch
          %349 = sbr.rel (%p347) target = $region16
        $region15: #{tpu_custom_call.1} parent=11 // pred_region
          %s351 = ssub.s32 256, 256
          %352 = vsyncadd [#allocation9], %s351
          %s353 = sshll.u32 [#allocation8], 4
          %s354 = int_to_ptr.vmem [resolvable:$true] %s353
          %359 = dma.hbm_to_vmem [thread:$0]  %s1, 256, %s354, [#allocation9], 128, 128, 8
        $region16: #{tpu_custom_call.1} parent=11 // pred_fallthru
          _
        // Predicated region
        $region17: #{tpu_custom_call.1} parent=11 // pred_check
          %p360 = pneg %p96
        $region18: #{tpu_custom_call.1} parent=11 // pred_check_branch
          %362 = sbr.rel (%p360) target = $region20
        $region19: #{tpu_custom_call.1} parent=11 // pred_region
          %s364 = ssub.s32 3072, 3072
          %365 = vsyncadd [#allocation9], %s364
          %s366 = sshll.u32 [#allocation10], 4
          %s367 = int_to_ptr.vmem [resolvable:$true] %s366
          %372 = dma.hbm_to_vmem [thread:$0]  %s2, 3072, %s367, [#allocation9], 192, 192, 12
        $region20: #{tpu_custom_call.1} parent=11 // pred_fallthru
          _
        // Predicated region
        $region21: #{tpu_custom_call.1} parent=11 // pred_check
          %p373 = pneg %p117
        $region22: #{tpu_custom_call.1} parent=11 // pred_check_branch
          %375 = sbr.rel (%p373) target = $region24
        $region23: #{tpu_custom_call.1} parent=11 // pred_region
          %s377 = ssub.s32 1024, 1024
          %378 = vsyncadd [#allocation12], %s377
          %s379 = sshll.u32 [#allocation11], 4
          %s380 = int_to_ptr.vmem [resolvable:$true] %s379
          %385 = dma.hbm_to_vmem [thread:$0]  %s3, 1024, %s380, [#allocation12], 64, 64, 4
        $region24: #{tpu_custom_call.1} parent=11 // pred_fallthru
          _
        // Predicated region
        $region25: #{tpu_custom_call.1} parent=11 // pred_check
          %p386 = pneg %p138
        $region26: #{tpu_custom_call.1} parent=11 // pred_check_branch
          %388 = sbr.rel (%p386) target = $region28
        $region27: #{tpu_custom_call.1} parent=11 // pred_region
          _
        $region28: #{tpu_custom_call.1} parent=11 // pred_fallthru
          _
        // Predicated region
        $region29: #{tpu_custom_call.1} parent=11 // pred_check
          %p389 = pneg %p159
        $region30: #{tpu_custom_call.1} parent=11 // pred_check_branch
          %391 = sbr.rel (%p389) target = $region32
        $region31: #{tpu_custom_call.1} parent=11 // pred_region
          _
        $region32: #{tpu_custom_call.1} parent=11 // pred_fallthru
          _
        // Predicated region
        $region33: #{tpu_custom_call.1} parent=11 // pred_check
          %p392 = pneg %p180
        $region34: #{tpu_custom_call.1} parent=11 // pred_check_branch
          %394 = sbr.rel (%p392) target = $region36
        $region35: #{tpu_custom_call.1} parent=11 // pred_region
          _
        $region36: #{tpu_custom_call.1} parent=11 // pred_fallthru
          _
        // Predicated region
        $region37: #{tpu_custom_call.1} parent=11 // pred_check
          %p395 = pneg %p201
        $region38: #{tpu_custom_call.1} parent=11 // pred_check_branch
          %397 = sbr.rel (%p395) target = $region40
        $region39: #{tpu_custom_call.1} parent=11 // pred_region
          %s399 = ssub.s32 2048, 2048
          %400 = vsyncadd [#allocation12], %s399
          %s401 = sshll.u32 [#allocation13], 4
          %s402 = int_to_ptr.vmem [resolvable:$true] %s401
          %407 = dma.hbm_to_vmem [thread:$0]  %s7, 2048, %s402, [#allocation12], 128, 128, 8
        $region40: #{tpu_custom_call.1} parent=11 // pred_fallthru
          _
        // Predicated region
        $region41: #{tpu_custom_call.1} parent=11 // pred_check
          %p408 = pneg %p222
        $region42: #{tpu_custom_call.1} parent=11 // pred_check_branch
          %410 = sbr.rel (%p408) target = $region44
        $region43: #{tpu_custom_call.1} parent=11 // pred_region
          _
        $region44: #{tpu_custom_call.1} parent=11 // pred_fallthru
          _
        // Predicated region
        $region45: #{tpu_custom_call.1} parent=11 // pred_check
          %p411 = pneg %p243
        $region46: #{tpu_custom_call.1} parent=11 // pred_check_branch
          %413 = sbr.rel (%p411) target = $region48
        $region47: #{tpu_custom_call.1} parent=11 // pred_region
          %s415 = ssub.s32 2048, 2048
          %416 = vsyncadd [#allocation15], %s415
          %s417 = sshll.u32 [#allocation14], 4
          %s418 = int_to_ptr.vmem [resolvable:$true] %s417
          %423 = dma.hbm_to_vmem [thread:$0]  %s9, 2048, %s418, [#allocation15], 64, 64, 4
        $region48: #{tpu_custom_call.1} parent=11 // pred_fallthru
          _
        // Predicated region
        $region49: #{tpu_custom_call.1} parent=11 // pred_check
          %p424 = pneg %p264
        $region50: #{tpu_custom_call.1} parent=11 // pred_check_branch
          %426 = sbr.rel (%p424) target = $region52
        $region51: #{tpu_custom_call.1} parent=11 // pred_region
          _
        $region52: #{tpu_custom_call.1} parent=11 // pred_fallthru
          _
        // Predicated region
        $region53: #{tpu_custom_call.1} parent=11 // pred_check
          %p427 = pneg %p285
        $region54: #{tpu_custom_call.1} parent=11 // pred_check_branch
          %429 = sbr.rel (%p427) target = $region56
        $region55: #{tpu_custom_call.1} parent=11 // pred_region
          _
        $region56: #{tpu_custom_call.1} parent=11 // pred_fallthru
          _
        // Predicated region
        $region57: #{tpu_custom_call.1} parent=11 // pred_check
          %p430 = pneg %p306
        $region58: #{tpu_custom_call.1} parent=11 // pred_check_branch
          %432 = sbr.rel (%p430) target = $region60
        $region59: #{tpu_custom_call.1} parent=11 // pred_region
          _
        $region60: #{tpu_custom_call.1} parent=11 // pred_fallthru
          _
      $region12: #{tpu_custom_call.1} parent=5 // pred_fallthru
        _
      %p433 = scmp.lt.s32.totalorder %s28, 2
      // Predicated region
      $region61: #{tpu_custom_call.1} parent=5 // pred_check
        %p434 = pneg %p433
      $region62: #{tpu_custom_call.1} parent=5 // pred_check_branch
        %436 = sbr.rel (%p434) target = $region64
      $region63: #{tpu_custom_call.1} parent=5 // pred_region
        // Predicated region
        $region65: #{tpu_custom_call.1} parent=63 // pred_check
          %p437 = pneg %p48
        $region66: #{tpu_custom_call.1} parent=63 // pred_check_branch
          %439 = sbr.rel (%p437) target = $region68
        $region67: #{tpu_custom_call.1} parent=63 // pred_region
          %s440 = sand.u32 %s38, 1
          %s441 = scalar_lea.sflag [#allocation6], %s440
          %s442 = sand.u32 %s38, 1
          %s443 = smul.addr %s442, 16
          %s444 = scalar_lea.vmem [#allocation5], %s443
          %s446 = ssub.s32 256, 256
          %447 = vsyncadd %s441, %s446
          %s448 = smul.addr %s28, 2
          %s449 = smul.addr %s448, 128
          %s450 = scalar_lea.hbm %s0, %s449
          %s451 = sshll.u32 %s444, 4
          %s452 = int_to_ptr.vmem [resolvable:$true] %s451
          %457 = dma.hbm_to_vmem [thread:$0]  %s450, 256, %s452, %s441, 128, 128, 8
        $region68: #{tpu_custom_call.1} parent=63 // pred_fallthru
          _
      $region64: #{tpu_custom_call.1} parent=5 // pred_fallthru
        _
      %p458 = scmp.le.s32.totalorder 1, %s28
      %p459 = scmp.lt.s32.totalorder %s28, 3
      %p460 = pnand %p458, %p459
      %p461 = pneg %p460
      // Predicated region
      $region69: #{tpu_custom_call.1} parent=5 // pred_check
        _
      $region70: #{tpu_custom_call.1} parent=5 // pred_check_branch
        %463 = sbr.rel (%p460) target = $region72
      $region71: #{tpu_custom_call.1} parent=5 // pred_region
        %s464 = ssub.s32 %s28, 1
        %s465 = sand.u32 %s41, 1
        %s466 = scalar_lea.sflag [#allocation6], %s465
        %s467 = sand.u32 %s41, 1
        %s468 = smul.addr %s467, 16
        %s469 = scalar_lea.vmem [#allocation5], %s468
        // Predicated region
        $region73: #{tpu_custom_call.1} parent=71 // pred_check
          %p470 = pneg %p54
        $region74: #{tpu_custom_call.1} parent=71 // pred_check_branch
          %472 = sbr.rel (%p470) target = $region76
        $region75: #{tpu_custom_call.1} parent=71 // pred_region
          %473 = dma.done %s466, 256
        $region76: #{tpu_custom_call.1} parent=71 // pred_fallthru
          _
        // Predicated region
        $region77: #{tpu_custom_call.1} parent=71 // pred_check
          %p474 = pneg %p75
        $region78: #{tpu_custom_call.1} parent=71 // pred_check_branch
          %476 = sbr.rel (%p474) target = $region80
        $region79: #{tpu_custom_call.1} parent=71 // pred_region
          %477 = dma.done [#allocation9], 256
        $region80: #{tpu_custom_call.1} parent=71 // pred_fallthru
          _
        // Predicated region
        $region81: #{tpu_custom_call.1} parent=71 // pred_check
          %p478 = pneg %p96
        $region82: #{tpu_custom_call.1} parent=71 // pred_check_branch
          %480 = sbr.rel (%p478) target = $region84
        $region83: #{tpu_custom_call.1} parent=71 // pred_region
          %481 = dma.done [#allocation9], 3072
        $region84: #{tpu_custom_call.1} parent=71 // pred_fallthru
          _
        // Predicated region
        $region85: #{tpu_custom_call.1} parent=71 // pred_check
          %p482 = pneg %p117
        $region86: #{tpu_custom_call.1} parent=71 // pred_check_branch
          %484 = sbr.rel (%p482) target = $region88
        $region87: #{tpu_custom_call.1} parent=71 // pred_region
          %485 = dma.done [#allocation12], 1024
        $region88: #{tpu_custom_call.1} parent=71 // pred_fallthru
          _
        // Predicated region
        $region89: #{tpu_custom_call.1} parent=71 // pred_check
          %p486 = pneg %p201
        $region90: #{tpu_custom_call.1} parent=71 // pred_check_branch
          %488 = sbr.rel (%p486) target = $region92
        $region91: #{tpu_custom_call.1} parent=71 // pred_region
          %489 = dma.done [#allocation12], 2048
        $region92: #{tpu_custom_call.1} parent=71 // pred_fallthru
          _
        // Predicated region
        $region93: #{tpu_custom_call.1} parent=71 // pred_check
          %p490 = pneg %p243
        $region94: #{tpu_custom_call.1} parent=71 // pred_check_branch
          %492 = sbr.rel (%p490) target = $region96
        $region95: #{tpu_custom_call.1} parent=71 // pred_region
          %493 = dma.done [#allocation15], 2048
        $region96: #{tpu_custom_call.1} parent=71 // pred_fallthru
          _
        %s494 = sand.u32 %s41, 1
        %s495 = scalar_lea.sflag [#allocation6], %s494
        %s496 = sand.u32 %s41, 1
        %s497 = smul.addr %s496, 16
        %s498 = scalar_lea.vmem [#allocation5], %s497
        %p499 = pneg %p54
        %p500 = pneg %p51
        %p501 = pneg %p75
        %p502 = pneg %p72
        %p503 = pneg %p96
        %p504 = pneg %p93
        %p505 = pneg %p117
        %p506 = pneg %p114
        %p507 = pneg %p138
        %p508 = pneg %p135
        %p509 = pneg %p159
        %p510 = pneg %p156
        %p511 = pneg %p180
        %p512 = pneg %p177
        %p513 = pneg %p201
        %p514 = pneg %p198
        %p515 = pneg %p222
        %p516 = pneg %p219
        %p517 = pneg %p243
        %p518 = pneg %p240
        %p519 = pneg %p264
        %p520 = pneg %p261
        %p521 = pneg %p285
        %p522 = pneg %p282
        %p523 = pneg %p306
        %p524 = pneg %p303
        %p525 = pneg %p332
        %p526 = pneg %p329
        %s527 = sand.u32 %s319, 1
        %s528 = scalar_lea.sflag [#allocation7], %s527
        %s529 = sand.u32 %s319, 1
        %s530 = smul.addr %s529, 16
        %s531 = scalar_lea.vmem [#allocation16], %s530
        %v533 = vld [vmem:[%s469] sm:$0xff]
        %v534 = vld [vmem:[%s469 + $0x8] sm:$0xff]
        %v535 = vpack.c.bf16 %v534, %v533
        %v536 = vld [vmem:[#allocation10] sm:$0xff]
        %v537 = vld [vmem:[#allocation10 + $0x8] sm:$0xf]
        %v538 = vld [vmem:[#allocation10 + $0xc] sm:$0xff]
        %v539 = vld [vmem:[#allocation10 + $0x14] sm:$0xf]
        %v540 = vld [vmem:[#allocation10 + $0x18] sm:$0xff]
        %v541 = vld [vmem:[#allocation10 + $0x20] sm:$0xf]
        %v542 = vld [vmem:[#allocation10 + $0x24] sm:$0xff]
        %v543 = vld [vmem:[#allocation10 + $0x2c] sm:$0xf]
        %v544 = vld [vmem:[#allocation10 + $0x30] sm:$0xff]
        %v545 = vld [vmem:[#allocation10 + $0x38] sm:$0xf]
        %v546 = vld [vmem:[#allocation10 + $0x3c] sm:$0xff]
        %v547 = vld [vmem:[#allocation10 + $0x44] sm:$0xf]
        %v548 = vld [vmem:[#allocation10 + $0x48] sm:$0xff]
        %v549 = vld [vmem:[#allocation10 + $0x50] sm:$0xf]
        %v550 = vld [vmem:[#allocation10 + $0x54] sm:$0xff]
        %v551 = vld [vmem:[#allocation10 + $0x5c] sm:$0xf]
        %v552 = vld [vmem:[#allocation10 + $0x60] sm:$0xff]
        %v553 = vld [vmem:[#allocation10 + $0x68] sm:$0xf]
        %v554 = vld [vmem:[#allocation10 + $0x6c] sm:$0xff]
        %v555 = vld [vmem:[#allocation10 + $0x74] sm:$0xf]
        %v556 = vld [vmem:[#allocation10 + $0x78] sm:$0xff]
        %v557 = vld [vmem:[#allocation10 + $0x80] sm:$0xf]
        %v558 = vld [vmem:[#allocation10 + $0x84] sm:$0xff]
        %v559 = vld [vmem:[#allocation10 + $0x8c] sm:$0xf]
        %v560 = vld [vmem:[#allocation10 + $0x90] sm:$0xff]
        %v561 = vld [vmem:[#allocation10 + $0x98] sm:$0xf]
        %v562 = vld [vmem:[#allocation10 + $0x9c] sm:$0xff]
        %v563 = vld [vmem:[#allocation10 + $0xa4] sm:$0xf]
        %v564 = vld [vmem:[#allocation10 + $0xa8] sm:$0xff]
        %v565 = vld [vmem:[#allocation10 + $0xb0] sm:$0xf]
        %v566 = vld [vmem:[#allocation10 + $0xb4] sm:$0xff]
        %v567 = vld [vmem:[#allocation10 + $0xbc] sm:$0xf]
        %v600 = vunpack.c.l.b16 %v536
        %v601 = vunpack.c.h.b16 %v536
        %v602 = vunpack.c.l.b16 %v537
        %v603 = vunpack.c.l.b16 %v538
        %v604 = vunpack.c.h.b16 %v538
        %v605 = vunpack.c.l.b16 %v539
        %v606 = vunpack.c.l.b16 %v540
        %v607 = vunpack.c.h.b16 %v540
        %v608 = vunpack.c.l.b16 %v541
        %v609 = vunpack.c.l.b16 %v542
        %v610 = vunpack.c.h.b16 %v542
        %v611 = vunpack.c.l.b16 %v543
        %v612 = vunpack.c.l.b16 %v544
        %v613 = vunpack.c.h.b16 %v544
        %v614 = vunpack.c.l.b16 %v545
        %v615 = vunpack.c.l.b16 %v546
        %v616 = vunpack.c.h.b16 %v546
        %v617 = vunpack.c.l.b16 %v547
        %v618 = vunpack.c.l.b16 %v548
        %v619 = vunpack.c.h.b16 %v548
        %v620 = vunpack.c.l.b16 %v549
        %v621 = vunpack.c.l.b16 %v550
        %v622 = vunpack.c.h.b16 %v550
        %v623 = vunpack.c.l.b16 %v551
        %v624 = vunpack.c.l.b16 %v552
        %v625 = vunpack.c.h.b16 %v552
        %v626 = vunpack.c.l.b16 %v553
        %v627 = vunpack.c.l.b16 %v554
        %v628 = vunpack.c.h.b16 %v554
        %v629 = vunpack.c.l.b16 %v555
        %v630 = vunpack.c.l.b16 %v556
        %v631 = vunpack.c.h.b16 %v556
        %v632 = vunpack.c.l.b16 %v557
        %v633 = vunpack.c.l.b16 %v558
        %v634 = vunpack.c.h.b16 %v558
        %v635 = vunpack.c.l.b16 %v559
        %v636 = vunpack.c.l.b16 %v560
        %v637 = vunpack.c.h.b16 %v560
        %v638 = vunpack.c.l.b16 %v561
        %v639 = vunpack.c.l.b16 %v562
        %v640 = vunpack.c.h.b16 %v562
        %v641 = vunpack.c.l.b16 %v563
        %v642 = vunpack.c.l.b16 %v564
        %v643 = vunpack.c.h.b16 %v564
        %v644 = vunpack.c.l.b16 %v565
        %v645 = vunpack.c.l.b16 %v566
        %v646 = vunpack.c.h.b16 %v566
        %v647 = vunpack.c.l.b16 %v567
        %v648 = vpack.c.b16 %v603, %v600
        %v649 = vpack.c.b16 %v604, %v601
        %v650 = vpack.c.b16 %v605, %v602
        %v651 = vpack.c.b16 %v609, %v606
        %v652 = vpack.c.b16 %v610, %v607
        %v653 = vpack.c.b16 %v611, %v608
        %v654 = vpack.c.b16 %v615, %v612
        %v655 = vpack.c.b16 %v616, %v613
        %v656 = vpack.c.b16 %v617, %v614
        %v657 = vpack.c.b16 %v621, %v618
        %v658 = vpack.c.b16 %v622, %v619
        %v659 = vpack.c.b16 %v623, %v620
        %v660 = vpack.c.b16 %v627, %v624
        %v661 = vpack.c.b16 %v628, %v625
        %v662 = vpack.c.b16 %v629, %v626
        %v663 = vpack.c.b16 %v633, %v630
        %v664 = vpack.c.b16 %v634, %v631
        %v665 = vpack.c.b16 %v635, %v632
        %v666 = vpack.c.b16 %v639, %v636
        %v667 = vpack.c.b16 %v640, %v637
        %v668 = vpack.c.b16 %v641, %v638
        %v669 = vpack.c.b16 %v645, %v642
        %v670 = vpack.c.b16 %v646, %v643
        %v671 = vpack.c.b16 %v647, %v644
        %696 = vmatprep.subr.bf16.mxu0 %v670
        %697 = vmatpush1.bf16.msra.mxu0 %v669
        %698 = vmatprep.subr.bf16.mxu0 %v667
        %699 = vmatpush1.bf16.msra.mxu0 %v666
        %700 = vmatprep.subr.bf16.mxu0 %v664
        %701 = vmatpush1.bf16.msra.mxu0 %v663
        %702 = vmatprep.subr.bf16.mxu0 %v661
        %703 = vmatpush1.bf16.msra.mxu0 %v660
        %704 = vmatprep.subr.bf16.mxu0 %v658
        %705 = vmatpush1.bf16.msra.mxu0 %v657
        %706 = vmatprep.subr.bf16.mxu0 %v655
        %707 = vmatpush1.bf16.msra.mxu0 %v654
        %708 = vmatprep.subr.bf16.mxu0 %v652
        %709 = vmatpush1.bf16.msra.mxu0 %v651
        %710 = vmatprep.subr.bf16.mxu0 %v649
        %711 = vmatpush1.bf16.msra.mxu0 %v648
        %712 = vmatprep.subr.bf16.mxu0 0
        %713 = vmatpush2.bf16.msra.mxu0 0
        %714 = vmatprep.subr.bf16.mxu0 0
        %715 = vmatpush2.bf16.msra.mxu0 0
        %716 = vmatprep.subr.bf16.mxu0 0
        %717 = vmatpush2.bf16.msra.mxu0 0
        %718 = vmatprep.subr.bf16.mxu0 0
        %719 = vmatpush2.bf16.msra.mxu0 0
        %720 = vmatprep.subr.bf16.mxu0 0
        %721 = vmatpush2.bf16.msra.mxu0 0
        %722 = vmatprep.subr.bf16.mxu0 0
        %723 = vmatpush2.bf16.msra.mxu0 0
        %724 = vmatprep.subr.bf16.mxu0 0
        %725 = vmatpush2.bf16.msra.mxu0 0
        %726 = vmatprep.subr.bf16.mxu0 0
        %727 = vmatpush2.bf16.msra.mxu0 0
        %728 = vmatprep.mubr.bf16.mxu0 0
        %729 = vmatmul.mubr.bf16.gmra.mxu0 %v535
        %v730 = vpop.f32.mrf.mxu0
        %v731 = vadd.f32 0.0, %v730
        %v732 = vpop.f32.mrf.mxu0
        %v733 = vadd.f32 0.0, %v732
        %v734 = vpop.f32.mrf.mxu0
        %v735 = vadd.f32 0.0, %v734
        %v736 = vpop.f32.mrf.mxu0
        %v737 = vadd.f32 0.0, %v736
        %738 = vdwg.mxu0
        %739 = vmatprep.subr.bf16.mxu0 0
        %740 = vmatpush1.bf16.msra.mxu0 %v671
        %741 = vmatprep.subr.bf16.mxu0 0
        %742 = vmatpush1.bf16.msra.mxu0 %v668
        %743 = vmatprep.subr.bf16.mxu0 0
        %744 = vmatpush1.bf16.msra.mxu0 %v665
        %745 = vmatprep.subr.bf16.mxu0 0
        %746 = vmatpush1.bf16.msra.mxu0 %v662
        %747 = vmatprep.subr.bf16.mxu0 0
        %748 = vmatpush1.bf16.msra.mxu0 %v659
        %749 = vmatprep.subr.bf16.mxu0 0
        %750 = vmatpush1.bf16.msra.mxu0 %v656
        %751 = vmatprep.subr.bf16.mxu0 0
        %752 = vmatpush1.bf16.msra.mxu0 %v653
        %753 = vmatprep.subr.bf16.mxu0 0
        %754 = vmatpush1.bf16.msra.mxu0 %v650
        %755 = vmatprep.subr.bf16.mxu0 0
        %756 = vmatpush2.bf16.msra.mxu0 0
        %757 = vmatprep.subr.bf16.mxu0 0
        %758 = vmatpush2.bf16.msra.mxu0 0
        %759 = vmatprep.subr.bf16.mxu0 0
        %760 = vmatpush2.bf16.msra.mxu0 0
        %761 = vmatprep.subr.bf16.mxu0 0
        %762 = vmatpush2.bf16.msra.mxu0 0
        %763 = vmatprep.subr.bf16.mxu0 0
        %764 = vmatpush2.bf16.msra.mxu0 0
        %765 = vmatprep.subr.bf16.mxu0 0
        %766 = vmatpush2.bf16.msra.mxu0 0
        %767 = vmatprep.subr.bf16.mxu0 0
        %768 = vmatpush2.bf16.msra.mxu0 0
        %769 = vmatprep.subr.bf16.mxu0 0
        %770 = vmatpush2.bf16.msra.mxu0 0
        %771 = vmatprep.mubr.bf16.mxu0 0
        %772 = vmatmul.mubr.bf16.gmra.mxu0 %v535
        %v773 = vpop.f32.mrf.mxu0
        %v774 = vadd.f32 0.0, %v773
        %v775 = vpop.f32.mrf.mxu0
        %v776 = vpop.f32.mrf.mxu0
        %v777 = vadd.f32 0.0, %v776
        %v778 = vpop.f32.mrf.mxu0
        %779 = vdwg.mxu0
        %vm780 = vcmask 130048
        %781 = vst.msk [vmem:[#allocation2] sm:$0xff] %vm780, %v731
        %782 = vst.msk [vmem:[#allocation2 + $0x8] sm:$0xff] %vm780, %v735
        %783 = vst.msk [vmem:[#allocation3] sm:$0xff] %vm780, %v733
        %784 = vst.msk [vmem:[#allocation3 + $0x8] sm:$0xff] %vm780, %v737
        %785 = vst.msk [vmem:[#allocation4] sm:$0xff] %vm780, %v774
        %786 = vst.msk [vmem:[#allocation4 + $0x8] sm:$0xff] %vm780, %v777
        %789 = vrot.lane.b32.xlu0 %v731, 112
        %v790 = vpop.permute.xlu0 %789
        %791 = vrot.lane.b32.xlu0 %v735, 112
        %v792 = vpop.permute.xlu0 %791
        %s795 = scalar_lea.vmem [#allocation2], 16
        %796 = vst.msk [vmem:[%s795] sm:$0xff] %vm780, %v790
        %797 = vst.msk [vmem:[%s795 + $0x8] sm:$0xff] %vm780, %v792
        %800 = vrot.lane.b32.xlu0 %v733, 112
        %v801 = vpop.permute.xlu0 %800
        %802 = vrot.lane.b32.xlu0 %v737, 112
        %v803 = vpop.permute.xlu0 %802
        %s806 = scalar_lea.vmem [#allocation3], 16
        %807 = vst.msk [vmem:[%s806] sm:$0xff] %vm780, %v801
        %808 = vst.msk [vmem:[%s806 + $0x8] sm:$0xff] %vm780, %v803
        %811 = vrot.lane.b32.xlu0 %v774, 112
        %v812 = vpop.permute.xlu0 %811
        %813 = vrot.lane.b32.xlu0 %v777, 112
        %v814 = vpop.permute.xlu0 %813
        %s817 = scalar_lea.vmem [#allocation4], 16
        %818 = vst.msk [vmem:[%s817] sm:$0xff] %vm780, %v812
        %819 = vst.msk [vmem:[%s817 + $0x8] sm:$0xff] %vm780, %v814
        %820 = vrot.lane.b32.xlu0 %v731, 96
        %v821 = vpop.permute.xlu0 %820
        %822 = vrot.lane.b32.xlu0 %v735, 96
        %v823 = vpop.permute.xlu0 %822
        %s826 = scalar_lea.vmem [#allocation2], 32
        %827 = vst.msk [vmem:[%s826] sm:$0xff] %vm780, %v821
        %828 = vst.msk [vmem:[%s826 + $0x8] sm:$0xff] %vm780, %v823
        %829 = vrot.lane.b32.xlu0 %v733, 96
        %v830 = vpop.permute.xlu0 %829
        %831 = vrot.lane.b32.xlu0 %v737, 96
        %v832 = vpop.permute.xlu0 %831
        %s835 = scalar_lea.vmem [#allocation3], 32
        %836 = vst.msk [vmem:[%s835] sm:$0xff] %vm780, %v830
        %837 = vst.msk [vmem:[%s835 + $0x8] sm:$0xff] %vm780, %v832
        %838 = vrot.lane.b32.xlu0 %v774, 96
        %v839 = vpop.permute.xlu0 %838
        %840 = vrot.lane.b32.xlu0 %v777, 96
        %v841 = vpop.permute.xlu0 %840
        %s844 = scalar_lea.vmem [#allocation4], 32
        %845 = vst.msk [vmem:[%s844] sm:$0xff] %vm780, %v839
        %846 = vst.msk [vmem:[%s844 + $0x8] sm:$0xff] %vm780, %v841
        %847 = vrot.lane.b32.xlu0 %v731, 80
        %v848 = vpop.permute.xlu0 %847
        %849 = vrot.lane.b32.xlu0 %v735, 80
        %v850 = vpop.permute.xlu0 %849
        %s853 = scalar_lea.vmem [#allocation2], 48
        %854 = vst.msk [vmem:[%s853] sm:$0xff] %vm780, %v848
        %855 = vst.msk [vmem:[%s853 + $0x8] sm:$0xff] %vm780, %v850
        %856 = vrot.lane.b32.xlu0 %v733, 80
        %v857 = vpop.permute.xlu0 %856
        %858 = vrot.lane.b32.xlu0 %v737, 80
        %v859 = vpop.permute.xlu0 %858
        %s862 = scalar_lea.vmem [#allocation3], 48
        %863 = vst.msk [vmem:[%s862] sm:$0xff] %vm780, %v857
        %864 = vst.msk [vmem:[%s862 + $0x8] sm:$0xff] %vm780, %v859
        %865 = vrot.lane.b32.xlu0 %v774, 80
        %v866 = vpop.permute.xlu0 %865
        %867 = vrot.lane.b32.xlu0 %v777, 80
        %v868 = vpop.permute.xlu0 %867
        %s871 = scalar_lea.vmem [#allocation4], 48
        %872 = vst.msk [vmem:[%s871] sm:$0xff] %vm780, %v866
        %873 = vst.msk [vmem:[%s871 + $0x8] sm:$0xff] %vm780, %v868
        %874 = vrot.lane.b32.xlu0 %v731, 64
        %v875 = vpop.permute.xlu0 %874
        %876 = vrot.lane.b32.xlu0 %v735, 64
        %v877 = vpop.permute.xlu0 %876
        %s880 = scalar_lea.vmem [#allocation2], 64
        %881 = vst.msk [vmem:[%s880] sm:$0xff] %vm780, %v875
        %882 = vst.msk [vmem:[%s880 + $0x8] sm:$0xff] %vm780, %v877
        %883 = vrot.lane.b32.xlu0 %v733, 64
        %v884 = vpop.permute.xlu0 %883
        %885 = vrot.lane.b32.xlu0 %v737, 64
        %v886 = vpop.permute.xlu0 %885
        %s889 = scalar_lea.vmem [#allocation3], 64
        %890 = vst.msk [vmem:[%s889] sm:$0xff] %vm780, %v884
        %891 = vst.msk [vmem:[%s889 + $0x8] sm:$0xff] %vm780, %v886
        %892 = vrot.lane.b32.xlu0 %v774, 64
        %v893 = vpop.permute.xlu0 %892
        %894 = vrot.lane.b32.xlu0 %v777, 64
        %v895 = vpop.permute.xlu0 %894
        %s898 = scalar_lea.vmem [#allocation4], 64
        %899 = vst.msk [vmem:[%s898] sm:$0xff] %vm780, %v893
        %900 = vst.msk [vmem:[%s898 + $0x8] sm:$0xff] %vm780, %v895
        %901 = vrot.lane.b32.xlu0 %v731, 48
        %v902 = vpop.permute.xlu0 %901
        %903 = vrot.lane.b32.xlu0 %v735, 48
        %v904 = vpop.permute.xlu0 %903
        %s907 = scalar_lea.vmem [#allocation2], 80
        %908 = vst.msk [vmem:[%s907] sm:$0xff] %vm780, %v902
        %909 = vst.msk [vmem:[%s907 + $0x8] sm:$0xff] %vm780, %v904
        %910 = vrot.lane.b32.xlu0 %v733, 48
        %v911 = vpop.permute.xlu0 %910
        %912 = vrot.lane.b32.xlu0 %v737, 48
        %v913 = vpop.permute.xlu0 %912
        %s916 = scalar_lea.vmem [#allocation3], 80
        %917 = vst.msk [vmem:[%s916] sm:$0xff] %vm780, %v911
        %918 = vst.msk [vmem:[%s916 + $0x8] sm:$0xff] %vm780, %v913
        %919 = vrot.lane.b32.xlu0 %v774, 48
        %v920 = vpop.permute.xlu0 %919
        %921 = vrot.lane.b32.xlu0 %v777, 48
        %v922 = vpop.permute.xlu0 %921
        %s925 = scalar_lea.vmem [#allocation4], 80
        %926 = vst.msk [vmem:[%s925] sm:$0xff] %vm780, %v920
        %927 = vst.msk [vmem:[%s925 + $0x8] sm:$0xff] %vm780, %v922
        %928 = vrot.lane.b32.xlu0 %v731, 32
        %v929 = vpop.permute.xlu0 %928
        %930 = vrot.lane.b32.xlu0 %v735, 32
        %v931 = vpop.permute.xlu0 %930
        %s934 = scalar_lea.vmem [#allocation2], 96
        %935 = vst.msk [vmem:[%s934] sm:$0xff] %vm780, %v929
        %936 = vst.msk [vmem:[%s934 + $0x8] sm:$0xff] %vm780, %v931
        %937 = vrot.lane.b32.xlu0 %v733, 32
        %v938 = vpop.permute.xlu0 %937
        %939 = vrot.lane.b32.xlu0 %v737, 32
        %v940 = vpop.permute.xlu0 %939
        %s943 = scalar_lea.vmem [#allocation3], 96
        %944 = vst.msk [vmem:[%s943] sm:$0xff] %vm780, %v938
        %945 = vst.msk [vmem:[%s943 + $0x8] sm:$0xff] %vm780, %v940
        %946 = vrot.lane.b32.xlu0 %v774, 32
        %v947 = vpop.permute.xlu0 %946
        %948 = vrot.lane.b32.xlu0 %v777, 32
        %v949 = vpop.permute.xlu0 %948
        %s952 = scalar_lea.vmem [#allocation4], 96
        %953 = vst.msk [vmem:[%s952] sm:$0xff] %vm780, %v947
        %954 = vst.msk [vmem:[%s952 + $0x8] sm:$0xff] %vm780, %v949
        %955 = vrot.lane.b32.xlu0 %v731, 16
        %v956 = vpop.permute.xlu0 %955
        %957 = vrot.lane.b32.xlu0 %v735, 16
        %v958 = vpop.permute.xlu0 %957
        %s961 = scalar_lea.vmem [#allocation2], 112
        %962 = vst.msk [vmem:[%s961] sm:$0xff] %vm780, %v956
        %963 = vst.msk [vmem:[%s961 + $0x8] sm:$0xff] %vm780, %v958
        %964 = vrot.lane.b32.xlu0 %v733, 16
        %v965 = vpop.permute.xlu0 %964
        %966 = vrot.lane.b32.xlu0 %v737, 16
        %v967 = vpop.permute.xlu0 %966
        %s970 = scalar_lea.vmem [#allocation3], 112
        %971 = vst.msk [vmem:[%s970] sm:$0xff] %vm780, %v965
        %972 = vst.msk [vmem:[%s970 + $0x8] sm:$0xff] %vm780, %v967
        %973 = vrot.lane.b32.xlu0 %v774, 16
        %v974 = vpop.permute.xlu0 %973
        %975 = vrot.lane.b32.xlu0 %v777, 16
        %v976 = vpop.permute.xlu0 %975
        %s979 = scalar_lea.vmem [#allocation4], 112
        %980 = vst.msk [vmem:[%s979] sm:$0xff] %vm780, %v974
        %981 = vst.msk [vmem:[%s979 + $0x8] sm:$0xff] %vm780, %v976
        %v982 = vld [vmem:[#allocation2] sm:$0xff]
        %v983 = vld [vmem:[#allocation2 + $0x8] sm:$0xff]
        %v984 = vld [vmem:[#allocation2 + $0x10] sm:$0xff]
        %v985 = vld [vmem:[#allocation2 + $0x18] sm:$0xff]
        %v986 = vld [vmem:[#allocation2 + $0x20] sm:$0xff]
        %v987 = vld [vmem:[#allocation2 + $0x28] sm:$0xff]
        %v988 = vld [vmem:[#allocation2 + $0x30] sm:$0xff]
        %v989 = vld [vmem:[#allocation2 + $0x38] sm:$0xff]
        %v990 = vld [vmem:[#allocation2 + $0x40] sm:$0xff]
        %v991 = vld [vmem:[#allocation2 + $0x48] sm:$0xff]
        %v992 = vld [vmem:[#allocation2 + $0x50] sm:$0xff]
        %v993 = vld [vmem:[#allocation2 + $0x58] sm:$0xff]
        %v994 = vld [vmem:[#allocation2 + $0x60] sm:$0xff]
        %v995 = vld [vmem:[#allocation2 + $0x68] sm:$0xff]
        %v996 = vld [vmem:[#allocation2 + $0x70] sm:$0xff]
        %v997 = vld [vmem:[#allocation2 + $0x78] sm:$0xff]
        %v998 = vpack.c.bf16 %v983, %v982
        %v999 = vpack.c.bf16 %v985, %v984
        %v1000 = vpack.c.bf16 %v987, %v986
        %v1001 = vpack.c.bf16 %v989, %v988
        %v1002 = vpack.c.bf16 %v991, %v990
        %v1003 = vpack.c.bf16 %v993, %v992
        %v1004 = vpack.c.bf16 %v995, %v994
        %v1005 = vpack.c.bf16 %v997, %v996
        %v1006 = vld [vmem:[#allocation3] sm:$0xff]
        %v1007 = vld [vmem:[#allocation3 + $0x8] sm:$0xff]
        %v1008 = vld [vmem:[#allocation3 + $0x10] sm:$0xff]
        %v1009 = vld [vmem:[#allocation3 + $0x18] sm:$0xff]
        %v1010 = vld [vmem:[#allocation3 + $0x20] sm:$0xff]
        %v1011 = vld [vmem:[#allocation3 + $0x28] sm:$0xff]
        %v1012 = vld [vmem:[#allocation3 + $0x30] sm:$0xff]
        %v1013 = vld [vmem:[#allocation3 + $0x38] sm:$0xff]
        %v1014 = vld [vmem:[#allocation3 + $0x40] sm:$0xff]
        %v1015 = vld [vmem:[#allocation3 + $0x48] sm:$0xff]
        %v1016 = vld [vmem:[#allocation3 + $0x50] sm:$0xff]
        %v1017 = vld [vmem:[#allocation3 + $0x58] sm:$0xff]
        %v1018 = vld [vmem:[#allocation3 + $0x60] sm:$0xff]
        %v1019 = vld [vmem:[#allocation3 + $0x68] sm:$0xff]
        %v1020 = vld [vmem:[#allocation3 + $0x70] sm:$0xff]
        %v1021 = vld [vmem:[#allocation3 + $0x78] sm:$0xff]
        %v1022 = vpack.c.bf16 %v1007, %v1006
        %v1023 = vpack.c.bf16 %v1009, %v1008
        %v1024 = vpack.c.bf16 %v1011, %v1010
        %v1025 = vpack.c.bf16 %v1013, %v1012
        %v1026 = vpack.c.bf16 %v1015, %v1014
        %v1027 = vpack.c.bf16 %v1017, %v1016
        %v1028 = vpack.c.bf16 %v1019, %v1018
        %v1029 = vpack.c.bf16 %v1021, %v1020
        %v1030 = vld [vmem:[#allocation4] sm:$0xff]
        %v1031 = vld [vmem:[#allocation4 + $0x8] sm:$0xff]
        %v1032 = vld [vmem:[#allocation4 + $0x10] sm:$0xff]
        %v1033 = vld [vmem:[#allocation4 + $0x18] sm:$0xff]
        %v1034 = vld [vmem:[#allocation4 + $0x20] sm:$0xff]
        %v1035 = vld [vmem:[#allocation4 + $0x28] sm:$0xff]
        %v1036 = vld [vmem:[#allocation4 + $0x30] sm:$0xff]
        %v1037 = vld [vmem:[#allocation4 + $0x38] sm:$0xff]
        %v1038 = vld [vmem:[#allocation4 + $0x40] sm:$0xff]
        %v1039 = vld [vmem:[#allocation4 + $0x48] sm:$0xff]
        %v1040 = vld [vmem:[#allocation4 + $0x50] sm:$0xff]
        %v1041 = vld [vmem:[#allocation4 + $0x58] sm:$0xff]
        %v1042 = vld [vmem:[#allocation4 + $0x60] sm:$0xff]
        %v1043 = vld [vmem:[#allocation4 + $0x68] sm:$0xff]
        %v1044 = vld [vmem:[#allocation4 + $0x70] sm:$0xff]
        %v1045 = vld [vmem:[#allocation4 + $0x78] sm:$0xff]
        %v1046 = vpack.c.bf16 %v1031, %v1030
        %v1047 = vpack.c.bf16 %v1033, %v1032
        %v1048 = vpack.c.bf16 %v1035, %v1034
        %v1049 = vpack.c.bf16 %v1037, %v1036
        %v1050 = vpack.c.bf16 %v1039, %v1038
        %v1051 = vpack.c.bf16 %v1041, %v1040
        %v1052 = vpack.c.bf16 %v1043, %v1042
        %v1053 = vpack.c.bf16 %v1045, %v1044
        %v1054 = vld [vmem:[#allocation8] sm:$0xff]
        %v1055 = vld [vmem:[#allocation8 + $0x8] sm:$0xff]
        %v1057 = vsel %vm780, %v998, 0
        %v1060 = vsel %vm780, %v1022, 0
        %1062 = vmatprep.subr.bf16.mxu0 0
        %1063 = vmatpush1.bf16.xpose.msra.mxu0 0
        %1064 = vmatprep.subr.bf16.mxu0 0
        %1065 = vmatpush1.bf16.xpose.msra.mxu0 0
        %1066 = vmatprep.subr.bf16.mxu0 0
        %1067 = vmatpush1.bf16.xpose.msra.mxu0 0
        %1068 = vmatprep.subr.bf16.mxu0 0
        %1069 = vmatpush1.bf16.xpose.msra.mxu0 0
        %1070 = vmatprep.subr.bf16.mxu0 0
        %1071 = vmatpush1.bf16.xpose.msra.mxu0 0
        %1072 = vmatprep.subr.bf16.mxu0 0
        %1073 = vmatpush1.bf16.xpose.msra.mxu0 0
        %1074 = vmatprep.subr.bf16.mxu0 0
        %1075 = vmatpush1.bf16.xpose.msra.mxu0 0
        %1076 = vmatprep.subr.bf16.mxu0 0
        %1077 = vmatpush1.bf16.xpose.msra.mxu0 %v1060
        %1078 = vmatprep.subr.bf16.mxu0 0
        %1079 = vmatpush2.bf16.xpose.msra.mxu0 0
        %1080 = vmatprep.subr.bf16.mxu0 0
        %1081 = vmatpush2.bf16.xpose.msra.mxu0 0
        %1082 = vmatprep.subr.bf16.mxu0 0
        %1083 = vmatpush2.bf16.xpose.msra.mxu0 0
        %1084 = vmatprep.subr.bf16.mxu0 0
        %1085 = vmatpush2.bf16.xpose.msra.mxu0 0
        %1086 = vmatprep.subr.bf16.mxu0 0
        %1087 = vmatpush2.bf16.xpose.msra.mxu0 0
        %1088 = vmatprep.subr.bf16.mxu0 0
        %1089 = vmatpush2.bf16.xpose.msra.mxu0 0
        %1090 = vmatprep.subr.bf16.mxu0 0
        %1091 = vmatpush2.bf16.xpose.msra.mxu0 0
        %1092 = vmatprep.subr.bf16.mxu0 0
        %1093 = vmatpush2.bf16.xpose.msra.mxu0 0
        %1094 = vmatprep.mubr.bf16.mxu0 0
        %1095 = vmatmul.mubr.bf16.gmra.mxu0 %v1057
        %v1096 = vpop.f32.mrf.mxu0
        %v1097 = vadd.f32 %v1054, %v1096
        %v1098 = vpop.f32.mrf.mxu0
        %v1099 = vpop.f32.mrf.mxu0
        %v1100 = vadd.f32 %v1055, %v1099
        %v1101 = vpop.f32.mrf.mxu0
        %1102 = vdwg.mxu0
        %v1104 = vsel %vm780, %v999, 0
        %v1107 = vsel %vm780, %v1023, 0
        %1109 = vmatprep.subr.bf16.mxu0 0
        %1110 = vmatpush1.bf16.xpose.msra.mxu0 0
        %1111 = vmatprep.subr.bf16.mxu0 0
        %1112 = vmatpush1.bf16.xpose.msra.mxu0 0
        %1113 = vmatprep.subr.bf16.mxu0 0
        %1114 = vmatpush1.bf16.xpose.msra.mxu0 0
        %1115 = vmatprep.subr.bf16.mxu0 0
        %1116 = vmatpush1.bf16.xpose.msra.mxu0 0
        %1117 = vmatprep.subr.bf16.mxu0 0
        %1118 = vmatpush1.bf16.xpose.msra.mxu0 0
        %1119 = vmatprep.subr.bf16.mxu0 0
        %1120 = vmatpush1.bf16.xpose.msra.mxu0 0
        %1121 = vmatprep.subr.bf16.mxu0 0
        %1122 = vmatpush1.bf16.xpose.msra.mxu0 0
        %1123 = vmatprep.subr.bf16.mxu0 0
        %1124 = vmatpush1.bf16.xpose.msra.mxu0 %v1107
        %1125 = vmatprep.subr.bf16.mxu0 0
        %1126 = vmatpush2.bf16.xpose.msra.mxu0 0
        %1127 = vmatprep.subr.bf16.mxu0 0
        %1128 = vmatpush2.bf16.xpose.msra.mxu0 0
        %1129 = vmatprep.subr.bf16.mxu0 0
        %1130 = vmatpush2.bf16.xpose.msra.mxu0 0
        %1131 = vmatprep.subr.bf16.mxu0 0
        %1132 = vmatpush2.bf16.xpose.msra.mxu0 0
        %1133 = vmatprep.subr.bf16.mxu0 0
        %1134 = vmatpush2.bf16.xpose.msra.mxu0 0
        %1135 = vmatprep.subr.bf16.mxu0 0
        %1136 = vmatpush2.bf16.xpose.msra.mxu0 0
        %1137 = vmatprep.subr.bf16.mxu0 0
        %1138 = vmatpush2.bf16.xpose.msra.mxu0 0
        %1139 = vmatprep.subr.bf16.mxu0 0
        %1140 = vmatpush2.bf16.xpose.msra.mxu0 0
        %1141 = vmatprep.mubr.bf16.mxu0 0
        %1142 = vmatmul.mubr.bf16.gmra.mxu0 %v1104
        %v1143 = vpop.f32.mrf.mxu0
        %v1144 = vadd.f32 %v1054, %v1143
        %v1145 = vpop.f32.mrf.mxu0
        %v1146 = vpop.f32.mrf.mxu0
        %v1147 = vadd.f32 %v1055, %v1146
        %v1148 = vpop.f32.mrf.mxu0
        %1149 = vdwg.mxu0
        %v1151 = vsel %vm780, %v1000, 0
        %v1154 = vsel %vm780, %v1024, 0
        %1156 = vmatprep.subr.bf16.mxu0 0
        %1157 = vmatpush1.bf16.xpose.msra.mxu0 0
        %1158 = vmatprep.subr.bf16.mxu0 0
        %1159 = vmatpush1.bf16.xpose.msra.mxu0 0
        %1160 = vmatprep.subr.bf16.mxu0 0
        %1161 = vmatpush1.bf16.xpose.msra.mxu0 0
        %1162 = vmatprep.subr.bf16.mxu0 0
        %1163 = vmatpush1.bf16.xpose.msra.mxu0 0
        %1164 = vmatprep.subr.bf16.mxu0 0
        %1165 = vmatpush1.bf16.xpose.msra.mxu0 0
        %1166 = vmatprep.subr.bf16.mxu0 0
        %1167 = vmatpush1.bf16.xpose.msra.mxu0 0
        %1168 = vmatprep.subr.bf16.mxu0 0
        %1169 = vmatpush1.bf16.xpose.msra.mxu0 0
        %1170 = vmatprep.subr.bf16.mxu0 0
        %1171 = vmatpush1.bf16.xpose.msra.mxu0 %v1154
        %1172 = vmatprep.subr.bf16.mxu0 0
        %1173 = vmatpush2.bf16.xpose.msra.mxu0 0
        %1174 = vmatprep.subr.bf16.mxu0 0
        %1175 = vmatpush2.bf16.xpose.msra.mxu0 0
        %1176 = vmatprep.subr.bf16.mxu0 0
        %1177 = vmatpush2.bf16.xpose.msra.mxu0 0
        %1178 = vmatprep.subr.bf16.mxu0 0
        %1179 = vmatpush2.bf16.xpose.msra.mxu0 0
        %1180 = vmatprep.subr.bf16.mxu0 0
        %1181 = vmatpush2.bf16.xpose.msra.mxu0 0
        %1182 = vmatprep.subr.bf16.mxu0 0
        %1183 = vmatpush2.bf16.xpose.msra.mxu0 0
        %1184 = vmatprep.subr.bf16.mxu0 0
        %1185 = vmatpush2.bf16.xpose.msra.mxu0 0
        %1186 = vmatprep.subr.bf16.mxu0 0
        %1187 = vmatpush2.bf16.xpose.msra.mxu0 0
        %1188 = vmatprep.mubr.bf16.mxu0 0
        %1189 = vmatmul.mubr.bf16.gmra.mxu0 %v1151
        %v1190 = vpop.f32.mrf.mxu0
        %v1191 = vadd.f32 %v1054, %v1190
        %v1192 = vpop.f32.mrf.mxu0
        %v1193 = vpop.f32.mrf.mxu0
        %v1194 = vadd.f32 %v1055, %v1193
        %v1195 = vpop.f32.mrf.mxu0
        %1196 = vdwg.mxu0
        %v1198 = vsel %vm780, %v1001, 0
        %v1201 = vsel %vm780, %v1025, 0
        %1203 = vmatprep.subr.bf16.mxu0 0
        %1204 = vmatpush1.bf16.xpose.msra.mxu0 0
        %1205 = vmatprep.subr.bf16.mxu0 0
        %1206 = vmatpush1.bf16.xpose.msra.mxu0 0
        %1207 = vmatprep.subr.bf16.mxu0 0
        %1208 = vmatpush1.bf16.xpose.msra.mxu0 0
        %1209 = vmatprep.subr.bf16.mxu0 0
        %1210 = vmatpush1.bf16.xpose.msra.mxu0 0
        %1211 = vmatprep.subr.bf16.mxu0 0
        %1212 = vmatpush1.bf16.xpose.msra.mxu0 0
        %1213 = vmatprep.subr.bf16.mxu0 0
        %1214 = vmatpush1.bf16.xpose.msra.mxu0 0
        %1215 = vmatprep.subr.bf16.mxu0 0
        %1216 = vmatpush1.bf16.xpose.msra.mxu0 0
        %1217 = vmatprep.subr.bf16.mxu0 0
        %1218 = vmatpush1.bf16.xpose.msra.mxu0 %v1201
        %1219 = vmatprep.subr.bf16.mxu0 0
        %1220 = vmatpush2.bf16.xpose.msra.mxu0 0
        %1221 = vmatprep.subr.bf16.mxu0 0
        %1222 = vmatpush2.bf16.xpose.msra.mxu0 0
        %1223 = vmatprep.subr.bf16.mxu0 0
        %1224 = vmatpush2.bf16.xpose.msra.mxu0 0
        %1225 = vmatprep.subr.bf16.mxu0 0
        %1226 = vmatpush2.bf16.xpose.msra.mxu0 0
        %1227 = vmatprep.subr.bf16.mxu0 0
        %1228 = vmatpush2.bf16.xpose.msra.mxu0 0
        %1229 = vmatprep.subr.bf16.mxu0 0
        %1230 = vmatpush2.bf16.xpose.msra.mxu0 0
        %1231 = vmatprep.subr.bf16.mxu0 0
        %1232 = vmatpush2.bf16.xpose.msra.mxu0 0
        %1233 = vmatprep.subr.bf16.mxu0 0
        %1234 = vmatpush2.bf16.xpose.msra.mxu0 0
        %1235 = vmatprep.mubr.bf16.mxu0 0
        %1236 = vmatmul.mubr.bf16.gmra.mxu0 %v1198
        %v1237 = vpop.f32.mrf.mxu0
        %v1238 = vadd.f32 %v1054, %v1237
        %v1239 = vpop.f32.mrf.mxu0
        %v1240 = vpop.f32.mrf.mxu0
        %v1241 = vadd.f32 %v1055, %v1240
        %v1242 = vpop.f32.mrf.mxu0
        %1243 = vdwg.mxu0
        %v1245 = vsel %vm780, %v1002, 0
        %v1248 = vsel %vm780, %v1026, 0
        %1250 = vmatprep.subr.bf16.mxu0 0
        %1251 = vmatpush1.bf16.xpose.msra.mxu0 0
        %1252 = vmatprep.subr.bf16.mxu0 0
        %1253 = vmatpush1.bf16.xpose.msra.mxu0 0
        %1254 = vmatprep.subr.bf16.mxu0 0
        %1255 = vmatpush1.bf16.xpose.msra.mxu0 0
        %1256 = vmatprep.subr.bf16.mxu0 0
        %1257 = vmatpush1.bf16.xpose.msra.mxu0 0
        %1258 = vmatprep.subr.bf16.mxu0 0
        %1259 = vmatpush1.bf16.xpose.msra.mxu0 0
        %1260 = vmatprep.subr.bf16.mxu0 0
        %1261 = vmatpush1.bf16.xpose.msra.mxu0 0
        %1262 = vmatprep.subr.bf16.mxu0 0
        %1263 = vmatpush1.bf16.xpose.msra.mxu0 0
        %1264 = vmatprep.subr.bf16.mxu0 0
        %1265 = vmatpush1.bf16.xpose.msra.mxu0 %v1248
        %1266 = vmatprep.subr.bf16.mxu0 0
        %1267 = vmatpush2.bf16.xpose.msra.mxu0 0
        %1268 = vmatprep.subr.bf16.mxu0 0
        %1269 = vmatpush2.bf16.xpose.msra.mxu0 0
        %1270 = vmatprep.subr.bf16.mxu0 0
        %1271 = vmatpush2.bf16.xpose.msra.mxu0 0
        %1272 = vmatprep.subr.bf16.mxu0 0
        %1273 = vmatpush2.bf16.xpose.msra.mxu0 0
        %1274 = vmatprep.subr.bf16.mxu0 0
        %1275 = vmatpush2.bf16.xpose.msra.mxu0 0
        %1276 = vmatprep.subr.bf16.mxu0 0
        %1277 = vmatpush2.bf16.xpose.msra.mxu0 0
        %1278 = vmatprep.subr.bf16.mxu0 0
        %1279 = vmatpush2.bf16.xpose.msra.mxu0 0
        %1280 = vmatprep.subr.bf16.mxu0 0
        %1281 = vmatpush2.bf16.xpose.msra.mxu0 0
        %1282 = vmatprep.mubr.bf16.mxu0 0
        %1283 = vmatmul.mubr.bf16.gmra.mxu0 %v1245
        %v1284 = vpop.f32.mrf.mxu0
        %v1285 = vadd.f32 %v1054, %v1284
        %v1286 = vpop.f32.mrf.mxu0
        %v1287 = vpop.f32.mrf.mxu0
        %v1288 = vadd.f32 %v1055, %v1287
        %v1289 = vpop.f32.mrf.mxu0
        %1290 = vdwg.mxu0
        %v1292 = vsel %vm780, %v1003, 0
        %v1295 = vsel %vm780, %v1027, 0
        %1297 = vmatprep.subr.bf16.mxu0 0
        %1298 = vmatpush1.bf16.xpose.msra.mxu0 0
        %1299 = vmatprep.subr.bf16.mxu0 0
        %1300 = vmatpush1.bf16.xpose.msra.mxu0 0
        %1301 = vmatprep.subr.bf16.mxu0 0
        %1302 = vmatpush1.bf16.xpose.msra.mxu0 0
        %1303 = vmatprep.subr.bf16.mxu0 0
        %1304 = vmatpush1.bf16.xpose.msra.mxu0 0
        %1305 = vmatprep.subr.bf16.mxu0 0
        %1306 = vmatpush1.bf16.xpose.msra.mxu0 0
        %1307 = vmatprep.subr.bf16.mxu0 0
        %1308 = vmatpush1.bf16.xpose.msra.mxu0 0
        %1309 = vmatprep.subr.bf16.mxu0 0
        %1310 = vmatpush1.bf16.xpose.msra.mxu0 0
        %1311 = vmatprep.subr.bf16.mxu0 0
        %1312 = vmatpush1.bf16.xpose.msra.mxu0 %v1295
        %1313 = vmatprep.subr.bf16.mxu0 0
        %1314 = vmatpush2.bf16.xpose.msra.mxu0 0
        %1315 = vmatprep.subr.bf16.mxu0 0
        %1316 = vmatpush2.bf16.xpose.msra.mxu0 0
        %1317 = vmatprep.subr.bf16.mxu0 0
        %1318 = vmatpush2.bf16.xpose.msra.mxu0 0
        %1319 = vmatprep.subr.bf16.mxu0 0
        %1320 = vmatpush2.bf16.xpose.msra.mxu0 0
        %1321 = vmatprep.subr.bf16.mxu0 0
        %1322 = vmatpush2.bf16.xpose.msra.mxu0 0
        %1323 = vmatprep.subr.bf16.mxu0 0
        %1324 = vmatpush2.bf16.xpose.msra.mxu0 0
        %1325 = vmatprep.subr.bf16.mxu0 0
        %1326 = vmatpush2.bf16.xpose.msra.mxu0 0
        %1327 = vmatprep.subr.bf16.mxu0 0
        %1328 = vmatpush2.bf16.xpose.msra.mxu0 0
        %1329 = vmatprep.mubr.bf16.mxu0 0
        %1330 = vmatmul.mubr.bf16.gmra.mxu0 %v1292
        %v1331 = vpop.f32.mrf.mxu0
        %v1332 = vadd.f32 %v1054, %v1331
        %v1333 = vpop.f32.mrf.mxu0
        %v1334 = vpop.f32.mrf.mxu0
        %v1335 = vadd.f32 %v1055, %v1334
        %v1336 = vpop.f32.mrf.mxu0
        %1337 = vdwg.mxu0
        %v1339 = vsel %vm780, %v1004, 0
        %v1342 = vsel %vm780, %v1028, 0
        %1344 = vmatprep.subr.bf16.mxu0 0
        %1345 = vmatpush1.bf16.xpose.msra.mxu0 0
        %1346 = vmatprep.subr.bf16.mxu0 0
        %1347 = vmatpush1.bf16.xpose.msra.mxu0 0
        %1348 = vmatprep.subr.bf16.mxu0 0
        %1349 = vmatpush1.bf16.xpose.msra.mxu0 0
        %1350 = vmatprep.subr.bf16.mxu0 0
        %1351 = vmatpush1.bf16.xpose.msra.mxu0 0
        %1352 = vmatprep.subr.bf16.mxu0 0
        %1353 = vmatpush1.bf16.xpose.msra.mxu0 0
        %1354 = vmatprep.subr.bf16.mxu0 0
        %1355 = vmatpush1.bf16.xpose.msra.mxu0 0
        %1356 = vmatprep.subr.bf16.mxu0 0
        %1357 = vmatpush1.bf16.xpose.msra.mxu0 0
        %1358 = vmatprep.subr.bf16.mxu0 0
        %1359 = vmatpush1.bf16.xpose.msra.mxu0 %v1342
        %1360 = vmatprep.subr.bf16.mxu0 0
        %1361 = vmatpush2.bf16.xpose.msra.mxu0 0
        %1362 = vmatprep.subr.bf16.mxu0 0
        %1363 = vmatpush2.bf16.xpose.msra.mxu0 0
        %1364 = vmatprep.subr.bf16.mxu0 0
        %1365 = vmatpush2.bf16.xpose.msra.mxu0 0
        %1366 = vmatprep.subr.bf16.mxu0 0
        %1367 = vmatpush2.bf16.xpose.msra.mxu0 0
        %1368 = vmatprep.subr.bf16.mxu0 0
        %1369 = vmatpush2.bf16.xpose.msra.mxu0 0
        %1370 = vmatprep.subr.bf16.mxu0 0
        %1371 = vmatpush2.bf16.xpose.msra.mxu0 0
        %1372 = vmatprep.subr.bf16.mxu0 0
        %1373 = vmatpush2.bf16.xpose.msra.mxu0 0
        %1374 = vmatprep.subr.bf16.mxu0 0
        %1375 = vmatpush2.bf16.xpose.msra.mxu0 0
        %1376 = vmatprep.mubr.bf16.mxu0 0
        %1377 = vmatmul.mubr.bf16.gmra.mxu0 %v1339
        %v1378 = vpop.f32.mrf.mxu0
        %v1379 = vadd.f32 %v1054, %v1378
        %v1380 = vpop.f32.mrf.mxu0
        %v1381 = vpop.f32.mrf.mxu0
        %v1382 = vadd.f32 %v1055, %v1381
        %v1383 = vpop.f32.mrf.mxu0
        %1384 = vdwg.mxu0
        %v1386 = vsel %vm780, %v1005, 0
        %v1389 = vsel %vm780, %v1029, 0
        %1391 = vmatprep.subr.bf16.mxu0 0
        %1392 = vmatpush1.bf16.xpose.msra.mxu0 0
        %1393 = vmatprep.subr.bf16.mxu0 0
        %1394 = vmatpush1.bf16.xpose.msra.mxu0 0
        %1395 = vmatprep.subr.bf16.mxu0 0
        %1396 = vmatpush1.bf16.xpose.msra.mxu0 0
        %1397 = vmatprep.subr.bf16.mxu0 0
        %1398 = vmatpush1.bf16.xpose.msra.mxu0 0
        %1399 = vmatprep.subr.bf16.mxu0 0
        %1400 = vmatpush1.bf16.xpose.msra.mxu0 0
        %1401 = vmatprep.subr.bf16.mxu0 0
        %1402 = vmatpush1.bf16.xpose.msra.mxu0 0
        %1403 = vmatprep.subr.bf16.mxu0 0
        %1404 = vmatpush1.bf16.xpose.msra.mxu0 0
        %1405 = vmatprep.subr.bf16.mxu0 0
        %1406 = vmatpush1.bf16.xpose.msra.mxu0 %v1389
        %1407 = vmatprep.subr.bf16.mxu0 0
        %1408 = vmatpush2.bf16.xpose.msra.mxu0 0
        %1409 = vmatprep.subr.bf16.mxu0 0
        %1410 = vmatpush2.bf16.xpose.msra.mxu0 0
        %1411 = vmatprep.subr.bf16.mxu0 0
        %1412 = vmatpush2.bf16.xpose.msra.mxu0 0
        %1413 = vmatprep.subr.bf16.mxu0 0
        %1414 = vmatpush2.bf16.xpose.msra.mxu0 0
        %1415 = vmatprep.subr.bf16.mxu0 0
        %1416 = vmatpush2.bf16.xpose.msra.mxu0 0
        %1417 = vmatprep.subr.bf16.mxu0 0
        %1418 = vmatpush2.bf16.xpose.msra.mxu0 0
        %1419 = vmatprep.subr.bf16.mxu0 0
        %1420 = vmatpush2.bf16.xpose.msra.mxu0 0
        %1421 = vmatprep.subr.bf16.mxu0 0
        %1422 = vmatpush2.bf16.xpose.msra.mxu0 0
        %1423 = vmatprep.mubr.bf16.mxu0 0
        %1424 = vmatmul.mubr.bf16.gmra.mxu0 %v1386
        %v1425 = vpop.f32.mrf.mxu0
        %v1426 = vadd.f32 %v1054, %v1425
        %v1427 = vpop.f32.mrf.mxu0
        %v1428 = vpop.f32.mrf.mxu0
        %v1429 = vadd.f32 %v1055, %v1428
        %v1430 = vpop.f32.mrf.mxu0
        %1431 = vdwg.mxu0
        %v1432 = vsel %vm780, %v1097, -inf
        %1433 = vmax.xlane.f32.xlu0 %v1432
        %v1434 = vpop.xlane.xlu0 %1433
        %v1435 = vsel %vm780, %v1100, -inf
        %1436 = vmax.xlane.f32.xlu0 %v1435
        %v1437 = vpop.xlane.xlu0 %1436
        %v1438 = vsel %vm780, %v1144, -inf
        %1439 = vmax.xlane.f32.xlu0 %v1438
        %v1440 = vpop.xlane.xlu0 %1439
        %v1441 = vsel %vm780, %v1147, -inf
        %1442 = vmax.xlane.f32.xlu0 %v1441
        %v1443 = vpop.xlane.xlu0 %1442
        %v1444 = vsel %vm780, %v1191, -inf
        %1445 = vmax.xlane.f32.xlu0 %v1444
        %v1446 = vpop.xlane.xlu0 %1445
        %v1447 = vsel %vm780, %v1194, -inf
        %1448 = vmax.xlane.f32.xlu0 %v1447
        %v1449 = vpop.xlane.xlu0 %1448
        %v1450 = vsel %vm780, %v1238, -inf
        %1451 = vmax.xlane.f32.xlu0 %v1450
        %v1452 = vpop.xlane.xlu0 %1451
        %v1453 = vsel %vm780, %v1241, -inf
        %1454 = vmax.xlane.f32.xlu0 %v1453
        %v1455 = vpop.xlane.xlu0 %1454
        %v1456 = vsel %vm780, %v1285, -inf
        %1457 = vmax.xlane.f32.xlu0 %v1456
        %v1458 = vpop.xlane.xlu0 %1457
        %v1459 = vsel %vm780, %v1288, -inf
        %1460 = vmax.xlane.f32.xlu0 %v1459
        %v1461 = vpop.xlane.xlu0 %1460
        %v1462 = vsel %vm780, %v1332, -inf
        %1463 = vmax.xlane.f32.xlu0 %v1462
        %v1464 = vpop.xlane.xlu0 %1463
        %v1465 = vsel %vm780, %v1335, -inf
        %1466 = vmax.xlane.f32.xlu0 %v1465
        %v1467 = vpop.xlane.xlu0 %1466
        %v1468 = vsel %vm780, %v1379, -inf
        %1469 = vmax.xlane.f32.xlu0 %v1468
        %v1470 = vpop.xlane.xlu0 %1469
        %v1471 = vsel %vm780, %v1382, -inf
        %1472 = vmax.xlane.f32.xlu0 %v1471
        %v1473 = vpop.xlane.xlu0 %1472
        %v1474 = vsel %vm780, %v1426, -inf
        %1475 = vmax.xlane.f32.xlu0 %v1474
        %v1476 = vpop.xlane.xlu0 %1475
        %v1477 = vsel %vm780, %v1429, -inf
        %1478 = vmax.xlane.f32.xlu0 %v1477
        %v1479 = vpop.xlane.xlu0 %1478
        %v1480 = vsub.f32 %v1097, %v1434
        %v1481 = vsub.f32 %v1100, %v1437
        %v1482 = vsub.f32 %v1144, %v1440
        %v1483 = vsub.f32 %v1147, %v1443
        %v1484 = vsub.f32 %v1191, %v1446
        %v1485 = vsub.f32 %v1194, %v1449
        %v1486 = vsub.f32 %v1238, %v1452
        %v1487 = vsub.f32 %v1241, %v1455
        %v1488 = vsub.f32 %v1285, %v1458
        %v1489 = vsub.f32 %v1288, %v1461
        %v1490 = vsub.f32 %v1332, %v1464
        %v1491 = vsub.f32 %v1335, %v1467
        %v1492 = vsub.f32 %v1379, %v1470
        %v1493 = vsub.f32 %v1382, %v1473
        %v1494 = vsub.f32 %v1426, %v1476
        %v1495 = vsub.f32 %v1429, %v1479
        %v1496 = vmul.f32 %v1480, 1.442695
        %v1497 = vpow.pop %v1496
        %v1498 = vmul.f32 %v1481, 1.442695
        %v1499 = vpow.pop %v1498
        %v1500 = vmul.f32 %v1482, 1.442695
        %v1501 = vpow.pop %v1500
        %v1502 = vmul.f32 %v1483, 1.442695
        %v1503 = vpow.pop %v1502
        %v1504 = vmul.f32 %v1484, 1.442695
        %v1505 = vpow.pop %v1504
        %v1506 = vmul.f32 %v1485, 1.442695
        %v1507 = vpow.pop %v1506
        %v1508 = vmul.f32 %v1486, 1.442695
        %v1509 = vpow.pop %v1508
        %v1510 = vmul.f32 %v1487, 1.442695
        %v1511 = vpow.pop %v1510
        %v1512 = vmul.f32 %v1488, 1.442695
        %v1513 = vpow.pop %v1512
        %v1514 = vmul.f32 %v1489, 1.442695
        %v1515 = vpow.pop %v1514
        %v1516 = vmul.f32 %v1490, 1.442695
        %v1517 = vpow.pop %v1516
        %v1518 = vmul.f32 %v1491, 1.442695
        %v1519 = vpow.pop %v1518
        %v1520 = vmul.f32 %v1492, 1.442695
        %v1521 = vpow.pop %v1520
        %v1522 = vmul.f32 %v1493, 1.442695
        %v1523 = vpow.pop %v1522
        %v1524 = vmul.f32 %v1494, 1.442695
        %v1525 = vpow.pop %v1524
        %v1526 = vmul.f32 %v1495, 1.442695
        %v1527 = vpow.pop %v1526
        %v1528 = vsel %vm780, %v1497, 0.0
        %1529 = vadd.xlane.f32.xlu0 %v1528
        %v1530 = vpop.xlane.xlu0 %1529
        %v1531 = vsel %vm780, %v1499, 0.0
        %1532 = vadd.xlane.f32.xlu0 %v1531
        %v1533 = vpop.xlane.xlu0 %1532
        %v1534 = vsel %vm780, %v1501, 0.0
        %1535 = vadd.xlane.f32.xlu0 %v1534
        %v1536 = vpop.xlane.xlu0 %1535
        %v1537 = vsel %vm780, %v1503, 0.0
        %1538 = vadd.xlane.f32.xlu0 %v1537
        %v1539 = vpop.xlane.xlu0 %1538
        %v1540 = vsel %vm780, %v1505, 0.0
        %1541 = vadd.xlane.f32.xlu0 %v1540
        %v1542 = vpop.xlane.xlu0 %1541
        %v1543 = vsel %vm780, %v1507, 0.0
        %1544 = vadd.xlane.f32.xlu0 %v1543
        %v1545 = vpop.xlane.xlu0 %1544
        %v1546 = vsel %vm780, %v1509, 0.0
        %1547 = vadd.xlane.f32.xlu0 %v1546
        %v1548 = vpop.xlane.xlu0 %1547
        %v1549 = vsel %vm780, %v1511, 0.0
        %1550 = vadd.xlane.f32.xlu0 %v1549
        %v1551 = vpop.xlane.xlu0 %1550
        %v1552 = vsel %vm780, %v1513, 0.0
        %1553 = vadd.xlane.f32.xlu0 %v1552
        %v1554 = vpop.xlane.xlu0 %1553
        %v1555 = vsel %vm780, %v1515, 0.0
        %1556 = vadd.xlane.f32.xlu0 %v1555
        %v1557 = vpop.xlane.xlu0 %1556
        %v1558 = vsel %vm780, %v1517, 0.0
        %1559 = vadd.xlane.f32.xlu0 %v1558
        %v1560 = vpop.xlane.xlu0 %1559
        %v1561 = vsel %vm780, %v1519, 0.0
        %1562 = vadd.xlane.f32.xlu0 %v1561
        %v1563 = vpop.xlane.xlu0 %1562
        %v1564 = vsel %vm780, %v1521, 0.0
        %1565 = vadd.xlane.f32.xlu0 %v1564
        %v1566 = vpop.xlane.xlu0 %1565
        %v1567 = vsel %vm780, %v1523, 0.0
        %1568 = vadd.xlane.f32.xlu0 %v1567
        %v1569 = vpop.xlane.xlu0 %1568
        %v1570 = vsel %vm780, %v1525, 0.0
        %1571 = vadd.xlane.f32.xlu0 %v1570
        %v1572 = vpop.xlane.xlu0 %1571
        %v1573 = vsel %vm780, %v1527, 0.0
        %1574 = vadd.xlane.f32.xlu0 %v1573
        %v1575 = vpop.xlane.xlu0 %1574
        %v1576 = vrcp.pop %v1530
        %v1577 = vrcp.pop %v1533
        %v1578 = vrcp.pop %v1536
        %v1579 = vrcp.pop %v1539
        %v1580 = vrcp.pop %v1542
        %v1581 = vrcp.pop %v1545
        %v1582 = vrcp.pop %v1548
        %v1583 = vrcp.pop %v1551
        %v1584 = vrcp.pop %v1554
        %v1585 = vrcp.pop %v1557
        %v1586 = vrcp.pop %v1560
        %v1587 = vrcp.pop %v1563
        %v1588 = vrcp.pop %v1566
        %v1589 = vrcp.pop %v1569
        %v1590 = vrcp.pop %v1572
        %v1591 = vrcp.pop %v1575
        %v1592 = vmul.f32 %v1497, %v1576
        %v1593 = vmul.f32 %v1499, %v1577
        %v1594 = vmul.f32 %v1501, %v1578
        %v1595 = vmul.f32 %v1503, %v1579
        %v1596 = vmul.f32 %v1505, %v1580
        %v1597 = vmul.f32 %v1507, %v1581
        %v1598 = vmul.f32 %v1509, %v1582
        %v1599 = vmul.f32 %v1511, %v1583
        %v1600 = vmul.f32 %v1513, %v1584
        %v1601 = vmul.f32 %v1515, %v1585
        %v1602 = vmul.f32 %v1517, %v1586
        %v1603 = vmul.f32 %v1519, %v1587
        %v1604 = vmul.f32 %v1521, %v1588
        %v1605 = vmul.f32 %v1523, %v1589
        %v1606 = vmul.f32 %v1525, %v1590
        %v1607 = vmul.f32 %v1527, %v1591
        %v1608 = vpack.c.bf16 %v1593, %v1592
        %v1609 = vpack.c.bf16 %v1595, %v1594
        %v1610 = vpack.c.bf16 %v1597, %v1596
        %v1611 = vpack.c.bf16 %v1599, %v1598
        %v1612 = vpack.c.bf16 %v1601, %v1600
        %v1613 = vpack.c.bf16 %v1603, %v1602
        %v1614 = vpack.c.bf16 %v1605, %v1604
        %v1615 = vpack.c.bf16 %v1607, %v1606
        %v1617 = vsel %vm780, %v1608, 0
        %1619 = vmatprep.subr.bf16.mxu0 0
        %1620 = vmatpush1.bf16.msra.mxu0 0
        %1621 = vmatprep.subr.bf16.mxu0 0
        %1622 = vmatpush1.bf16.msra.mxu0 0
        %1623 = vmatprep.subr.bf16.mxu0 0
        %1624 = vmatpush1.bf16.msra.mxu0 0
        %1625 = vmatprep.subr.bf16.mxu0 0
        %1626 = vmatpush1.bf16.msra.mxu0 0
        %1627 = vmatprep.subr.bf16.mxu0 0
        %1628 = vmatpush1.bf16.msra.mxu0 0
        %1629 = vmatprep.subr.bf16.mxu0 0
        %1630 = vmatpush1.bf16.msra.mxu0 0
        %1631 = vmatprep.subr.bf16.mxu0 0
        %1632 = vmatpush1.bf16.msra.mxu0 0
        %1633 = vmatprep.subr.bf16.mxu0 0
        %1634 = vmatpush1.bf16.msra.mxu0 %v1046
        %1635 = vmatprep.subr.bf16.mxu0 0
        %1636 = vmatpush2.bf16.msra.mxu0 0
        %1637 = vmatprep.subr.bf16.mxu0 0
        %1638 = vmatpush2.bf16.msra.mxu0 0
        %1639 = vmatprep.subr.bf16.mxu0 0
        %1640 = vmatpush2.bf16.msra.mxu0 0
        %1641 = vmatprep.subr.bf16.mxu0 0
        %1642 = vmatpush2.bf16.msra.mxu0 0
        %1643 = vmatprep.subr.bf16.mxu0 0
        %1644 = vmatpush2.bf16.msra.mxu0 0
        %1645 = vmatprep.subr.bf16.mxu0 0
        %1646 = vmatpush2.bf16.msra.mxu0 0
        %1647 = vmatprep.subr.bf16.mxu0 0
        %1648 = vmatpush2.bf16.msra.mxu0 0
        %1649 = vmatprep.subr.bf16.mxu0 0
        %1650 = vmatpush2.bf16.msra.mxu0 0
        %1651 = vmatprep.mubr.bf16.mxu0 0
        %1652 = vmatmul.mubr.bf16.gmra.mxu0 %v1617
        %v1653 = vpop.f32.mrf.mxu0
        %v1654 = vadd.f32 0.0, %v1653
        %v1655 = vpop.f32.mrf.mxu0
        %v1656 = vpop.f32.mrf.mxu0
        %v1657 = vadd.f32 0.0, %v1656
        %v1658 = vpop.f32.mrf.mxu0
        %1659 = vdwg.mxu0
        %v1661 = vsel %vm780, %v1609, 0
        %1663 = vmatprep.subr.bf16.mxu0 0
        %1664 = vmatpush1.bf16.msra.mxu0 0
        %1665 = vmatprep.subr.bf16.mxu0 0
        %1666 = vmatpush1.bf16.msra.mxu0 0
        %1667 = vmatprep.subr.bf16.mxu0 0
        %1668 = vmatpush1.bf16.msra.mxu0 0
        %1669 = vmatprep.subr.bf16.mxu0 0
        %1670 = vmatpush1.bf16.msra.mxu0 0
        %1671 = vmatprep.subr.bf16.mxu0 0
        %1672 = vmatpush1.bf16.msra.mxu0 0
        %1673 = vmatprep.subr.bf16.mxu0 0
        %1674 = vmatpush1.bf16.msra.mxu0 0
        %1675 = vmatprep.subr.bf16.mxu0 0
        %1676 = vmatpush1.bf16.msra.mxu0 0
        %1677 = vmatprep.subr.bf16.mxu0 0
        %1678 = vmatpush1.bf16.msra.mxu0 %v1047
        %1679 = vmatprep.subr.bf16.mxu0 0
        %1680 = vmatpush2.bf16.msra.mxu0 0
        %1681 = vmatprep.subr.bf16.mxu0 0
        %1682 = vmatpush2.bf16.msra.mxu0 0
        %1683 = vmatprep.subr.bf16.mxu0 0
        %1684 = vmatpush2.bf16.msra.mxu0 0
        %1685 = vmatprep.subr.bf16.mxu0 0
        %1686 = vmatpush2.bf16.msra.mxu0 0
        %1687 = vmatprep.subr.bf16.mxu0 0
        %1688 = vmatpush2.bf16.msra.mxu0 0
        %1689 = vmatprep.subr.bf16.mxu0 0
        %1690 = vmatpush2.bf16.msra.mxu0 0
        %1691 = vmatprep.subr.bf16.mxu0 0
        %1692 = vmatpush2.bf16.msra.mxu0 0
        %1693 = vmatprep.subr.bf16.mxu0 0
        %1694 = vmatpush2.bf16.msra.mxu0 0
        %1695 = vmatprep.mubr.bf16.mxu0 0
        %1696 = vmatmul.mubr.bf16.gmra.mxu0 %v1661
        %v1697 = vpop.f32.mrf.mxu0
        %v1698 = vadd.f32 0.0, %v1697
        %v1699 = vpop.f32.mrf.mxu0
        %v1700 = vpop.f32.mrf.mxu0
        %v1701 = vadd.f32 0.0, %v1700
        %v1702 = vpop.f32.mrf.mxu0
        %1703 = vdwg.mxu0
        %v1705 = vsel %vm780, %v1610, 0
        %1707 = vmatprep.subr.bf16.mxu0 0
        %1708 = vmatpush1.bf16.msra.mxu0 0
        %1709 = vmatprep.subr.bf16.mxu0 0
        %1710 = vmatpush1.bf16.msra.mxu0 0
        %1711 = vmatprep.subr.bf16.mxu0 0
        %1712 = vmatpush1.bf16.msra.mxu0 0
        %1713 = vmatprep.subr.bf16.mxu0 0
        %1714 = vmatpush1.bf16.msra.mxu0 0
        %1715 = vmatprep.subr.bf16.mxu0 0
        %1716 = vmatpush1.bf16.msra.mxu0 0
        %1717 = vmatprep.subr.bf16.mxu0 0
        %1718 = vmatpush1.bf16.msra.mxu0 0
        %1719 = vmatprep.subr.bf16.mxu0 0
        %1720 = vmatpush1.bf16.msra.mxu0 0
        %1721 = vmatprep.subr.bf16.mxu0 0
        %1722 = vmatpush1.bf16.msra.mxu0 %v1048
        %1723 = vmatprep.subr.bf16.mxu0 0
        %1724 = vmatpush2.bf16.msra.mxu0 0
        %1725 = vmatprep.subr.bf16.mxu0 0
        %1726 = vmatpush2.bf16.msra.mxu0 0
        %1727 = vmatprep.subr.bf16.mxu0 0
        %1728 = vmatpush2.bf16.msra.mxu0 0
        %1729 = vmatprep.subr.bf16.mxu0 0
        %1730 = vmatpush2.bf16.msra.mxu0 0
        %1731 = vmatprep.subr.bf16.mxu0 0
        %1732 = vmatpush2.bf16.msra.mxu0 0
        %1733 = vmatprep.subr.bf16.mxu0 0
        %1734 = vmatpush2.bf16.msra.mxu0 0
        %1735 = vmatprep.subr.bf16.mxu0 0
        %1736 = vmatpush2.bf16.msra.mxu0 0
        %1737 = vmatprep.subr.bf16.mxu0 0
        %1738 = vmatpush2.bf16.msra.mxu0 0
        %1739 = vmatprep.mubr.bf16.mxu0 0
        %1740 = vmatmul.mubr.bf16.gmra.mxu0 %v1705
        %v1741 = vpop.f32.mrf.mxu0
        %v1742 = vadd.f32 0.0, %v1741
        %v1743 = vpop.f32.mrf.mxu0
        %v1744 = vpop.f32.mrf.mxu0
        %v1745 = vadd.f32 0.0, %v1744
        %v1746 = vpop.f32.mrf.mxu0
        %1747 = vdwg.mxu0
        %v1749 = vsel %vm780, %v1611, 0
        %1751 = vmatprep.subr.bf16.mxu0 0
        %1752 = vmatpush1.bf16.msra.mxu0 0
        %1753 = vmatprep.subr.bf16.mxu0 0
        %1754 = vmatpush1.bf16.msra.mxu0 0
        %1755 = vmatprep.subr.bf16.mxu0 0
        %1756 = vmatpush1.bf16.msra.mxu0 0
        %1757 = vmatprep.subr.bf16.mxu0 0
        %1758 = vmatpush1.bf16.msra.mxu0 0
        %1759 = vmatprep.subr.bf16.mxu0 0
        %1760 = vmatpush1.bf16.msra.mxu0 0
        %1761 = vmatprep.subr.bf16.mxu0 0
        %1762 = vmatpush1.bf16.msra.mxu0 0
        %1763 = vmatprep.subr.bf16.mxu0 0
        %1764 = vmatpush1.bf16.msra.mxu0 0
        %1765 = vmatprep.subr.bf16.mxu0 0
        %1766 = vmatpush1.bf16.msra.mxu0 %v1049
        %1767 = vmatprep.subr.bf16.mxu0 0
        %1768 = vmatpush2.bf16.msra.mxu0 0
        %1769 = vmatprep.subr.bf16.mxu0 0
        %1770 = vmatpush2.bf16.msra.mxu0 0
        %1771 = vmatprep.subr.bf16.mxu0 0
        %1772 = vmatpush2.bf16.msra.mxu0 0
        %1773 = vmatprep.subr.bf16.mxu0 0
        %1774 = vmatpush2.bf16.msra.mxu0 0
        %1775 = vmatprep.subr.bf16.mxu0 0
        %1776 = vmatpush2.bf16.msra.mxu0 0
        %1777 = vmatprep.subr.bf16.mxu0 0
        %1778 = vmatpush2.bf16.msra.mxu0 0
        %1779 = vmatprep.subr.bf16.mxu0 0
        %1780 = vmatpush2.bf16.msra.mxu0 0
        %1781 = vmatprep.subr.bf16.mxu0 0
        %1782 = vmatpush2.bf16.msra.mxu0 0
        %1783 = vmatprep.mubr.bf16.mxu0 0
        %1784 = vmatmul.mubr.bf16.gmra.mxu0 %v1749
        %v1785 = vpop.f32.mrf.mxu0
        %v1786 = vadd.f32 0.0, %v1785
        %v1787 = vpop.f32.mrf.mxu0
        %v1788 = vpop.f32.mrf.mxu0
        %v1789 = vadd.f32 0.0, %v1788
        %v1790 = vpop.f32.mrf.mxu0
        %1791 = vdwg.mxu0
        %v1793 = vsel %vm780, %v1612, 0
        %1795 = vmatprep.subr.bf16.mxu0 0
        %1796 = vmatpush1.bf16.msra.mxu0 0
        %1797 = vmatprep.subr.bf16.mxu0 0
        %1798 = vmatpush1.bf16.msra.mxu0 0
        %1799 = vmatprep.subr.bf16.mxu0 0
        %1800 = vmatpush1.bf16.msra.mxu0 0
        %1801 = vmatprep.subr.bf16.mxu0 0
        %1802 = vmatpush1.bf16.msra.mxu0 0
        %1803 = vmatprep.subr.bf16.mxu0 0
        %1804 = vmatpush1.bf16.msra.mxu0 0
        %1805 = vmatprep.subr.bf16.mxu0 0
        %1806 = vmatpush1.bf16.msra.mxu0 0
        %1807 = vmatprep.subr.bf16.mxu0 0
        %1808 = vmatpush1.bf16.msra.mxu0 0
        %1809 = vmatprep.subr.bf16.mxu0 0
        %1810 = vmatpush1.bf16.msra.mxu0 %v1050
        %1811 = vmatprep.subr.bf16.mxu0 0
        %1812 = vmatpush2.bf16.msra.mxu0 0
        %1813 = vmatprep.subr.bf16.mxu0 0
        %1814 = vmatpush2.bf16.msra.mxu0 0
        %1815 = vmatprep.subr.bf16.mxu0 0
        %1816 = vmatpush2.bf16.msra.mxu0 0
        %1817 = vmatprep.subr.bf16.mxu0 0
        %1818 = vmatpush2.bf16.msra.mxu0 0
        %1819 = vmatprep.subr.bf16.mxu0 0
        %1820 = vmatpush2.bf16.msra.mxu0 0
        %1821 = vmatprep.subr.bf16.mxu0 0
        %1822 = vmatpush2.bf16.msra.mxu0 0
        %1823 = vmatprep.subr.bf16.mxu0 0
        %1824 = vmatpush2.bf16.msra.mxu0 0
        %1825 = vmatprep.subr.bf16.mxu0 0
        %1826 = vmatpush2.bf16.msra.mxu0 0
        %1827 = vmatprep.mubr.bf16.mxu0 0
        %1828 = vmatmul.mubr.bf16.gmra.mxu0 %v1793
        %v1829 = vpop.f32.mrf.mxu0
        %v1830 = vadd.f32 0.0, %v1829
        %v1831 = vpop.f32.mrf.mxu0
        %v1832 = vpop.f32.mrf.mxu0
        %v1833 = vadd.f32 0.0, %v1832
        %v1834 = vpop.f32.mrf.mxu0
        %1835 = vdwg.mxu0
        %v1837 = vsel %vm780, %v1613, 0
        %1839 = vmatprep.subr.bf16.mxu0 0
        %1840 = vmatpush1.bf16.msra.mxu0 0
        %1841 = vmatprep.subr.bf16.mxu0 0
        %1842 = vmatpush1.bf16.msra.mxu0 0
        %1843 = vmatprep.subr.bf16.mxu0 0
        %1844 = vmatpush1.bf16.msra.mxu0 0
        %1845 = vmatprep.subr.bf16.mxu0 0
        %1846 = vmatpush1.bf16.msra.mxu0 0
        %1847 = vmatprep.subr.bf16.mxu0 0
        %1848 = vmatpush1.bf16.msra.mxu0 0
        %1849 = vmatprep.subr.bf16.mxu0 0
        %1850 = vmatpush1.bf16.msra.mxu0 0
        %1851 = vmatprep.subr.bf16.mxu0 0
        %1852 = vmatpush1.bf16.msra.mxu0 0
        %1853 = vmatprep.subr.bf16.mxu0 0
        %1854 = vmatpush1.bf16.msra.mxu0 %v1051
        %1855 = vmatprep.subr.bf16.mxu0 0
        %1856 = vmatpush2.bf16.msra.mxu0 0
        %1857 = vmatprep.subr.bf16.mxu0 0
        %1858 = vmatpush2.bf16.msra.mxu0 0
        %1859 = vmatprep.subr.bf16.mxu0 0
        %1860 = vmatpush2.bf16.msra.mxu0 0
        %1861 = vmatprep.subr.bf16.mxu0 0
        %1862 = vmatpush2.bf16.msra.mxu0 0
        %1863 = vmatprep.subr.bf16.mxu0 0
        %1864 = vmatpush2.bf16.msra.mxu0 0
        %1865 = vmatprep.subr.bf16.mxu0 0
        %1866 = vmatpush2.bf16.msra.mxu0 0
        %1867 = vmatprep.subr.bf16.mxu0 0
        %1868 = vmatpush2.bf16.msra.mxu0 0
        %1869 = vmatprep.subr.bf16.mxu0 0
        %1870 = vmatpush2.bf16.msra.mxu0 0
        %1871 = vmatprep.mubr.bf16.mxu0 0
        %1872 = vmatmul.mubr.bf16.gmra.mxu0 %v1837
        %v1873 = vpop.f32.mrf.mxu0
        %v1874 = vadd.f32 0.0, %v1873
        %v1875 = vpop.f32.mrf.mxu0
        %v1876 = vpop.f32.mrf.mxu0
        %v1877 = vadd.f32 0.0, %v1876
        %v1878 = vpop.f32.mrf.mxu0
        %1879 = vdwg.mxu0
        %v1881 = vsel %vm780, %v1614, 0
        %1883 = vmatprep.subr.bf16.mxu0 0
        %1884 = vmatpush1.bf16.msra.mxu0 0
        %1885 = vmatprep.subr.bf16.mxu0 0
        %1886 = vmatpush1.bf16.msra.mxu0 0
        %1887 = vmatprep.subr.bf16.mxu0 0
        %1888 = vmatpush1.bf16.msra.mxu0 0
        %1889 = vmatprep.subr.bf16.mxu0 0
        %1890 = vmatpush1.bf16.msra.mxu0 0
        %1891 = vmatprep.subr.bf16.mxu0 0
        %1892 = vmatpush1.bf16.msra.mxu0 0
        %1893 = vmatprep.subr.bf16.mxu0 0
        %1894 = vmatpush1.bf16.msra.mxu0 0
        %1895 = vmatprep.subr.bf16.mxu0 0
        %1896 = vmatpush1.bf16.msra.mxu0 0
        %1897 = vmatprep.subr.bf16.mxu0 0
        %1898 = vmatpush1.bf16.msra.mxu0 %v1052
        %1899 = vmatprep.subr.bf16.mxu0 0
        %1900 = vmatpush2.bf16.msra.mxu0 0
        %1901 = vmatprep.subr.bf16.mxu0 0
        %1902 = vmatpush2.bf16.msra.mxu0 0
        %1903 = vmatprep.subr.bf16.mxu0 0
        %1904 = vmatpush2.bf16.msra.mxu0 0
        %1905 = vmatprep.subr.bf16.mxu0 0
        %1906 = vmatpush2.bf16.msra.mxu0 0
        %1907 = vmatprep.subr.bf16.mxu0 0
        %1908 = vmatpush2.bf16.msra.mxu0 0
        %1909 = vmatprep.subr.bf16.mxu0 0
        %1910 = vmatpush2.bf16.msra.mxu0 0
        %1911 = vmatprep.subr.bf16.mxu0 0
        %1912 = vmatpush2.bf16.msra.mxu0 0
        %1913 = vmatprep.subr.bf16.mxu0 0
        %1914 = vmatpush2.bf16.msra.mxu0 0
        %1915 = vmatprep.mubr.bf16.mxu0 0
        %1916 = vmatmul.mubr.bf16.gmra.mxu0 %v1881
        %v1917 = vpop.f32.mrf.mxu0
        %v1918 = vadd.f32 0.0, %v1917
        %v1919 = vpop.f32.mrf.mxu0
        %v1920 = vpop.f32.mrf.mxu0
        %v1921 = vadd.f32 0.0, %v1920
        %v1922 = vpop.f32.mrf.mxu0
        %1923 = vdwg.mxu0
        %v1925 = vsel %vm780, %v1615, 0
        %1927 = vmatprep.subr.bf16.mxu0 0
        %1928 = vmatpush1.bf16.msra.mxu0 0
        %1929 = vmatprep.subr.bf16.mxu0 0
        %1930 = vmatpush1.bf16.msra.mxu0 0
        %1931 = vmatprep.subr.bf16.mxu0 0
        %1932 = vmatpush1.bf16.msra.mxu0 0
        %1933 = vmatprep.subr.bf16.mxu0 0
        %1934 = vmatpush1.bf16.msra.mxu0 0
        %1935 = vmatprep.subr.bf16.mxu0 0
        %1936 = vmatpush1.bf16.msra.mxu0 0
        %1937 = vmatprep.subr.bf16.mxu0 0
        %1938 = vmatpush1.bf16.msra.mxu0 0
        %1939 = vmatprep.subr.bf16.mxu0 0
        %1940 = vmatpush1.bf16.msra.mxu0 0
        %1941 = vmatprep.subr.bf16.mxu0 0
        %1942 = vmatpush1.bf16.msra.mxu0 %v1053
        %1943 = vmatprep.subr.bf16.mxu0 0
        %1944 = vmatpush2.bf16.msra.mxu0 0
        %1945 = vmatprep.subr.bf16.mxu0 0
        %1946 = vmatpush2.bf16.msra.mxu0 0
        %1947 = vmatprep.subr.bf16.mxu0 0
        %1948 = vmatpush2.bf16.msra.mxu0 0
        %1949 = vmatprep.subr.bf16.mxu0 0
        %1950 = vmatpush2.bf16.msra.mxu0 0
        %1951 = vmatprep.subr.bf16.mxu0 0
        %1952 = vmatpush2.bf16.msra.mxu0 0
        %1953 = vmatprep.subr.bf16.mxu0 0
        %1954 = vmatpush2.bf16.msra.mxu0 0
        %1955 = vmatprep.subr.bf16.mxu0 0
        %1956 = vmatpush2.bf16.msra.mxu0 0
        %1957 = vmatprep.subr.bf16.mxu0 0
        %1958 = vmatpush2.bf16.msra.mxu0 0
        %1959 = vmatprep.mubr.bf16.mxu0 0
        %1960 = vmatmul.mubr.bf16.gmra.mxu0 %v1925
        %v1961 = vpop.f32.mrf.mxu0
        %v1962 = vadd.f32 0.0, %v1961
        %v1963 = vpop.f32.mrf.mxu0
        %v1964 = vpop.f32.mrf.mxu0
        %v1965 = vadd.f32 0.0, %v1964
        %v1966 = vpop.f32.mrf.mxu0
        %1967 = vdwg.mxu0
        %v1968 = vpack.c.bf16 %v1657, %v1654
        %v1969 = vpack.c.bf16 %v1701, %v1698
        %v1970 = vpack.c.bf16 %v1745, %v1742
        %v1971 = vpack.c.bf16 %v1789, %v1786
        %v1972 = vpack.c.bf16 %v1833, %v1830
        %v1973 = vpack.c.bf16 %v1877, %v1874
        %v1974 = vpack.c.bf16 %v1921, %v1918
        %v1975 = vpack.c.bf16 %v1965, %v1962
        %v1976 = vld [vmem:[#allocation11] sm:$0xf]
        %v1977 = vld [vmem:[#allocation11 + $0x4] sm:$0xf]
        %v1978 = vld [vmem:[#allocation11 + $0x8] sm:$0xf]
        %v1979 = vld [vmem:[#allocation11 + $0xc] sm:$0xf]
        %v1980 = vld [vmem:[#allocation11 + $0x10] sm:$0xf]
        %v1981 = vld [vmem:[#allocation11 + $0x14] sm:$0xf]
        %v1982 = vld [vmem:[#allocation11 + $0x18] sm:$0xf]
        %v1983 = vld [vmem:[#allocation11 + $0x1c] sm:$0xf]
        %v1984 = vld [vmem:[#allocation11 + $0x20] sm:$0xf]
        %v1985 = vld [vmem:[#allocation11 + $0x24] sm:$0xf]
        %v1986 = vld [vmem:[#allocation11 + $0x28] sm:$0xf]
        %v1987 = vld [vmem:[#allocation11 + $0x2c] sm:$0xf]
        %v1988 = vld [vmem:[#allocation11 + $0x30] sm:$0xf]
        %v1989 = vld [vmem:[#allocation11 + $0x34] sm:$0xf]
        %v1990 = vld [vmem:[#allocation11 + $0x38] sm:$0xf]
        %v1991 = vld [vmem:[#allocation11 + $0x3c] sm:$0xf]
        %v1994 = vunpack.c.l.b16 %v1976
        %v1995 = vunpack.c.l.b16 %v1977
        %v1996 = vpack.c.b16 %v1995, %v1994
        %v1999 = vsel %vm780, %v1968, 0
        %2001 = vmatprep.subr.bf16.mxu0 0
        %2002 = vmatpush1.bf16.msra.mxu0 0
        %2003 = vmatprep.subr.bf16.mxu0 0
        %2004 = vmatpush1.bf16.msra.mxu0 0
        %2005 = vmatprep.subr.bf16.mxu0 0
        %2006 = vmatpush1.bf16.msra.mxu0 0
        %2007 = vmatprep.subr.bf16.mxu0 0
        %2008 = vmatpush1.bf16.msra.mxu0 0
        %2009 = vmatprep.subr.bf16.mxu0 0
        %2010 = vmatpush1.bf16.msra.mxu0 0
        %2011 = vmatprep.subr.bf16.mxu0 0
        %2012 = vmatpush1.bf16.msra.mxu0 0
        %2013 = vmatprep.subr.bf16.mxu0 0
        %2014 = vmatpush1.bf16.msra.mxu0 0
        %2015 = vmatprep.subr.bf16.mxu0 0
        %2016 = vmatpush1.bf16.msra.mxu0 %v1996
        %2017 = vmatprep.subr.bf16.mxu0 0
        %2018 = vmatpush2.bf16.msra.mxu0 0
        %2019 = vmatprep.subr.bf16.mxu0 0
        %2020 = vmatpush2.bf16.msra.mxu0 0
        %2021 = vmatprep.subr.bf16.mxu0 0
        %2022 = vmatpush2.bf16.msra.mxu0 0
        %2023 = vmatprep.subr.bf16.mxu0 0
        %2024 = vmatpush2.bf16.msra.mxu0 0
        %2025 = vmatprep.subr.bf16.mxu0 0
        %2026 = vmatpush2.bf16.msra.mxu0 0
        %2027 = vmatprep.subr.bf16.mxu0 0
        %2028 = vmatpush2.bf16.msra.mxu0 0
        %2029 = vmatprep.subr.bf16.mxu0 0
        %2030 = vmatpush2.bf16.msra.mxu0 0
        %2031 = vmatprep.subr.bf16.mxu0 0
        %2032 = vmatpush2.bf16.msra.mxu0 0
        %2033 = vmatprep.mubr.bf16.mxu0 0
        %2034 = vmatmul.mubr.bf16.gmra.mxu0 %v1999
        %v2035 = vpop.f32.mrf.mxu0
        %v2036 = vadd.f32 0.0, %v2035
        %v2037 = vpop.f32.mrf.mxu0
        %v2038 = vpop.f32.mrf.mxu0
        %v2039 = vadd.f32 0.0, %v2038
        %v2040 = vpop.f32.mrf.mxu0
        %2041 = vdwg.mxu0
        %v2044 = vunpack.c.l.b16 %v1978
        %v2045 = vunpack.c.l.b16 %v1979
        %v2046 = vpack.c.b16 %v2045, %v2044
        %v2049 = vsel %vm780, %v1969, 0
        %2051 = vmatprep.subr.bf16.mxu0 0
        %2052 = vmatpush1.bf16.msra.mxu0 0
        %2053 = vmatprep.subr.bf16.mxu0 0
        %2054 = vmatpush1.bf16.msra.mxu0 0
        %2055 = vmatprep.subr.bf16.mxu0 0
        %2056 = vmatpush1.bf16.msra.mxu0 0
        %2057 = vmatprep.subr.bf16.mxu0 0
        %2058 = vmatpush1.bf16.msra.mxu0 0
        %2059 = vmatprep.subr.bf16.mxu0 0
        %2060 = vmatpush1.bf16.msra.mxu0 0
        %2061 = vmatprep.subr.bf16.mxu0 0
        %2062 = vmatpush1.bf16.msra.mxu0 0
        %2063 = vmatprep.subr.bf16.mxu0 0
        %2064 = vmatpush1.bf16.msra.mxu0 0
        %2065 = vmatprep.subr.bf16.mxu0 0
        %2066 = vmatpush1.bf16.msra.mxu0 %v2046
        %2067 = vmatprep.subr.bf16.mxu0 0
        %2068 = vmatpush2.bf16.msra.mxu0 0
        %2069 = vmatprep.subr.bf16.mxu0 0
        %2070 = vmatpush2.bf16.msra.mxu0 0
        %2071 = vmatprep.subr.bf16.mxu0 0
        %2072 = vmatpush2.bf16.msra.mxu0 0
        %2073 = vmatprep.subr.bf16.mxu0 0
        %2074 = vmatpush2.bf16.msra.mxu0 0
        %2075 = vmatprep.subr.bf16.mxu0 0
        %2076 = vmatpush2.bf16.msra.mxu0 0
        %2077 = vmatprep.subr.bf16.mxu0 0
        %2078 = vmatpush2.bf16.msra.mxu0 0
        %2079 = vmatprep.subr.bf16.mxu0 0
        %2080 = vmatpush2.bf16.msra.mxu0 0
        %2081 = vmatprep.subr.bf16.mxu0 0
        %2082 = vmatpush2.bf16.msra.mxu0 0
        %2083 = vmatprep.mubr.bf16.mxu0 0
        %2084 = vmatmul.mubr.bf16.gmra.mxu0 %v2049
        %v2085 = vpop.f32.mrf.mxu0
        %v2086 = vadd.f32 0.0, %v2085
        %v2087 = vpop.f32.mrf.mxu0
        %v2088 = vpop.f32.mrf.mxu0
        %v2089 = vadd.f32 0.0, %v2088
        %v2090 = vpop.f32.mrf.mxu0
        %2091 = vdwg.mxu0
        %v2094 = vunpack.c.l.b16 %v1980
        %v2095 = vunpack.c.l.b16 %v1981
        %v2096 = vpack.c.b16 %v2095, %v2094
        %v2099 = vsel %vm780, %v1970, 0
        %2101 = vmatprep.subr.bf16.mxu0 0
        %2102 = vmatpush1.bf16.msra.mxu0 0
        %2103 = vmatprep.subr.bf16.mxu0 0
        %2104 = vmatpush1.bf16.msra.mxu0 0
        %2105 = vmatprep.subr.bf16.mxu0 0
        %2106 = vmatpush1.bf16.msra.mxu0 0
        %2107 = vmatprep.subr.bf16.mxu0 0
        %2108 = vmatpush1.bf16.msra.mxu0 0
        %2109 = vmatprep.subr.bf16.mxu0 0
        %2110 = vmatpush1.bf16.msra.mxu0 0
        %2111 = vmatprep.subr.bf16.mxu0 0
        %2112 = vmatpush1.bf16.msra.mxu0 0
        %2113 = vmatprep.subr.bf16.mxu0 0
        %2114 = vmatpush1.bf16.msra.mxu0 0
        %2115 = vmatprep.subr.bf16.mxu0 0
        %2116 = vmatpush1.bf16.msra.mxu0 %v2096
        %2117 = vmatprep.subr.bf16.mxu0 0
        %2118 = vmatpush2.bf16.msra.mxu0 0
        %2119 = vmatprep.subr.bf16.mxu0 0
        %2120 = vmatpush2.bf16.msra.mxu0 0
        %2121 = vmatprep.subr.bf16.mxu0 0
        %2122 = vmatpush2.bf16.msra.mxu0 0
        %2123 = vmatprep.subr.bf16.mxu0 0
        %2124 = vmatpush2.bf16.msra.mxu0 0
        %2125 = vmatprep.subr.bf16.mxu0 0
        %2126 = vmatpush2.bf16.msra.mxu0 0
        %2127 = vmatprep.subr.bf16.mxu0 0
        %2128 = vmatpush2.bf16.msra.mxu0 0
        %2129 = vmatprep.subr.bf16.mxu0 0
        %2130 = vmatpush2.bf16.msra.mxu0 0
        %2131 = vmatprep.subr.bf16.mxu0 0
        %2132 = vmatpush2.bf16.msra.mxu0 0
        %2133 = vmatprep.mubr.bf16.mxu0 0
        %2134 = vmatmul.mubr.bf16.gmra.mxu0 %v2099
        %v2135 = vpop.f32.mrf.mxu0
        %v2136 = vadd.f32 0.0, %v2135
        %v2137 = vpop.f32.mrf.mxu0
        %v2138 = vpop.f32.mrf.mxu0
        %v2139 = vadd.f32 0.0, %v2138
        %v2140 = vpop.f32.mrf.mxu0
        %2141 = vdwg.mxu0
        %v2144 = vunpack.c.l.b16 %v1982
        %v2145 = vunpack.c.l.b16 %v1983
        %v2146 = vpack.c.b16 %v2145, %v2144
        %v2149 = vsel %vm780, %v1971, 0
        %2151 = vmatprep.subr.bf16.mxu0 0
        %2152 = vmatpush1.bf16.msra.mxu0 0
        %2153 = vmatprep.subr.bf16.mxu0 0
        %2154 = vmatpush1.bf16.msra.mxu0 0
        %2155 = vmatprep.subr.bf16.mxu0 0
        %2156 = vmatpush1.bf16.msra.mxu0 0
        %2157 = vmatprep.subr.bf16.mxu0 0
        %2158 = vmatpush1.bf16.msra.mxu0 0
        %2159 = vmatprep.subr.bf16.mxu0 0
        %2160 = vmatpush1.bf16.msra.mxu0 0
        %2161 = vmatprep.subr.bf16.mxu0 0
        %2162 = vmatpush1.bf16.msra.mxu0 0
        %2163 = vmatprep.subr.bf16.mxu0 0
        %2164 = vmatpush1.bf16.msra.mxu0 0
        %2165 = vmatprep.subr.bf16.mxu0 0
        %2166 = vmatpush1.bf16.msra.mxu0 %v2146
        %2167 = vmatprep.subr.bf16.mxu0 0
        %2168 = vmatpush2.bf16.msra.mxu0 0
        %2169 = vmatprep.subr.bf16.mxu0 0
        %2170 = vmatpush2.bf16.msra.mxu0 0
        %2171 = vmatprep.subr.bf16.mxu0 0
        %2172 = vmatpush2.bf16.msra.mxu0 0
        %2173 = vmatprep.subr.bf16.mxu0 0
        %2174 = vmatpush2.bf16.msra.mxu0 0
        %2175 = vmatprep.subr.bf16.mxu0 0
        %2176 = vmatpush2.bf16.msra.mxu0 0
        %2177 = vmatprep.subr.bf16.mxu0 0
        %2178 = vmatpush2.bf16.msra.mxu0 0
        %2179 = vmatprep.subr.bf16.mxu0 0
        %2180 = vmatpush2.bf16.msra.mxu0 0
        %2181 = vmatprep.subr.bf16.mxu0 0
        %2182 = vmatpush2.bf16.msra.mxu0 0
        %2183 = vmatprep.mubr.bf16.mxu0 0
        %2184 = vmatmul.mubr.bf16.gmra.mxu0 %v2149
        %v2185 = vpop.f32.mrf.mxu0
        %v2186 = vadd.f32 0.0, %v2185
        %v2187 = vpop.f32.mrf.mxu0
        %v2188 = vpop.f32.mrf.mxu0
        %v2189 = vadd.f32 0.0, %v2188
        %v2190 = vpop.f32.mrf.mxu0
        %2191 = vdwg.mxu0
        %v2194 = vunpack.c.l.b16 %v1984
        %v2195 = vunpack.c.l.b16 %v1985
        %v2196 = vpack.c.b16 %v2195, %v2194
        %v2199 = vsel %vm780, %v1972, 0
        %2201 = vmatprep.subr.bf16.mxu0 0
        %2202 = vmatpush1.bf16.msra.mxu0 0
        %2203 = vmatprep.subr.bf16.mxu0 0
        %2204 = vmatpush1.bf16.msra.mxu0 0
        %2205 = vmatprep.subr.bf16.mxu0 0
        %2206 = vmatpush1.bf16.msra.mxu0 0
        %2207 = vmatprep.subr.bf16.mxu0 0
        %2208 = vmatpush1.bf16.msra.mxu0 0
        %2209 = vmatprep.subr.bf16.mxu0 0
        %2210 = vmatpush1.bf16.msra.mxu0 0
        %2211 = vmatprep.subr.bf16.mxu0 0
        %2212 = vmatpush1.bf16.msra.mxu0 0
        %2213 = vmatprep.subr.bf16.mxu0 0
        %2214 = vmatpush1.bf16.msra.mxu0 0
        %2215 = vmatprep.subr.bf16.mxu0 0
        %2216 = vmatpush1.bf16.msra.mxu0 %v2196
        %2217 = vmatprep.subr.bf16.mxu0 0
        %2218 = vmatpush2.bf16.msra.mxu0 0
        %2219 = vmatprep.subr.bf16.mxu0 0
        %2220 = vmatpush2.bf16.msra.mxu0 0
        %2221 = vmatprep.subr.bf16.mxu0 0
        %2222 = vmatpush2.bf16.msra.mxu0 0
        %2223 = vmatprep.subr.bf16.mxu0 0
        %2224 = vmatpush2.bf16.msra.mxu0 0
        %2225 = vmatprep.subr.bf16.mxu0 0
        %2226 = vmatpush2.bf16.msra.mxu0 0
        %2227 = vmatprep.subr.bf16.mxu0 0
        %2228 = vmatpush2.bf16.msra.mxu0 0
        %2229 = vmatprep.subr.bf16.mxu0 0
        %2230 = vmatpush2.bf16.msra.mxu0 0
        %2231 = vmatprep.subr.bf16.mxu0 0
        %2232 = vmatpush2.bf16.msra.mxu0 0
        %2233 = vmatprep.mubr.bf16.mxu0 0
        %2234 = vmatmul.mubr.bf16.gmra.mxu0 %v2199
        %v2235 = vpop.f32.mrf.mxu0
        %v2236 = vadd.f32 0.0, %v2235
        %v2237 = vpop.f32.mrf.mxu0
        %v2238 = vpop.f32.mrf.mxu0
        %v2239 = vadd.f32 0.0, %v2238
        %v2240 = vpop.f32.mrf.mxu0
        %2241 = vdwg.mxu0
        %v2244 = vunpack.c.l.b16 %v1986
        %v2245 = vunpack.c.l.b16 %v1987
        %v2246 = vpack.c.b16 %v2245, %v2244
        %v2249 = vsel %vm780, %v1973, 0
        %2251 = vmatprep.subr.bf16.mxu0 0
        %2252 = vmatpush1.bf16.msra.mxu0 0
        %2253 = vmatprep.subr.bf16.mxu0 0
        %2254 = vmatpush1.bf16.msra.mxu0 0
        %2255 = vmatprep.subr.bf16.mxu0 0
        %2256 = vmatpush1.bf16.msra.mxu0 0
        %2257 = vmatprep.subr.bf16.mxu0 0
        %2258 = vmatpush1.bf16.msra.mxu0 0
        %2259 = vmatprep.subr.bf16.mxu0 0
        %2260 = vmatpush1.bf16.msra.mxu0 0
        %2261 = vmatprep.subr.bf16.mxu0 0
        %2262 = vmatpush1.bf16.msra.mxu0 0
        %2263 = vmatprep.subr.bf16.mxu0 0
        %2264 = vmatpush1.bf16.msra.mxu0 0
        %2265 = vmatprep.subr.bf16.mxu0 0
        %2266 = vmatpush1.bf16.msra.mxu0 %v2246
        %2267 = vmatprep.subr.bf16.mxu0 0
        %2268 = vmatpush2.bf16.msra.mxu0 0
        %2269 = vmatprep.subr.bf16.mxu0 0
        %2270 = vmatpush2.bf16.msra.mxu0 0
        %2271 = vmatprep.subr.bf16.mxu0 0
        %2272 = vmatpush2.bf16.msra.mxu0 0
        %2273 = vmatprep.subr.bf16.mxu0 0
        %2274 = vmatpush2.bf16.msra.mxu0 0
        %2275 = vmatprep.subr.bf16.mxu0 0
        %2276 = vmatpush2.bf16.msra.mxu0 0
        %2277 = vmatprep.subr.bf16.mxu0 0
        %2278 = vmatpush2.bf16.msra.mxu0 0
        %2279 = vmatprep.subr.bf16.mxu0 0
        %2280 = vmatpush2.bf16.msra.mxu0 0
        %2281 = vmatprep.subr.bf16.mxu0 0
        %2282 = vmatpush2.bf16.msra.mxu0 0
        %2283 = vmatprep.mubr.bf16.mxu0 0
        %2284 = vmatmul.mubr.bf16.gmra.mxu0 %v2249
        %v2285 = vpop.f32.mrf.mxu0
        %v2286 = vadd.f32 0.0, %v2285
        %v2287 = vpop.f32.mrf.mxu0
        %v2288 = vpop.f32.mrf.mxu0
        %v2289 = vadd.f32 0.0, %v2288
        %v2290 = vpop.f32.mrf.mxu0
        %2291 = vdwg.mxu0
        %v2294 = vunpack.c.l.b16 %v1988
        %v2295 = vunpack.c.l.b16 %v1989
        %v2296 = vpack.c.b16 %v2295, %v2294
        %v2299 = vsel %vm780, %v1974, 0
        %2301 = vmatprep.subr.bf16.mxu0 0
        %2302 = vmatpush1.bf16.msra.mxu0 0
        %2303 = vmatprep.subr.bf16.mxu0 0
        %2304 = vmatpush1.bf16.msra.mxu0 0
        %2305 = vmatprep.subr.bf16.mxu0 0
        %2306 = vmatpush1.bf16.msra.mxu0 0
        %2307 = vmatprep.subr.bf16.mxu0 0
        %2308 = vmatpush1.bf16.msra.mxu0 0
        %2309 = vmatprep.subr.bf16.mxu0 0
        %2310 = vmatpush1.bf16.msra.mxu0 0
        %2311 = vmatprep.subr.bf16.mxu0 0
        %2312 = vmatpush1.bf16.msra.mxu0 0
        %2313 = vmatprep.subr.bf16.mxu0 0
        %2314 = vmatpush1.bf16.msra.mxu0 0
        %2315 = vmatprep.subr.bf16.mxu0 0
        %2316 = vmatpush1.bf16.msra.mxu0 %v2296
        %2317 = vmatprep.subr.bf16.mxu0 0
        %2318 = vmatpush2.bf16.msra.mxu0 0
        %2319 = vmatprep.subr.bf16.mxu0 0
        %2320 = vmatpush2.bf16.msra.mxu0 0
        %2321 = vmatprep.subr.bf16.mxu0 0
        %2322 = vmatpush2.bf16.msra.mxu0 0
        %2323 = vmatprep.subr.bf16.mxu0 0
        %2324 = vmatpush2.bf16.msra.mxu0 0
        %2325 = vmatprep.subr.bf16.mxu0 0
        %2326 = vmatpush2.bf16.msra.mxu0 0
        %2327 = vmatprep.subr.bf16.mxu0 0
        %2328 = vmatpush2.bf16.msra.mxu0 0
        %2329 = vmatprep.subr.bf16.mxu0 0
        %2330 = vmatpush2.bf16.msra.mxu0 0
        %2331 = vmatprep.subr.bf16.mxu0 0
        %2332 = vmatpush2.bf16.msra.mxu0 0
        %2333 = vmatprep.mubr.bf16.mxu0 0
        %2334 = vmatmul.mubr.bf16.gmra.mxu0 %v2299
        %v2335 = vpop.f32.mrf.mxu0
        %v2336 = vadd.f32 0.0, %v2335
        %v2337 = vpop.f32.mrf.mxu0
        %v2338 = vpop.f32.mrf.mxu0
        %v2339 = vadd.f32 0.0, %v2338
        %v2340 = vpop.f32.mrf.mxu0
        %2341 = vdwg.mxu0
        %v2344 = vunpack.c.l.b16 %v1990
        %v2345 = vunpack.c.l.b16 %v1991
        %v2346 = vpack.c.b16 %v2345, %v2344
        %v2349 = vsel %vm780, %v1975, 0
        %2351 = vmatprep.subr.bf16.mxu0 0
        %2352 = vmatpush1.bf16.msra.mxu0 0
        %2353 = vmatprep.subr.bf16.mxu0 0
        %2354 = vmatpush1.bf16.msra.mxu0 0
        %2355 = vmatprep.subr.bf16.mxu0 0
        %2356 = vmatpush1.bf16.msra.mxu0 0
        %2357 = vmatprep.subr.bf16.mxu0 0
        %2358 = vmatpush1.bf16.msra.mxu0 0
        %2359 = vmatprep.subr.bf16.mxu0 0
        %2360 = vmatpush1.bf16.msra.mxu0 0
        %2361 = vmatprep.subr.bf16.mxu0 0
        %2362 = vmatpush1.bf16.msra.mxu0 0
        %2363 = vmatprep.subr.bf16.mxu0 0
        %2364 = vmatpush1.bf16.msra.mxu0 0
        %2365 = vmatprep.subr.bf16.mxu0 0
        %2366 = vmatpush1.bf16.msra.mxu0 %v2346
        %2367 = vmatprep.subr.bf16.mxu0 0
        %2368 = vmatpush2.bf16.msra.mxu0 0
        %2369 = vmatprep.subr.bf16.mxu0 0
        %2370 = vmatpush2.bf16.msra.mxu0 0
        %2371 = vmatprep.subr.bf16.mxu0 0
        %2372 = vmatpush2.bf16.msra.mxu0 0
        %2373 = vmatprep.subr.bf16.mxu0 0
        %2374 = vmatpush2.bf16.msra.mxu0 0
        %2375 = vmatprep.subr.bf16.mxu0 0
        %2376 = vmatpush2.bf16.msra.mxu0 0
        %2377 = vmatprep.subr.bf16.mxu0 0
        %2378 = vmatpush2.bf16.msra.mxu0 0
        %2379 = vmatprep.subr.bf16.mxu0 0
        %2380 = vmatpush2.bf16.msra.mxu0 0
        %2381 = vmatprep.subr.bf16.mxu0 0
        %2382 = vmatpush2.bf16.msra.mxu0 0
        %2383 = vmatprep.mubr.bf16.mxu0 0
        %2384 = vmatmul.mubr.bf16.gmra.mxu0 %v2349
        %v2385 = vpop.f32.mrf.mxu0
        %v2386 = vadd.f32 0.0, %v2385
        %v2387 = vpop.f32.mrf.mxu0
        %v2388 = vpop.f32.mrf.mxu0
        %v2389 = vadd.f32 0.0, %v2388
        %v2390 = vpop.f32.mrf.mxu0
        %2391 = vdwg.mxu0
        %v2392 = vadd.f32 %v2036, %v2086
        %v2393 = vadd.f32 %v2392, %v2136
        %v2394 = vadd.f32 %v2393, %v2186
        %v2395 = vadd.f32 %v2394, %v2236
        %v2396 = vadd.f32 %v2395, %v2286
        %v2397 = vadd.f32 %v2396, %v2336
        %v2398 = vadd.f32 %v2397, %v2386
        %v2399 = vadd.f32 %v2039, %v2089
        %v2400 = vadd.f32 %v2399, %v2139
        %v2401 = vadd.f32 %v2400, %v2189
        %v2402 = vadd.f32 %v2401, %v2239
        %v2403 = vadd.f32 %v2402, %v2289
        %v2404 = vadd.f32 %v2403, %v2339
        %v2405 = vadd.f32 %v2404, %v2389
        %v2406 = vld [vmem:[%s4] sm:$0x1]
        %v2408 = vlaneseq
        %v2409 = vshrl.u32 %v2408, 7
        %v2410 = vsub.s32 0, %v2409
        %v2411 = vrot.slane %v2406, %v2410
        %v2413 = vadd.f32 %v2398, %v2411
        %v2414 = vadd.f32 %v2405, %v2411
        %v2415 = vadd.f32 %v533, %v2413
        %v2416 = vadd.f32 %v534, %v2414
        %2417 = vadd.xlane.f32.xlu0 %v2415
        %v2418 = vpop.xlane.xlu0 %2417
        %2419 = vadd.xlane.f32.xlu0 %v2416
        %v2420 = vpop.xlane.xlu0 %2419
        %v2421 = vrcp.pop 128.0
        %v2422 = vmul.f32 %v2418, %v2421
        %v2423 = vmul.f32 %v2420, %v2421
        %v2424 = vsub.f32 %v2415, %v2422
        %v2425 = vsub.f32 %v2416, %v2423
        %v2426 = vmul.f32 %v2424, %v2424
        %v2427 = vmul.f32 %v2425, %v2425
        %2428 = vadd.xlane.f32.xlu0 %v2426
        %v2429 = vpop.xlane.xlu0 %2428
        %2430 = vadd.xlane.f32.xlu0 %v2427
        %v2431 = vpop.xlane.xlu0 %2430
        %v2432 = vmul.f32 %v2429, %v2421
        %v2433 = vmul.f32 %v2431, %v2421
        %v2434 = vadd.f32 %v2432, 1e-05
        %v2435 = vadd.f32 %v2433, 1e-05
        %v2436 = vrsqrt.pop %v2434
        %v2437 = vrsqrt.pop %v2435
        %v2438 = vmul.f32 %v2424, %v2436
        %v2439 = vmul.f32 %v2425, %v2437
        %v2440 = vld [vmem:[%s5] sm:$0x1]
        %v2442 = vlaneseq
        %v2443 = vshrl.u32 %v2442, 7
        %v2444 = vsub.s32 0, %v2443
        %v2445 = vrot.slane %v2440, %v2444
        %v2447 = vmul.f32 %v2438, %v2445
        %v2448 = vmul.f32 %v2439, %v2445
        %v2449 = vld [vmem:[%s6] sm:$0x1]
        %v2451 = vlaneseq
        %v2452 = vshrl.u32 %v2451, 7
        %v2453 = vsub.s32 0, %v2452
        %v2454 = vrot.slane %v2449, %v2453
        %v2456 = vadd.f32 %v2447, %v2454
        %v2457 = vadd.f32 %v2448, %v2454
        %v2458 = vpack.c.bf16 %v2457, %v2456
        %v2459 = vld [vmem:[#allocation13] sm:$0xff]
        %v2460 = vld [vmem:[#allocation13 + $0x8] sm:$0xff]
        %v2461 = vld [vmem:[#allocation13 + $0x10] sm:$0xff]
        %v2462 = vld [vmem:[#allocation13 + $0x18] sm:$0xff]
        %v2463 = vld [vmem:[#allocation13 + $0x20] sm:$0xff]
        %v2464 = vld [vmem:[#allocation13 + $0x28] sm:$0xff]
        %v2465 = vld [vmem:[#allocation13 + $0x30] sm:$0xff]
        %v2466 = vld [vmem:[#allocation13 + $0x38] sm:$0xff]
        %v2467 = vld [vmem:[#allocation13 + $0x40] sm:$0xff]
        %v2468 = vld [vmem:[#allocation13 + $0x48] sm:$0xff]
        %v2469 = vld [vmem:[#allocation13 + $0x50] sm:$0xff]
        %v2470 = vld [vmem:[#allocation13 + $0x58] sm:$0xff]
        %v2471 = vld [vmem:[#allocation13 + $0x60] sm:$0xff]
        %v2472 = vld [vmem:[#allocation13 + $0x68] sm:$0xff]
        %v2473 = vld [vmem:[#allocation13 + $0x70] sm:$0xff]
        %v2474 = vld [vmem:[#allocation13 + $0x78] sm:$0xff]
        %v2475 = vld [vmem:[%s8] sm:$0x3]
        %v2477 = vlaneseq
        %v2478 = vshrl.u32 %v2477, 7
        %v2479 = vsub.s32 0, %v2478
        %v2480 = vrot.slane %v2475, %v2479
        %v2481 = vlaneseq
        %v2482 = vshrl.u32 %v2481, 7
        %v2483 = vsub.s32 1, %v2482
        %v2484 = vrot.slane %v2475, %v2483
        %v2503 = vunpack.c.l.b16 %v2459
        %v2504 = vunpack.c.h.b16 %v2459
        %v2505 = vunpack.c.l.b16 %v2460
        %v2506 = vunpack.c.h.b16 %v2460
        %v2507 = vunpack.c.l.b16 %v2461
        %v2508 = vunpack.c.h.b16 %v2461
        %v2509 = vunpack.c.l.b16 %v2462
        %v2510 = vunpack.c.h.b16 %v2462
        %v2511 = vunpack.c.l.b16 %v2463
        %v2512 = vunpack.c.h.b16 %v2463
        %v2513 = vunpack.c.l.b16 %v2464
        %v2514 = vunpack.c.h.b16 %v2464
        %v2515 = vunpack.c.l.b16 %v2465
        %v2516 = vunpack.c.h.b16 %v2465
        %v2517 = vunpack.c.l.b16 %v2466
        %v2518 = vunpack.c.h.b16 %v2466
        %v2519 = vunpack.c.l.b16 %v2467
        %v2520 = vunpack.c.h.b16 %v2467
        %v2521 = vunpack.c.l.b16 %v2468
        %v2522 = vunpack.c.h.b16 %v2468
        %v2523 = vunpack.c.l.b16 %v2469
        %v2524 = vunpack.c.h.b16 %v2469
        %v2525 = vunpack.c.l.b16 %v2470
        %v2526 = vunpack.c.h.b16 %v2470
        %v2527 = vunpack.c.l.b16 %v2471
        %v2528 = vunpack.c.h.b16 %v2471
        %v2529 = vunpack.c.l.b16 %v2472
        %v2530 = vunpack.c.h.b16 %v2472
        %v2531 = vunpack.c.l.b16 %v2473
        %v2532 = vunpack.c.h.b16 %v2473
        %v2533 = vunpack.c.l.b16 %v2474
        %v2534 = vunpack.c.h.b16 %v2474
        %v2535 = vpack.c.b16 %v2505, %v2503
        %v2536 = vpack.c.b16 %v2506, %v2504
        %v2537 = vpack.c.b16 %v2509, %v2507
        %v2538 = vpack.c.b16 %v2510, %v2508
        %v2539 = vpack.c.b16 %v2513, %v2511
        %v2540 = vpack.c.b16 %v2514, %v2512
        %v2541 = vpack.c.b16 %v2517, %v2515
        %v2542 = vpack.c.b16 %v2518, %v2516
        %v2543 = vpack.c.b16 %v2521, %v2519
        %v2544 = vpack.c.b16 %v2522, %v2520
        %v2545 = vpack.c.b16 %v2525, %v2523
        %v2546 = vpack.c.b16 %v2526, %v2524
        %v2547 = vpack.c.b16 %v2529, %v2527
        %v2548 = vpack.c.b16 %v2530, %v2528
        %v2549 = vpack.c.b16 %v2533, %v2531
        %v2550 = vpack.c.b16 %v2534, %v2532
        %2567 = vmatprep.subr.bf16.mxu0 %v2550
        %2568 = vmatpush1.bf16.msra.mxu0 %v2549
        %2569 = vmatprep.subr.bf16.mxu0 %v2548
        %2570 = vmatpush1.bf16.msra.mxu0 %v2547
        %2571 = vmatprep.subr.bf16.mxu0 %v2546
        %2572 = vmatpush1.bf16.msra.mxu0 %v2545
        %2573 = vmatprep.subr.bf16.mxu0 %v2544
        %2574 = vmatpush1.bf16.msra.mxu0 %v2543
        %2575 = vmatprep.subr.bf16.mxu0 %v2542
        %2576 = vmatpush1.bf16.msra.mxu0 %v2541
        %2577 = vmatprep.subr.bf16.mxu0 %v2540
        %2578 = vmatpush1.bf16.msra.mxu0 %v2539
        %2579 = vmatprep.subr.bf16.mxu0 %v2538
        %2580 = vmatpush1.bf16.msra.mxu0 %v2537
        %2581 = vmatprep.subr.bf16.mxu0 %v2536
        %2582 = vmatpush1.bf16.msra.mxu0 %v2535
        %2583 = vmatprep.subr.bf16.mxu0 0
        %2584 = vmatpush2.bf16.msra.mxu0 0
        %2585 = vmatprep.subr.bf16.mxu0 0
        %2586 = vmatpush2.bf16.msra.mxu0 0
        %2587 = vmatprep.subr.bf16.mxu0 0
        %2588 = vmatpush2.bf16.msra.mxu0 0
        %2589 = vmatprep.subr.bf16.mxu0 0
        %2590 = vmatpush2.bf16.msra.mxu0 0
        %2591 = vmatprep.subr.bf16.mxu0 0
        %2592 = vmatpush2.bf16.msra.mxu0 0
        %2593 = vmatprep.subr.bf16.mxu0 0
        %2594 = vmatpush2.bf16.msra.mxu0 0
        %2595 = vmatprep.subr.bf16.mxu0 0
        %2596 = vmatpush2.bf16.msra.mxu0 0
        %2597 = vmatprep.subr.bf16.mxu0 0
        %2598 = vmatpush2.bf16.msra.mxu0 0
        %2599 = vmatprep.mubr.bf16.mxu0 0
        %2600 = vmatmul.mubr.bf16.gmra.mxu0 %v2458
        %v2601 = vpop.f32.mrf.mxu0
        %v2602 = vadd.f32 %v2480, %v2601
        %v2603 = vpop.f32.mrf.mxu0
        %v2604 = vadd.f32 %v2484, %v2603
        %v2605 = vpop.f32.mrf.mxu0
        %v2606 = vadd.f32 %v2480, %v2605
        %v2607 = vpop.f32.mrf.mxu0
        %v2608 = vadd.f32 %v2484, %v2607
        %2609 = vdwg.mxu0
        %v2610 = vmax.f32 %v2602, 0.0
        %v2611 = vmax.f32 %v2604, 0.0
        %v2612 = vmax.f32 %v2606, 0.0
        %v2613 = vmax.f32 %v2608, 0.0
        %v2614 = vpack.c.bf16 %v2612, %v2610
        %v2615 = vpack.c.bf16 %v2613, %v2611
        %v2616 = vld [vmem:[#allocation14] sm:$0xf]
        %v2617 = vld [vmem:[#allocation14 + $0x4] sm:$0xf]
        %v2618 = vld [vmem:[#allocation14 + $0x8] sm:$0xf]
        %v2619 = vld [vmem:[#allocation14 + $0xc] sm:$0xf]
        %v2620 = vld [vmem:[#allocation14 + $0x10] sm:$0xf]
        %v2621 = vld [vmem:[#allocation14 + $0x14] sm:$0xf]
        %v2622 = vld [vmem:[#allocation14 + $0x18] sm:$0xf]
        %v2623 = vld [vmem:[#allocation14 + $0x1c] sm:$0xf]
        %v2624 = vld [vmem:[#allocation14 + $0x20] sm:$0xf]
        %v2625 = vld [vmem:[#allocation14 + $0x24] sm:$0xf]
        %v2626 = vld [vmem:[#allocation14 + $0x28] sm:$0xf]
        %v2627 = vld [vmem:[#allocation14 + $0x2c] sm:$0xf]
        %v2628 = vld [vmem:[#allocation14 + $0x30] sm:$0xf]
        %v2629 = vld [vmem:[#allocation14 + $0x34] sm:$0xf]
        %v2630 = vld [vmem:[#allocation14 + $0x38] sm:$0xf]
        %v2631 = vld [vmem:[#allocation14 + $0x3c] sm:$0xf]
        %v2632 = vld [vmem:[#allocation14 + $0x40] sm:$0xf]
        %v2633 = vld [vmem:[#allocation14 + $0x44] sm:$0xf]
        %v2634 = vld [vmem:[#allocation14 + $0x48] sm:$0xf]
        %v2635 = vld [vmem:[#allocation14 + $0x4c] sm:$0xf]
        %v2636 = vld [vmem:[#allocation14 + $0x50] sm:$0xf]
        %v2637 = vld [vmem:[#allocation14 + $0x54] sm:$0xf]
        %v2638 = vld [vmem:[#allocation14 + $0x58] sm:$0xf]
        %v2639 = vld [vmem:[#allocation14 + $0x5c] sm:$0xf]
        %v2640 = vld [vmem:[#allocation14 + $0x60] sm:$0xf]
        %v2641 = vld [vmem:[#allocation14 + $0x64] sm:$0xf]
        %v2642 = vld [vmem:[#allocation14 + $0x68] sm:$0xf]
        %v2643 = vld [vmem:[#allocation14 + $0x6c] sm:$0xf]
        %v2644 = vld [vmem:[#allocation14 + $0x70] sm:$0xf]
        %v2645 = vld [vmem:[#allocation14 + $0x74] sm:$0xf]
        %v2646 = vld [vmem:[#allocation14 + $0x78] sm:$0xf]
        %v2647 = vld [vmem:[#allocation14 + $0x7c] sm:$0xf]
        %v2648 = vld [vmem:[%s10] sm:$0x1]
        %v2650 = vlaneseq
        %v2651 = vshrl.u32 %v2650, 7
        %v2652 = vsub.s32 0, %v2651
        %v2653 = vrot.slane %v2648, %v2652
        %v2687 = vunpack.c.l.b16 %v2616
        %v2688 = vunpack.c.l.b16 %v2617
        %v2689 = vunpack.c.l.b16 %v2618
        %v2690 = vunpack.c.l.b16 %v2619
        %v2691 = vunpack.c.l.b16 %v2620
        %v2692 = vunpack.c.l.b16 %v2621
        %v2693 = vunpack.c.l.b16 %v2622
        %v2694 = vunpack.c.l.b16 %v2623
        %v2695 = vunpack.c.l.b16 %v2624
        %v2696 = vunpack.c.l.b16 %v2625
        %v2697 = vunpack.c.l.b16 %v2626
        %v2698 = vunpack.c.l.b16 %v2627
        %v2699 = vunpack.c.l.b16 %v2628
        %v2700 = vunpack.c.l.b16 %v2629
        %v2701 = vunpack.c.l.b16 %v2630
        %v2702 = vunpack.c.l.b16 %v2631
        %v2703 = vunpack.c.l.b16 %v2632
        %v2704 = vunpack.c.l.b16 %v2633
        %v2705 = vunpack.c.l.b16 %v2634
        %v2706 = vunpack.c.l.b16 %v2635
        %v2707 = vunpack.c.l.b16 %v2636
        %v2708 = vunpack.c.l.b16 %v2637
        %v2709 = vunpack.c.l.b16 %v2638
        %v2710 = vunpack.c.l.b16 %v2639
        %v2711 = vunpack.c.l.b16 %v2640
        %v2712 = vunpack.c.l.b16 %v2641
        %v2713 = vunpack.c.l.b16 %v2642
        %v2714 = vunpack.c.l.b16 %v2643
        %v2715 = vunpack.c.l.b16 %v2644
        %v2716 = vunpack.c.l.b16 %v2645
        %v2717 = vunpack.c.l.b16 %v2646
        %v2718 = vunpack.c.l.b16 %v2647
        %v2719 = vpack.c.b16 %v2688, %v2687
        %v2720 = vpack.c.b16 %v2690, %v2689
        %v2721 = vpack.c.b16 %v2692, %v2691
        %v2722 = vpack.c.b16 %v2694, %v2693
        %v2723 = vpack.c.b16 %v2696, %v2695
        %v2724 = vpack.c.b16 %v2698, %v2697
        %v2725 = vpack.c.b16 %v2700, %v2699
        %v2726 = vpack.c.b16 %v2702, %v2701
        %v2727 = vpack.c.b16 %v2704, %v2703
        %v2728 = vpack.c.b16 %v2706, %v2705
        %v2729 = vpack.c.b16 %v2708, %v2707
        %v2730 = vpack.c.b16 %v2710, %v2709
        %v2731 = vpack.c.b16 %v2712, %v2711
        %v2732 = vpack.c.b16 %v2714, %v2713
        %v2733 = vpack.c.b16 %v2716, %v2715
        %v2734 = vpack.c.b16 %v2718, %v2717
        %2751 = vmatprep.subr.bf16.mxu0 0
        %2752 = vmatpush1.bf16.msra.mxu0 %v2726
        %2753 = vmatprep.subr.bf16.mxu0 0
        %2754 = vmatpush1.bf16.msra.mxu0 %v2725
        %2755 = vmatprep.subr.bf16.mxu0 0
        %2756 = vmatpush1.bf16.msra.mxu0 %v2724
        %2757 = vmatprep.subr.bf16.mxu0 0
        %2758 = vmatpush1.bf16.msra.mxu0 %v2723
        %2759 = vmatprep.subr.bf16.mxu0 0
        %2760 = vmatpush1.bf16.msra.mxu0 %v2722
        %2761 = vmatprep.subr.bf16.mxu0 0
        %2762 = vmatpush1.bf16.msra.mxu0 %v2721
        %2763 = vmatprep.subr.bf16.mxu0 0
        %2764 = vmatpush1.bf16.msra.mxu0 %v2720
        %2765 = vmatprep.subr.bf16.mxu0 0
        %2766 = vmatpush1.bf16.msra.mxu0 %v2719
        %2767 = vmatprep.subr.bf16.mxu0 0
        %2768 = vmatpush2.bf16.msra.mxu0 %v2734
        %2769 = vmatprep.subr.bf16.mxu0 0
        %2770 = vmatpush2.bf16.msra.mxu0 %v2733
        %2771 = vmatprep.subr.bf16.mxu0 0
        %2772 = vmatpush2.bf16.msra.mxu0 %v2732
        %2773 = vmatprep.subr.bf16.mxu0 0
        %2774 = vmatpush2.bf16.msra.mxu0 %v2731
        %2775 = vmatprep.subr.bf16.mxu0 0
        %2776 = vmatpush2.bf16.msra.mxu0 %v2730
        %2777 = vmatprep.subr.bf16.mxu0 0
        %2778 = vmatpush2.bf16.msra.mxu0 %v2729
        %2779 = vmatprep.subr.bf16.mxu0 0
        %2780 = vmatpush2.bf16.msra.mxu0 %v2728
        %2781 = vmatprep.subr.bf16.mxu0 0
        %2782 = vmatpush2.bf16.msra.mxu0 %v2727
        %2783 = vmatprep.mubr.bf16.mxu0 %v2615
        %2784 = vmatmul.mubr.bf16.gmra.mxu0 %v2614
        %v2785 = vpop.f32.mrf.mxu0
        %v2786 = vadd.f32 %v2653, %v2785
        %v2787 = vpop.f32.mrf.mxu0
        %v2788 = vpop.f32.mrf.mxu0
        %v2789 = vadd.f32 %v2653, %v2788
        %v2790 = vpop.f32.mrf.mxu0
        %2791 = vdwg.mxu0
        %v2792 = vadd.f32 %v2456, %v2786
        %v2793 = vadd.f32 %v2457, %v2789
        %2794 = vadd.xlane.f32.xlu0 %v2792
        %v2795 = vpop.xlane.xlu0 %2794
        %2796 = vadd.xlane.f32.xlu0 %v2793
        %v2797 = vpop.xlane.xlu0 %2796
        %v2798 = vmul.f32 %v2795, %v2421
        %v2799 = vmul.f32 %v2797, %v2421
        %v2800 = vsub.f32 %v2792, %v2798
        %v2801 = vsub.f32 %v2793, %v2799
        %v2802 = vmul.f32 %v2800, %v2800
        %v2803 = vmul.f32 %v2801, %v2801
        %2804 = vadd.xlane.f32.xlu0 %v2802
        %v2805 = vpop.xlane.xlu0 %2804
        %2806 = vadd.xlane.f32.xlu0 %v2803
        %v2807 = vpop.xlane.xlu0 %2806
        %v2808 = vmul.f32 %v2805, %v2421
        %v2809 = vmul.f32 %v2807, %v2421
        %v2810 = vadd.f32 %v2808, 1e-05
        %v2811 = vadd.f32 %v2809, 1e-05
        %v2812 = vrsqrt.pop %v2810
        %v2813 = vrsqrt.pop %v2811
        %v2814 = vmul.f32 %v2800, %v2812
        %v2815 = vmul.f32 %v2801, %v2813
        %v2816 = vld [vmem:[%s11] sm:$0x1]
        %v2818 = vlaneseq
        %v2819 = vshrl.u32 %v2818, 7
        %v2820 = vsub.s32 0, %v2819
        %v2821 = vrot.slane %v2816, %v2820
        %v2823 = vmul.f32 %v2814, %v2821
        %v2824 = vmul.f32 %v2815, %v2821
        %v2825 = vld [vmem:[%s12] sm:$0x1]
        %v2827 = vlaneseq
        %v2828 = vshrl.u32 %v2827, 7
        %v2829 = vsub.s32 0, %v2828
        %v2830 = vrot.slane %v2825, %v2829
        %v2832 = vadd.f32 %v2823, %v2830
        %v2833 = vadd.f32 %v2824, %v2830
        %2834 = vst [vmem:[%s531] sm:$0xff] %v2832
        %2835 = vst [vmem:[%s531 + $0x8] sm:$0xff] %v2833
        %s2836 = sand.u32 %s319, 1
        %s2837 = scalar_lea.sflag [#allocation7], %s2836
        %s2838 = sand.u32 %s319, 1
        %s2839 = smul.addr %s2838, 16
        %s2840 = scalar_lea.vmem [#allocation16], %s2839
        // Predicated region
        $region97: #{tpu_custom_call.1} parent=71 // pred_check
          %p2841 = pneg %p329
        $region98: #{tpu_custom_call.1} parent=71 // pred_check_branch
          %2843 = sbr.rel (%p2841) target = $region100
        $region99: #{tpu_custom_call.1} parent=71 // pred_region
          %s2845 = ssub.s32 256, 256
          %2846 = vsyncadd %s2837, %s2845
          %s2847 = smul.addr %s33, 2
          %s2848 = smul.addr %s2847, 128
          %s2849 = scalar_lea.hbm %s13, %s2848
          %s2850 = sshll.u32 %s2840, 4
          %s2851 = int_to_ptr.vmem [resolvable:$true] %s2850
          %2856 = dma.vmem_to_hbm [thread:$0]  %s2851, 256, %s2849, %s2837, 128, 128, 8
        $region100: #{tpu_custom_call.1} parent=71 // pred_fallthru
          _
      $region72: #{tpu_custom_call.1} parent=5 // pred_fallthru
        _
      %p2857 = scmp.le.s32.totalorder 2, %s28
      // Predicated region
      $region101: #{tpu_custom_call.1} parent=5 // pred_check
        %p2858 = pneg %p2857
      $region102: #{tpu_custom_call.1} parent=5 // pred_check_branch
        %2860 = sbr.rel (%p2858) target = $region104
      $region103: #{tpu_custom_call.1} parent=5 // pred_region
        %s2861 = ssub.s32 %s28, 2
        // Predicated region
        $region105: #{tpu_custom_call.1} parent=103 // pred_check
          %p2862 = pneg %p335
        $region106: #{tpu_custom_call.1} parent=103 // pred_check_branch
          %2864 = sbr.rel (%p2862) target = $region108
        $region107: #{tpu_custom_call.1} parent=103 // pred_region
          %s2865 = sand.u32 %s320, 1
          %s2866 = scalar_lea.sflag [#allocation7], %s2865
          %s2867 = sand.u32 %s320, 1
          %s2868 = smul.addr %s2867, 16
          %s2869 = scalar_lea.vmem [#allocation16], %s2868
          %2870 = dma.done %s2866, 256
        $region108: #{tpu_custom_call.1} parent=103 // pred_fallthru
          _
      $region104: #{tpu_custom_call.1} parent=5 // pred_fallthru
        _
    $region6: #{tpu_custom_call.1} parent=1 // loop_footer
      %s32 = sadd.s32 1, %s28
    $region7: #{tpu_custom_call.1} parent=1 // loop_footer_branch
      %27 = sbr.rel target = $region3
    $region8: #{tpu_custom_call.1} parent=1 // loop_exit
      _
    %2871 = vsyncpa [#allocation6], 1
    %s2872 = scalar_lea.sflag [#allocation6], 1
    %2873 = vsyncpa %s2872, 1
    %2874 = vsyncpa [#allocation9], 1
    %2875 = vsyncpa [#allocation12], 1
    %2876 = vsyncpa [#allocation15], 1
    %2877 = vsyncpa [#allocation7], 1
    %s2878 = scalar_lea.sflag [#allocation7], 1
    %2879 = vsyncpa %s2878, 1

</llo_original>
